<compile_context>
chip_gen: v6e
topology: v6e:2x2x1
jax: 0.10.0
libtpu: 0.0.40
codegen_flags: <defaults>
</compile_context>

<pallas_src>
import functools

import jax
import jax.numpy as jnp
from jax import lax
from jax.experimental import pallas as pl
from jax.experimental.pallas import tpu as pltpu

# Set to jnp.bfloat16 on v6e/v7x for ~2x MXU throughput (accumulation stays
# f32 via preferred_element_type).  Default f32 preserves the reference
# tolerance and v5e-friendly elementwise math.
MATMUL_DTYPE = jnp.float32

_LANE = 128


def _round_up(v, m):
    return (v + m - 1) // m * m


def _resblock_kernel(x_ref, w1_ref, b1_ref, w2_ref, b2_ref, o_ref, pad_ref,
                     *, H, W, C, Kp, Np):
    """One batch element per grid step.

    x_ref   : (1, H*W, C)          input, spatial rows flattened row-major
    w*_ref  : (Kp, Np)             3x3 weights as (9*C, C), zero-padded
    b*_ref  : (1, Np)              bias, zero-padded
    o_ref   : (1, H*W, Np)         lane-dense output (first C lanes are real)
    pad_ref : (H*W + 2*(W+1), C)   VMEM scratch: zero border of W+1 rows on
                                   each side, interior rewritten per conv.
    """
    HW = H * W
    PAD = W + 1                    # largest |dh*W + dw| tap offset

    # Zero only the scratch borders (the interior is fully overwritten below,
    # so no full-scratch clear is needed).
    border = jnp.zeros((PAD, C), jnp.float32)
    pad_ref[0:PAD, :] = border
    pad_ref[PAD + HW:PAD + HW + PAD, :] = border

    # Column-edge validity masks, hoisted (reused by both convs, all kh).
    col = lax.broadcasted_iota(jnp.int32, (HW, 1), 0) % W
    m_left = (col > 0).astype(jnp.float32)        # tap reads column j-1
    m_right = (col < W - 1).astype(jnp.float32)   # tap reads column j+1

    def conv3x3(src, w_ref, b_ref):
        # src: (HW, C) f32 -> (HW, Np) f32 = conv3x3(src) + bias.
        pad_ref[PAD:PAD + HW, :] = src
        taps = []
        for kh in range(3):
            for kw in range(3):
                off = PAD + (kh - 1) * W + (kw - 1)
                t = pad_ref[off:off + HW, :]      # shifted tap, (HW, C)
                if kw == 0:
                    t = t * m_left                # zero wrapped left edge
                elif kw == 2:
                    t = t * m_right               # zero wrapped right edge
                taps.append(t)
        if Kp > 9 * C:                            # pad contraction dim to 128
            taps.append(jnp.zeros((HW, Kp - 9 * C), jnp.float32))
        patches = jnp.concatenate(taps, axis=-1)  # (HW, Kp), single im2col tile
        # One MXU matmul per conv (M=HW, K=Kp, N=Np).  For production-sized
        # C / H*W, tile the M dimension with lax.fori_loop to bound vreg
        # pressure; unnecessary at these shapes.
        acc = jnp.dot(patches.astype(w_ref.dtype), w_ref[...],
                      preferred_element_type=jnp.float32)
        return acc + b_ref[...]

    x = x_ref[0].astype(jnp.float32)                      # (HW, C)

    h = jnp.maximum(conv3x3(x, w1_ref, b1_ref), 0.0)      # (HW, Np)
    y = conv3x3(h[:, :C], w2_ref, b2_ref)                 # (HW, Np)

    # Residual add; pad x to Np lanes (padding lanes are discarded by the
    # wrapper, so their contents are irrelevant).
    if Np > C:
        x = jnp.concatenate(
            [x, jnp.zeros((HW, Np - C), jnp.float32)], axis=-1)
    o_ref[0] = (x + y).astype(o_ref.dtype)                # unmasked (HW, Np) store


def resblock_pallas(x_nchw, w1_oihw, b1, w2_oihw, b2):
    B, C, H, W = x_nchw.shape
    HW = H * W
    Kp = _round_up(9 * C, _LANE)
    Np = _round_up(C, _LANE)

    # NCHW -> (B, H*W, C).  Single fused layout op (no zero-pad pass any
    # more); in an NHWC end-to-end pipeline this transpose would disappear.
    x = jnp.transpose(x_nchw, (0, 2, 3, 1)).reshape(B, HW, C)

    # OIHW -> (kh, kw, Cin, Cout) -> (9*Cin, Cout), zero-padded to (Kp, Np).
    def prep_w(w):
        w = jnp.transpose(w, (2, 3, 1, 0)).reshape(9 * C, C)
        return jnp.pad(w.astype(MATMUL_DTYPE), ((0, Kp - 9 * C), (0, Np - C)))

    def prep_b(b):
        return jnp.pad(b.astype(jnp.float32), (0, Np - C)).reshape(1, Np)

    w1p, w2p = prep_w(w1_oihw), prep_w(w2_oihw)
    b1p, b2p = prep_b(b1), prep_b(b2)

    kernel = functools.partial(_resblock_kernel, H=H, W=W, C=C, Kp=Kp, Np=Np)

    out = pl.pallas_call(
        kernel,
        out_shape=jax.ShapeDtypeStruct((B, HW, Np), jnp.float32),
        grid_spec=pltpu.PrefetchScalarGridSpec(
            num_scalar_prefetch=0,
            grid=(B,),
            in_specs=[
                pl.BlockSpec((1, HW, C), lambda b: (b, 0, 0)),
                pl.BlockSpec((Kp, Np), lambda b: (0, 0)),
                pl.BlockSpec((1, Np), lambda b: (0, 0)),
                pl.BlockSpec((Kp, Np), lambda b: (0, 0)),
                pl.BlockSpec((1, Np), lambda b: (0, 0)),
            ],
            out_specs=pl.BlockSpec((1, HW, Np), lambda b: (b, 0, 0)),
            scratch_shapes=[pltpu.VMEM((HW + 2 * (W + 1), C), jnp.float32)],
        ),
        compiler_params=pltpu.CompilerParams(
            dimension_semantics=("parallel",),   # batch steps independent
            vmem_limit_bytes=32 * 1024 * 1024,   # fits every TPU generation
        ),
    )(x, w1p, b1p, w2p, b2p)

    # Drop padded lanes and return to the module's NCHW layout (one fused op).
    out = out[:, :, :C].reshape(B, H, W, C)
    return jnp.transpose(out, (0, 3, 1, 2)).astype(x_nchw.dtype)


def resblock_ref(x, w1, b1, w2, b2):
    """Pure-JAX reference matching PyTorch Conv2d(NCHW, OIHW) semantics."""
    dn = lax.conv_dimension_numbers(x.shape, w1.shape, ("NCHW", "OIHW", "NCHW"))
    h = lax.conv_general_dilated(x, w1, (1, 1), ((1, 1), (1, 1)),
                                 dimension_numbers=dn)
    h = jnp.maximum(h + b1[None, :, None, None], 0.0)
    h = lax.conv_general_dilated(h, w2, (1, 1), ((1, 1), (1, 1)),
                                 dimension_numbers=dn)
    h = h + b2[None, :, None, None]
    return x + h


if __name__ == "__main__":
    B, C, H, W = 2, 4, 16, 16
    key = jax.random.PRNGKey(0)
    kx, k1, k2, k3, k4 = jax.random.split(key, 5)

    x = jax.random.normal(kx, (B, C, H, W), dtype=jnp.float32)
    # PyTorch Conv2d parameter shapes: weight OIHW, bias (C,)
    w1 = 0.1 * jax.random.normal(k1, (C, C, 3, 3), dtype=jnp.float32)
    b1 = 0.1 * jax.random.normal(k2, (C,), dtype=jnp.float32)
    w2 = 0.1 * jax.random.normal(k3, (C, C, 3, 3), dtype=jnp.float32)
    b2 = 0.1 * jax.random.normal(k4, (C,), dtype=jnp.float32)

    out = jax.block_until_ready(resblock_pallas(x, w1, b1, w2, b2))

    ref = resblock_ref(x, w1, b1, w2, b2)
    assert out.shape == (B, C, H, W)
    assert jnp.allclose(out, ref, atol=1e-4, rtol=1e-4), "mismatch vs reference"

    print("KERNEL_OK")
</pallas_src>

<mosaic_0001>
module attributes {stable_mosaic.version = 11 : i64} {
  func.func @_resblock_kernel(%arg0: i32, %arg1: memref<1x256x4xf32, #tpu.memory_space<vmem>>, %arg2: memref<128x128xf32, #tpu.memory_space<vmem>>, %arg3: memref<1x128xf32, #tpu.memory_space<vmem>>, %arg4: memref<128x128xf32, #tpu.memory_space<vmem>>, %arg5: memref<1x128xf32, #tpu.memory_space<vmem>>, %arg6: memref<1x256x128xf32, #tpu.memory_space<vmem>>, %arg7: memref<290x4xf32, #tpu.memory_space<vmem>>) attributes {dimension_semantics = [#tpu.dimension_semantics<parallel>], iteration_bounds = array<i64: 2>, scalar_prefetch = 0 : i64, scratch_operands = 1 : i64, tpu.core_type = #tpu.core_type<tc>, window_params = [{transform_indices = @transform_0, window_bounds = array<i64: 1, 256, 4>}, {pipeline_mode = #tpu.pipeline_mode<synchronous>, transform_indices = @transform_1, window_bounds = array<i64: 128, 128>}, {pipeline_mode = #tpu.pipeline_mode<synchronous>, transform_indices = @transform_2, window_bounds = array<i64: 1, 128>}, {pipeline_mode = #tpu.pipeline_mode<synchronous>, transform_indices = @transform_3, window_bounds = array<i64: 128, 128>}, {pipeline_mode = #tpu.pipeline_mode<synchronous>, transform_indices = @transform_4, window_bounds = array<i64: 1, 128>}, {transform_indices = @transform_5, window_bounds = array<i64: 1, 256, 128>}]} {
    %cst = arith.constant 0.000000e+00 : f32
    %0 = vector.broadcast %cst : f32 to vector<17x4xf32>
    %c0 = arith.constant 0 : index
    %c0_0 = arith.constant 0 : index
    %1 = vector.load %arg7[%c0, %c0_0] : memref<290x4xf32, #tpu.memory_space<vmem>>, vector<17x4xf32>
    tpu.vector_store %arg7[%c0, %c0_0], %0 {strides = array<i32>} : memref<290x4xf32, #tpu.memory_space<vmem>>, vector<17x4xf32>,
    %c273 = arith.constant 273 : index
    %c0_1 = arith.constant 0 : index
    %2 = vector.load %arg7[%c273, %c0_1] : memref<290x4xf32, #tpu.memory_space<vmem>>, vector<17x4xf32>
    tpu.vector_store %arg7[%c273, %c0_1], %0 {strides = array<i32>} : memref<290x4xf32, #tpu.memory_space<vmem>>, vector<17x4xf32>,
    %3 = tpu.iota {dimensions = array<i32: 0>} : vector<256x1xi32>
    %c16_i32 = arith.constant 16 : i32
    %c0_i32 = arith.constant 0 : i32
    %4 = arith.cmpi eq, %c16_i32, %c0_i32 : i32
    %c1_i32 = arith.constant 1 : i32
    %5 = arith.select %4, %c1_i32, %c16_i32 : i32
    %6 = vector.broadcast %5 : i32 to vector<256x1xi32>
    %7 = arith.remsi %3, %6 : vector<256x1xi32>
    %c0_i32_2 = arith.constant 0 : i32
    %8 = vector.broadcast %c0_i32_2 : i32 to vector<256x1xi32>
    %9 = arith.cmpi ne, %7, %8 : vector<256x1xi32>
    %c0_i32_3 = arith.constant 0 : i32
    %10 = vector.broadcast %c0_i32_3 : i32 to vector<256x1xi32>
    %11 = arith.cmpi slt, %7, %10 : vector<256x1xi32>
    %c0_i32_4 = arith.constant 0 : i32
    %12 = arith.cmpi slt, %5, %c0_i32_4 : i32
    %13 = vector.broadcast %12 : i1 to vector<256x1xi1>
    %14 = vector.broadcast %13 : vector<256x1xi1> to vector<256x1xi1>
    %15 = arith.xori %11, %14 : vector<256x1xi1>
    %16 = arith.andi %15, %9 : vector<256x1xi1>
    %17 = vector.broadcast %5 : i32 to vector<256x1xi32>
    %18 = arith.addi %7, %17 : vector<256x1xi32>
    %19 = arith.select %16, %18, %7 : vector<256x1xi1>, vector<256x1xi32>
    %c0_i32_5 = arith.constant 0 : i32
    %20 = vector.broadcast %c0_i32_5 : i32 to vector<256x1xi32>
    %21 = arith.cmpi sgt, %19, %20 : vector<256x1xi32>
    %22 = arith.extui %21 : vector<256x1xi1> to vector<256x1xi32>
    %23 = arith.sitofp %22 : vector<256x1xi32> to vector<256x1xf32>
    %c15_i32 = arith.constant 15 : i32
    %24 = vector.broadcast %c15_i32 : i32 to vector<256x1xi32>
    %25 = arith.cmpi slt, %19, %24 : vector<256x1xi32>
    %26 = arith.extui %25 : vector<256x1xi1> to vector<256x1xi32>
    %27 = arith.sitofp %26 : vector<256x1xi32> to vector<256x1xf32>
    %c0_6 = arith.constant 0 : index
    %c0_7 = arith.constant 0 : index
    %c0_8 = arith.constant 0 : index
    %28 = vector.load %arg1[%c0_6, %c0_7, %c0_8] : memref<1x256x4xf32, #tpu.memory_space<vmem>>, vector<1x256x4xf32>
    %29 = vector.shape_cast %28 : vector<1x256x4xf32> to vector<256x4xf32>
    %c17 = arith.constant 17 : index
    %c0_9 = arith.constant 0 : index
    %30 = vector.load %arg7[%c17, %c0_9] : memref<290x4xf32, #tpu.memory_space<vmem>>, vector<256x4xf32>
    tpu.vector_store %arg7[%c17, %c0_9], %29 {strides = array<i32>} : memref<290x4xf32, #tpu.memory_space<vmem>>, vector<256x4xf32>,
    %c0_10 = arith.constant 0 : index
    %c0_11 = arith.constant 0 : index
    %31 = vector.load %arg7[%c0_10, %c0_11] : memref<290x4xf32, #tpu.memory_space<vmem>>, vector<256x4xf32>
    %32 = vector.broadcast %23 : vector<256x1xf32> to vector<256x4xf32>
    %33 = arith.mulf %31, %32 : vector<256x4xf32>
    %c1 = arith.constant 1 : index
    %c0_12 = arith.constant 0 : index
    %34 = vector.load %arg7[%c1, %c0_12] : memref<290x4xf32, #tpu.memory_space<vmem>>, vector<256x4xf32>
    %c2 = arith.constant 2 : index
    %c0_13 = arith.constant 0 : index
    %35 = vector.load %arg7[%c2, %c0_13] : memref<290x4xf32, #tpu.memory_space<vmem>>, vector<256x4xf32>
    %36 = vector.broadcast %27 : vector<256x1xf32> to vector<256x4xf32>
    %37 = arith.mulf %35, %36 : vector<256x4xf32>
    %c16 = arith.constant 16 : index
    %c0_14 = arith.constant 0 : index
    %38 = vector.load %arg7[%c16, %c0_14] : memref<290x4xf32, #tpu.memory_space<vmem>>, vector<256x4xf32>
    %39 = vector.broadcast %23 : vector<256x1xf32> to vector<256x4xf32>
    %40 = arith.mulf %38, %39 : vector<256x4xf32>
    %c17_15 = arith.constant 17 : index
    %c0_16 = arith.constant 0 : index
    %41 = vector.load %arg7[%c17_15, %c0_16] : memref<290x4xf32, #tpu.memory_space<vmem>>, vector<256x4xf32>
    %c18 = arith.constant 18 : index
    %c0_17 = arith.constant 0 : index
    %42 = vector.load %arg7[%c18, %c0_17] : memref<290x4xf32, #tpu.memory_space<vmem>>, vector<256x4xf32>
    %43 = vector.broadcast %27 : vector<256x1xf32> to vector<256x4xf32>
    %44 = arith.mulf %42, %43 : vector<256x4xf32>
    %c32 = arith.constant 32 : index
    %c0_18 = arith.constant 0 : index
    %45 = vector.load %arg7[%c32, %c0_18] : memref<290x4xf32, #tpu.memory_space<vmem>>, vector<256x4xf32>
    %46 = vector.broadcast %23 : vector<256x1xf32> to vector<256x4xf32>
    %47 = arith.mulf %45, %46 : vector<256x4xf32>
    %c33 = arith.constant 33 : index
    %c0_19 = arith.constant 0 : index
    %48 = vector.load %arg7[%c33, %c0_19] : memref<290x4xf32, #tpu.memory_space<vmem>>, vector<256x4xf32>
    %c34 = arith.constant 34 : index
    %c0_20 = arith.constant 0 : index
    %49 = vector.load %arg7[%c34, %c0_20] : memref<290x4xf32, #tpu.memory_space<vmem>>, vector<256x4xf32>
    %50 = vector.broadcast %27 : vector<256x1xf32> to vector<256x4xf32>
    %51 = arith.mulf %49, %50 : vector<256x4xf32>
    %cst_21 = arith.constant 0.000000e+00 : f32
    %52 = vector.broadcast %cst_21 : f32 to vector<256x92xf32>
    %53 = tpu.concatenate %33, %34, %37, %40, %41, %44, %47, %48, %51, %52 in 1 : vector<256x4xf32>, vector<256x4xf32>, vector<256x4xf32>, vector<256x4xf32>, vector<256x4xf32>, vector<256x4xf32>, vector<256x4xf32>, vector<256x4xf32>, vector<256x4xf32>, vector<256x92xf32> -> vector<256x128xf32>
    %c0_22 = arith.constant 0 : index
    %c0_23 = arith.constant 0 : index
    %54 = vector.load %arg2[%c0_22, %c0_23] : memref<128x128xf32, #tpu.memory_space<vmem>>, vector<128x128xf32>
    %cst_24 = arith.constant dense<0.000000e+00> : vector<256x128xf32>
    %55 = tpu.matmul %53, %54, %cst_24 {dimension_numbers = #tpu.dot_dimension_numbers<[1], [0], [0], [1], [0, 0, 1, 1], [], []>} : vector<256x128xf32>, vector<128x128xf32>, vector<256x128xf32> -> vector<256x128xf32>
    %c0_25 = arith.constant 0 : index
    %c0_26 = arith.constant 0 : index
    %56 = vector.load %arg3[%c0_25, %c0_26] : memref<1x128xf32, #tpu.memory_space<vmem>>, vector<1x128xf32>
    %57 = vector.broadcast %56 : vector<1x128xf32> to vector<256x128xf32>
    %58 = arith.addf %55, %57 : vector<256x128xf32>
    %cst_27 = arith.constant 0.000000e+00 : f32
    %59 = vector.broadcast %cst_27 : f32 to vector<256x128xf32>
    %60 = arith.maximumf %58, %59 : vector<256x128xf32>
    %61 = vector.extract_strided_slice %60 {offsets = [0, 0], sizes = [256, 4], strides = [1, 1]} : vector<256x128xf32> to vector<256x4xf32>
    %c17_28 = arith.constant 17 : index
    %c0_29 = arith.constant 0 : index
    %62 = vector.load %arg7[%c17_28, %c0_29] : memref<290x4xf32, #tpu.memory_space<vmem>>, vector<256x4xf32>
    tpu.vector_store %arg7[%c17_28, %c0_29], %61 {strides = array<i32>} : memref<290x4xf32, #tpu.memory_space<vmem>>, vector<256x4xf32>,
    %c0_30 = arith.constant 0 : index
    %c0_31 = arith.constant 0 : index
    %63 = vector.load %arg7[%c0_30, %c0_31] : memref<290x4xf32, #tpu.memory_space<vmem>>, vector<256x4xf32>
    %64 = vector.broadcast %23 : vector<256x1xf32> to vector<256x4xf32>
    %65 = arith.mulf %63, %64 : vector<256x4xf32>
    %c1_32 = arith.constant 1 : index
    %c0_33 = arith.constant 0 : index
    %66 = vector.load %arg7[%c1_32, %c0_33] : memref<290x4xf32, #tpu.memory_space<vmem>>, vector<256x4xf32>
    %c2_34 = arith.constant 2 : index
    %c0_35 = arith.constant 0 : index
    %67 = vector.load %arg7[%c2_34, %c0_35] : memref<290x4xf32, #tpu.memory_space<vmem>>, vector<256x4xf32>
    %68 = vector.broadcast %27 : vector<256x1xf32> to vector<256x4xf32>
    %69 = arith.mulf %67, %68 : vector<256x4xf32>
    %c16_36 = arith.constant 16 : index
    %c0_37 = arith.constant 0 : index
    %70 = vector.load %arg7[%c16_36, %c0_37] : memref<290x4xf32, #tpu.memory_space<vmem>>, vector<256x4xf32>
    %71 = vector.broadcast %23 : vector<256x1xf32> to vector<256x4xf32>
    %72 = arith.mulf %70, %71 : vector<256x4xf32>
    %c17_38 = arith.constant 17 : index
    %c0_39 = arith.constant 0 : index
    %73 = vector.load %arg7[%c17_38, %c0_39] : memref<290x4xf32, #tpu.memory_space<vmem>>, vector<256x4xf32>
    %c18_40 = arith.constant 18 : index
    %c0_41 = arith.constant 0 : index
    %74 = vector.load %arg7[%c18_40, %c0_41] : memref<290x4xf32, #tpu.memory_space<vmem>>, vector<256x4xf32>
    %75 = vector.broadcast %27 : vector<256x1xf32> to vector<256x4xf32>
    %76 = arith.mulf %74, %75 : vector<256x4xf32>
    %c32_42 = arith.constant 32 : index
    %c0_43 = arith.constant 0 : index
    %77 = vector.load %arg7[%c32_42, %c0_43] : memref<290x4xf32, #tpu.memory_space<vmem>>, vector<256x4xf32>
    %78 = vector.broadcast %23 : vector<256x1xf32> to vector<256x4xf32>
    %79 = arith.mulf %77, %78 : vector<256x4xf32>
    %c33_44 = arith.constant 33 : index
    %c0_45 = arith.constant 0 : index
    %80 = vector.load %arg7[%c33_44, %c0_45] : memref<290x4xf32, #tpu.memory_space<vmem>>, vector<256x4xf32>
    %c34_46 = arith.constant 34 : index
    %c0_47 = arith.constant 0 : index
    %81 = vector.load %arg7[%c34_46, %c0_47] : memref<290x4xf32, #tpu.memory_space<vmem>>, vector<256x4xf32>
    %82 = vector.broadcast %27 : vector<256x1xf32> to vector<256x4xf32>
    %83 = arith.mulf %81, %82 : vector<256x4xf32>
    %cst_48 = arith.constant 0.000000e+00 : f32
    %84 = vector.broadcast %cst_48 : f32 to vector<256x92xf32>
    %85 = tpu.concatenate %65, %66, %69, %72, %73, %76, %79, %80, %83, %84 in 1 : vector<256x4xf32>, vector<256x4xf32>, vector<256x4xf32>, vector<256x4xf32>, vector<256x4xf32>, vector<256x4xf32>, vector<256x4xf32>, vector<256x4xf32>, vector<256x4xf32>, vector<256x92xf32> -> vector<256x128xf32>
    %c0_49 = arith.constant 0 : index
    %c0_50 = arith.constant 0 : index
    %86 = vector.load %arg4[%c0_49, %c0_50] : memref<128x128xf32, #tpu.memory_space<vmem>>, vector<128x128xf32>
    %cst_51 = arith.constant dense<0.000000e+00> : vector<256x128xf32>
    %87 = tpu.matmul %85, %86, %cst_51 {dimension_numbers = #tpu.dot_dimension_numbers<[1], [0], [0], [1], [0, 0, 1, 1], [], []>} : vector<256x128xf32>, vector<128x128xf32>, vector<256x128xf32> -> vector<256x128xf32>
    %c0_52 = arith.constant 0 : index
    %c0_53 = arith.constant 0 : index
    %88 = vector.load %arg5[%c0_52, %c0_53] : memref<1x128xf32, #tpu.memory_space<vmem>>, vector<1x128xf32>
    %89 = vector.broadcast %88 : vector<1x128xf32> to vector<256x128xf32>
    %90 = arith.addf %87, %89 : vector<256x128xf32>
    %cst_54 = arith.constant 0.000000e+00 : f32
    %91 = vector.broadcast %cst_54 : f32 to vector<256x124xf32>
    %92 = tpu.concatenate %29, %91 in 1 : vector<256x4xf32>, vector<256x124xf32> -> vector<256x128xf32>
    %93 = arith.addf %92, %90 : vector<256x128xf32>
    %c0_55 = arith.constant 0 : index
    %c0_56 = arith.constant 0 : index
    %c0_57 = arith.constant 0 : index
    %94 = vector.load %arg6[%c0_55, %c0_56, %c0_57] : memref<1x256x128xf32, #tpu.memory_space<vmem>>, vector<1x256x128xf32>
    %95 = vector.shape_cast %94 : vector<1x256x128xf32> to vector<256x128xf32>
    %96 = vector.shape_cast %93 : vector<256x128xf32> to vector<1x256x128xf32>
    tpu.vector_store %arg6[%c0_55, %c0_56, %c0_57], %96 {strides = array<i32>} : memref<1x256x128xf32, #tpu.memory_space<vmem>>, vector<1x256x128xf32>,
    return
  }
  func.func @transform_0(%arg0: i32) -> (i32, i32, i32) {
    %c0_i32 = arith.constant 0 : i32
    %c0_i32_0 = arith.constant 0 : i32
    %c0_i32_1 = arith.constant 0 : i32
    return %arg0, %c0_i32, %c0_i32_0 : i32, i32, i32
  }
  func.func @transform_1(%arg0: i32) -> (i32, i32) {
    %c0_i32 = arith.constant 0 : i32
    %c0_i32_0 = arith.constant 0 : i32
    %c0_i32_1 = arith.constant 0 : i32
    return %c0_i32, %c0_i32_0 : i32, i32
  }
  func.func @transform_2(%arg0: i32) -> (i32, i32) {
    %c0_i32 = arith.constant 0 : i32
    %c0_i32_0 = arith.constant 0 : i32
    %c0_i32_1 = arith.constant 0 : i32
    return %c0_i32, %c0_i32_0 : i32, i32
  }
  func.func @transform_3(%arg0: i32) -> (i32, i32) {
    %c0_i32 = arith.constant 0 : i32
    %c0_i32_0 = arith.constant 0 : i32
    %c0_i32_1 = arith.constant 0 : i32
    return %c0_i32, %c0_i32_0 : i32, i32
  }
  func.func @transform_4(%arg0: i32) -> (i32, i32) {
    %c0_i32 = arith.constant 0 : i32
    %c0_i32_0 = arith.constant 0 : i32
    %c0_i32_1 = arith.constant 0 : i32
    return %c0_i32, %c0_i32_0 : i32, i32
  }
  func.func @transform_5(%arg0: i32) -> (i32, i32, i32) {
    %c0_i32 = arith.constant 0 : i32
    %c0_i32_0 = arith.constant 0 : i32
    %c0_i32_1 = arith.constant 0 : i32
    return %arg0, %c0_i32, %c0_i32_0 : i32, i32, i32
  }
}

</mosaic_0001>

<llo_original>
// kernel: tpu_custom_call.1
$region0: #{tpu_custom_call.1}
  #allocation0 [shape = 'u32[]', space=smem, size = 0x4, offset = 0x4, fixed_abs, tag = 'smem constant byte address 0x4 - core index']
  #allocation1 [shape = 'u32[144,128]{1,0:T(1,128)}', space=vmem, size = 0x12000, scoped, tag = 'internal scratch']
  #allocation2 [shape = 'f32[290,4]{1,0:T(8,128)}', space=vmem, size = 0x25000, scoped, tag = 'scratch operand']
  %s0 = inlined_call_operand.vmem [shape: f32[2,256,4], index: 0, kind: input, shape index: {}]
  %s1 = inlined_call_operand.vmem [shape: f32[128,128], index: 1, kind: input, shape index: {}]
  %s2 = inlined_call_operand.vmem [shape: f32[1,128], index: 2, kind: input, shape index: {}]
  %s3 = inlined_call_operand.vmem [shape: f32[128,128], index: 3, kind: input, shape index: {}]
  %s4 = inlined_call_operand.vmem [shape: f32[1,128], index: 4, kind: input, shape index: {}]
  %s5 = inlined_call_operand.hbm [shape: f32[2,256,128], index: 5, kind: output, shape index: {}]
  %s6 = sld [smem:[#allocation0]]
  $region53: #{tpu_custom_call.1} parent=0
    _
  %s8 = ssub.s32 1, %s6
  %s9 = scalar_select 0, %s8, %s6
  $region1: #{tpu_custom_call.1} parent=0
    #allocation3 [shape = 'u8[262144]{0}', space=vmem, size = 0x40000, scoped, tag = 'output window, operand 0']
    #allocation4 [shape = 's32[2]{0}', space=sflag, size = 0x8, scoped, tag = 'scoped memory for tpu_custom_call.1']
    %10 = vsyncpa [#allocation4], 0
    %s11 = scalar_lea.sflag [#allocation4], 1
    %12 = vsyncpa %s11, 0
    loop: start=0, step=1, limit=4
    $region2: #{tpu_custom_call.1} parent=1 // loop_pre_header
      _
    $region3: #{tpu_custom_call.1} parent=1 // loop_header
      %s14 = sphi 0, %s18
      %p15 = scmp.ge.s32.totalorder %s14, 4
      %s24 = sphi 0, %s26
      %s27 = sphi 0, %s24
      %s28 = sphi 0, %s27
      %s44 = sphi 0, %s28
      %s48 = sphi 0, %s48
      %s50 = sphi 0, %s48
      %s51 = sphi 0, %s50
      %s65 = sphi 0, %s51
      %s69 = sphi 0, %s69
      %s71 = sphi 0, %s69
      %s72 = sphi 0, %s71
      %s86 = sphi 0, %s72
      %s90 = sphi 0, %s90
      %s92 = sphi 0, %s90
      %s93 = sphi 0, %s92
      %s107 = sphi 0, %s93
      %s111 = sphi 0, %s111
      %s113 = sphi 0, %s111
      %s114 = sphi 0, %s113
      %s128 = sphi 0, %s114
      %s134 = sphi 0, %s136
      %s137 = sphi 0, %s134
      %s138 = sphi 0, %s137
      %s154 = sphi 0, %s138
    $region4: #{tpu_custom_call.1} parent=1 // loop_header_branch
      %17 = sbr.rel (%p15) target = $region8
    $region5: #{tpu_custom_call.1} parent=1 // loop_body
      %s19 = ssub.s32 %s14, 1
      %s20 = ssub.s32 %s14, 2
      %s21 = sadd.s32 %s14, 1
      %s22 = ssub.s32 %s14, %s21
      %p23 = scmp.eq.s32.totalorder %s22, 0
      %s25 = sadd.s32 %s24, 1
      %s26 = scalar_select %p23, %s24, %s25
      %p29 = pneg %p23
      %p30 = scmp.eq.s32.totalorder %s14, 1
      %p31 = por %p29, %p30
      %p32 = scmp.ne.s32.totalorder %s24, %s27
      %p33 = scmp.eq.s32.totalorder %s14, 0
      %p34 = por %p32, %p33
      %p35 = scmp.ne.s32.totalorder %s24, %s27
      %p36 = scmp.eq.s32.totalorder %s19, 1
      %p37 = por %p35, %p36
      %p38 = scmp.ne.s32.totalorder %s27, %s28
      %p39 = scmp.eq.s32.totalorder %s19, 0
      %p40 = por %p38, %p39
      %p41 = scmp.ne.s32.totalorder %s27, %s28
      %p42 = scmp.eq.s32.totalorder %s20, 1
      %p43 = por %p41, %p42
      %p45 = scmp.ne.s32.totalorder %s28, %s44
      %p46 = scmp.eq.s32.totalorder %s20, 0
      %p47 = por %p45, %p46
      %s49 = sadd.s32 %s48, 1
      %p52 = scmp.eq.s32.totalorder %s14, 1
      %p53 = scmp.ne.s32.totalorder %s48, %s50
      %p54 = scmp.eq.s32.totalorder %s14, 0
      %p55 = por %p53, %p54
      %p56 = scmp.ne.s32.totalorder %s48, %s50
      %p57 = scmp.eq.s32.totalorder %s19, 1
      %p58 = por %p56, %p57
      %p59 = scmp.ne.s32.totalorder %s50, %s51
      %p60 = scmp.eq.s32.totalorder %s19, 0
      %p61 = por %p59, %p60
      %p62 = scmp.ne.s32.totalorder %s50, %s51
      %p63 = scmp.eq.s32.totalorder %s20, 1
      %p64 = por %p62, %p63
      %p66 = scmp.ne.s32.totalorder %s51, %s65
      %p67 = scmp.eq.s32.totalorder %s20, 0
      %p68 = por %p66, %p67
      %s70 = sadd.s32 %s69, 1
      %p73 = scmp.eq.s32.totalorder %s14, 1
      %p74 = scmp.ne.s32.totalorder %s69, %s71
      %p75 = scmp.eq.s32.totalorder %s14, 0
      %p76 = por %p74, %p75
      %p77 = scmp.ne.s32.totalorder %s69, %s71
      %p78 = scmp.eq.s32.totalorder %s19, 1
      %p79 = por %p77, %p78
      %p80 = scmp.ne.s32.totalorder %s71, %s72
      %p81 = scmp.eq.s32.totalorder %s19, 0
      %p82 = por %p80, %p81
      %p83 = scmp.ne.s32.totalorder %s71, %s72
      %p84 = scmp.eq.s32.totalorder %s20, 1
      %p85 = por %p83, %p84
      %p87 = scmp.ne.s32.totalorder %s72, %s86
      %p88 = scmp.eq.s32.totalorder %s20, 0
      %p89 = por %p87, %p88
      %s91 = sadd.s32 %s90, 1
      %p94 = scmp.eq.s32.totalorder %s14, 1
      %p95 = scmp.ne.s32.totalorder %s90, %s92
      %p96 = scmp.eq.s32.totalorder %s14, 0
      %p97 = por %p95, %p96
      %p98 = scmp.ne.s32.totalorder %s90, %s92
      %p99 = scmp.eq.s32.totalorder %s19, 1
      %p100 = por %p98, %p99
      %p101 = scmp.ne.s32.totalorder %s92, %s93
      %p102 = scmp.eq.s32.totalorder %s19, 0
      %p103 = por %p101, %p102
      %p104 = scmp.ne.s32.totalorder %s92, %s93
      %p105 = scmp.eq.s32.totalorder %s20, 1
      %p106 = por %p104, %p105
      %p108 = scmp.ne.s32.totalorder %s93, %s107
      %p109 = scmp.eq.s32.totalorder %s20, 0
      %p110 = por %p108, %p109
      %s112 = sadd.s32 %s111, 1
      %p115 = scmp.eq.s32.totalorder %s14, 1
      %p116 = scmp.ne.s32.totalorder %s111, %s113
      %p117 = scmp.eq.s32.totalorder %s14, 0
      %p118 = por %p116, %p117
      %p119 = scmp.ne.s32.totalorder %s111, %s113
      %p120 = scmp.eq.s32.totalorder %s19, 1
      %p121 = por %p119, %p120
      %p122 = scmp.ne.s32.totalorder %s113, %s114
      %p123 = scmp.eq.s32.totalorder %s19, 0
      %p124 = por %p122, %p123
      %p125 = scmp.ne.s32.totalorder %s113, %s114
      %p126 = scmp.eq.s32.totalorder %s20, 1
      %p127 = por %p125, %p126
      %p129 = scmp.ne.s32.totalorder %s114, %s128
      %p130 = scmp.eq.s32.totalorder %s20, 0
      %p131 = por %p129, %p130
      %s132 = ssub.s32 %s14, %s21
      %p133 = scmp.eq.s32.totalorder %s132, 0
      %s135 = sadd.s32 %s134, 1
      %s136 = scalar_select %p133, %s134, %s135
      %p139 = pneg %p133
      %p140 = scmp.eq.s32.totalorder %s14, 1
      %p141 = por %p139, %p140
      %p142 = scmp.ne.s32.totalorder %s134, %s137
      %p143 = scmp.eq.s32.totalorder %s14, 0
      %p144 = por %p142, %p143
      %p145 = scmp.ne.s32.totalorder %s134, %s137
      %p146 = scmp.eq.s32.totalorder %s19, 1
      %p147 = por %p145, %p146
      %p148 = scmp.ne.s32.totalorder %s137, %s138
      %p149 = scmp.eq.s32.totalorder %s19, 0
      %p150 = por %p148, %p149
      %p151 = scmp.ne.s32.totalorder %s137, %s138
      %p152 = scmp.eq.s32.totalorder %s20, 1
      %p153 = por %p151, %p152
      %p155 = scmp.ne.s32.totalorder %s138, %s154
      %p156 = scmp.eq.s32.totalorder %s20, 0
      %p157 = por %p155, %p156
      %p158 = scmp.le.s32.totalorder 1, %s14
      %p159 = scmp.lt.s32.totalorder %s14, 3
      %p160 = pnand %p158, %p159
      %p161 = pneg %p160
      // Predicated region
      $region9: #{tpu_custom_call.1} parent=5 // pred_check
        _
      $region10: #{tpu_custom_call.1} parent=5 // pred_check_branch
        %163 = sbr.rel (%p160) target = $region12
      $region11: #{tpu_custom_call.1} parent=5 // pred_region
        %s164 = ssub.s32 %s14, 1
        // Predicated region
        $region13: #{tpu_custom_call.1} parent=11 // pred_check
          %p165 = pneg %p61
        $region14: #{tpu_custom_call.1} parent=11 // pred_check_branch
          %167 = sbr.rel (%p165) target = $region16
        $region15: #{tpu_custom_call.1} parent=11 // pred_region
          _
        $region16: #{tpu_custom_call.1} parent=11 // pred_fallthru
          _
        // Predicated region
        $region17: #{tpu_custom_call.1} parent=11 // pred_check
          %p168 = pneg %p82
        $region18: #{tpu_custom_call.1} parent=11 // pred_check_branch
          %170 = sbr.rel (%p168) target = $region20
        $region19: #{tpu_custom_call.1} parent=11 // pred_region
          _
        $region20: #{tpu_custom_call.1} parent=11 // pred_fallthru
          _
        // Predicated region
        $region21: #{tpu_custom_call.1} parent=11 // pred_check
          %p171 = pneg %p103
        $region22: #{tpu_custom_call.1} parent=11 // pred_check_branch
          %173 = sbr.rel (%p171) target = $region24
        $region23: #{tpu_custom_call.1} parent=11 // pred_region
          _
        $region24: #{tpu_custom_call.1} parent=11 // pred_fallthru
          _
        // Predicated region
        $region25: #{tpu_custom_call.1} parent=11 // pred_check
          %p174 = pneg %p124
        $region26: #{tpu_custom_call.1} parent=11 // pred_check_branch
          %176 = sbr.rel (%p174) target = $region28
        $region27: #{tpu_custom_call.1} parent=11 // pred_region
          _
        $region28: #{tpu_custom_call.1} parent=11 // pred_fallthru
          _
      $region12: #{tpu_custom_call.1} parent=5 // pred_fallthru
        _
      %p177 = scmp.lt.s32.totalorder %s14, 2
      // Predicated region
      $region29: #{tpu_custom_call.1} parent=5 // pred_check
        %p178 = pneg %p177
      $region30: #{tpu_custom_call.1} parent=5 // pred_check_branch
        %180 = sbr.rel (%p178) target = $region32
      $region31: #{tpu_custom_call.1} parent=5 // pred_region
        // Predicated region
        $region33: #{tpu_custom_call.1} parent=31 // pred_check
          %p181 = pneg %p34
        $region34: #{tpu_custom_call.1} parent=31 // pred_check_branch
          %183 = sbr.rel (%p181) target = $region36
        $region35: #{tpu_custom_call.1} parent=31 // pred_region
          %p184 = scmp.lt.s32.totalorder %s14, 1
          %s185 = scalar_select %p184, %s14, 1
          %s186 = smul.addr %s185, 32
          %s187 = smul.addr %s186, 8
          %s188 = scalar_lea.vmem %s0, %s187
        $region36: #{tpu_custom_call.1} parent=31 // pred_fallthru
          _
      $region32: #{tpu_custom_call.1} parent=5 // pred_fallthru
        _
      %p189 = scmp.le.s32.totalorder 1, %s14
      %p190 = scmp.lt.s32.totalorder %s14, 3
      %p191 = pnand %p189, %p190
      %p192 = pneg %p191
      // Predicated region
      $region37: #{tpu_custom_call.1} parent=5 // pred_check
        _
      $region38: #{tpu_custom_call.1} parent=5 // pred_check_branch
        %194 = sbr.rel (%p191) target = $region40
      $region39: #{tpu_custom_call.1} parent=5 // pred_region
        %s195 = ssub.s32 %s14, 1
        %p196 = scmp.lt.s32.totalorder %s19, 1
        %s197 = scalar_select %p196, %s19, 1
        %s198 = smul.addr %s197, 32
        %s199 = smul.addr %s198, 8
        %s200 = scalar_lea.vmem %s0, %s199
        %p201 = pneg %p40
        %p202 = pneg %p37
        %p203 = pneg %p61
        %p204 = pneg %p58
        %p205 = pneg %p82
        %p206 = pneg %p79
        %p207 = pneg %p103
        %p208 = pneg %p100
        %p209 = pneg %p124
        %p210 = pneg %p121
        %p211 = pneg %p150
        %p212 = pneg %p147
        %s213 = sand.u32 %s137, 1
        %s214 = scalar_lea.sflag [#allocation4], %s213
        %s215 = sand.u32 %s137, 1
        %s216 = smul.addr %s215, 256
        %s217 = scalar_lea.vmem [#allocation3], %s216
        %p218 = scmp.lt.s32.totalorder %s19, 1
        %s219 = scalar_select %p218, %s19, 1
        %s220 = smul.addr %s219, 32
        %s221 = smul.addr %s220, 8
        %s222 = scalar_lea.vmem %s0, %s221
        %vm223 = vcmask 31744
        %224 = vst.msk [vmem:[#allocation2] sm:$0xff] %vm223, 0.0
        %225 = vst.msk [vmem:[#allocation2 + $0x8] sm:$0xff] %vm223, 0.0
        %vm226 = vcmask 24576
        %227 = vst.msk [vmem:[#allocation2 + $0x10] sm:$0x1] %vm226, 0.0
        %228 = vst.msk [vmem:[#allocation2 + $0x111] sm:$0xff] %vm223, 0.0
        %229 = vst.msk [vmem:[#allocation2 + $0x119] sm:$0xff] %vm223, 0.0
        %230 = vst.msk [vmem:[#allocation2 + $0x121] sm:$0x1] %vm226, 0.0
        %v231 = vlaneseq
        %v232 = vshrl.u32 %v231, 7
        %v233 = vadd.s32 %v232, 8
        %v234 = vadd.s32 %v232, 16
        %v235 = vadd.s32 %v232, 24
        %v236 = vadd.s32 %v232, 32
        %v237 = vadd.s32 %v232, 40
        %v238 = vadd.s32 %v232, 48
        %v239 = vadd.s32 %v232, 56
        %v240 = vadd.s32 %v232, 64
        %v241 = vadd.s32 %v232, 72
        %v242 = vadd.s32 %v232, 80
        %v243 = vadd.s32 %v232, 88
        %v244 = vadd.s32 %v232, 96
        %v245 = vadd.s32 %v232, 104
        %v246 = vadd.s32 %v232, 112
        %v247 = vadd.s32 %v232, 120
        %v248 = vadd.s32 %v232, 128
        %v249 = vadd.s32 %v232, 136
        %v250 = vadd.s32 %v232, 144
        %v251 = vadd.s32 %v232, 152
        %v252 = vadd.s32 %v232, 160
        %v253 = vadd.s32 %v232, 168
        %v254 = vadd.s32 %v232, 176
        %v255 = vadd.s32 %v232, 184
        %v256 = vadd.s32 %v232, 192
        %v257 = vadd.s32 %v232, 200
        %v258 = vadd.s32 %v232, 208
        %v259 = vadd.s32 %v232, 216
        %v260 = vadd.s32 %v232, 224
        %v261 = vadd.s32 %v232, 232
        %v262 = vadd.s32 %v232, 240
        %v263 = vadd.s32 %v232, 248
        %vm264 = vcmp.lt.s32.totalorder %v232, 0
        %v265 = vsub.s32 0, %v232
        %v266 = vsel %vm264, %v265, %v232
        %v267 = vshrl.u32 %v266, 4
        %v268 = vand.u32 %v266, 15
        %v269 = vsub.s32 0, %v268
        %v270 = vsel %vm264, %v269, %v268
        %vm271 = vcmp.lt.s32.totalorder %v233, 0
        %v272 = vsub.s32 0, %v233
        %v273 = vsel %vm271, %v272, %v233
        %v274 = vshrl.u32 %v273, 4
        %v275 = vand.u32 %v273, 15
        %v276 = vsub.s32 0, %v275
        %v277 = vsel %vm271, %v276, %v275
        %vm278 = vcmp.lt.s32.totalorder %v234, 0
        %v279 = vsub.s32 0, %v234
        %v280 = vsel %vm278, %v279, %v234
        %v281 = vshrl.u32 %v280, 4
        %v282 = vand.u32 %v280, 15
        %v283 = vsub.s32 0, %v282
        %v284 = vsel %vm278, %v283, %v282
        %vm285 = vcmp.lt.s32.totalorder %v235, 0
        %v286 = vsub.s32 0, %v235
        %v287 = vsel %vm285, %v286, %v235
        %v288 = vshrl.u32 %v287, 4
        %v289 = vand.u32 %v287, 15
        %v290 = vsub.s32 0, %v289
        %v291 = vsel %vm285, %v290, %v289
        %vm292 = vcmp.lt.s32.totalorder %v236, 0
        %v293 = vsub.s32 0, %v236
        %v294 = vsel %vm292, %v293, %v236
        %v295 = vshrl.u32 %v294, 4
        %v296 = vand.u32 %v294, 15
        %v297 = vsub.s32 0, %v296
        %v298 = vsel %vm292, %v297, %v296
        %vm299 = vcmp.lt.s32.totalorder %v237, 0
        %v300 = vsub.s32 0, %v237
        %v301 = vsel %vm299, %v300, %v237
        %v302 = vshrl.u32 %v301, 4
        %v303 = vand.u32 %v301, 15
        %v304 = vsub.s32 0, %v303
        %v305 = vsel %vm299, %v304, %v303
        %vm306 = vcmp.lt.s32.totalorder %v238, 0
        %v307 = vsub.s32 0, %v238
        %v308 = vsel %vm306, %v307, %v238
        %v309 = vshrl.u32 %v308, 4
        %v310 = vand.u32 %v308, 15
        %v311 = vsub.s32 0, %v310
        %v312 = vsel %vm306, %v311, %v310
        %vm313 = vcmp.lt.s32.totalorder %v239, 0
        %v314 = vsub.s32 0, %v239
        %v315 = vsel %vm313, %v314, %v239
        %v316 = vshrl.u32 %v315, 4
        %v317 = vand.u32 %v315, 15
        %v318 = vsub.s32 0, %v317
        %v319 = vsel %vm313, %v318, %v317
        %vm320 = vcmp.lt.s32.totalorder %v240, 0
        %v321 = vsub.s32 0, %v240
        %v322 = vsel %vm320, %v321, %v240
        %v323 = vshrl.u32 %v322, 4
        %v324 = vand.u32 %v322, 15
        %v325 = vsub.s32 0, %v324
        %v326 = vsel %vm320, %v325, %v324
        %vm327 = vcmp.lt.s32.totalorder %v241, 0
        %v328 = vsub.s32 0, %v241
        %v329 = vsel %vm327, %v328, %v241
        %v330 = vshrl.u32 %v329, 4
        %v331 = vand.u32 %v329, 15
        %v332 = vsub.s32 0, %v331
        %v333 = vsel %vm327, %v332, %v331
        %vm334 = vcmp.lt.s32.totalorder %v242, 0
        %v335 = vsub.s32 0, %v242
        %v336 = vsel %vm334, %v335, %v242
        %v337 = vshrl.u32 %v336, 4
        %v338 = vand.u32 %v336, 15
        %v339 = vsub.s32 0, %v338
        %v340 = vsel %vm334, %v339, %v338
        %vm341 = vcmp.lt.s32.totalorder %v243, 0
        %v342 = vsub.s32 0, %v243
        %v343 = vsel %vm341, %v342, %v243
        %v344 = vshrl.u32 %v343, 4
        %v345 = vand.u32 %v343, 15
        %v346 = vsub.s32 0, %v345
        %v347 = vsel %vm341, %v346, %v345
        %vm348 = vcmp.lt.s32.totalorder %v244, 0
        %v349 = vsub.s32 0, %v244
        %v350 = vsel %vm348, %v349, %v244
        %v351 = vshrl.u32 %v350, 4
        %v352 = vand.u32 %v350, 15
        %v353 = vsub.s32 0, %v352
        %v354 = vsel %vm348, %v353, %v352
        %vm355 = vcmp.lt.s32.totalorder %v245, 0
        %v356 = vsub.s32 0, %v245
        %v357 = vsel %vm355, %v356, %v245
        %v358 = vshrl.u32 %v357, 4
        %v359 = vand.u32 %v357, 15
        %v360 = vsub.s32 0, %v359
        %v361 = vsel %vm355, %v360, %v359
        %vm362 = vcmp.lt.s32.totalorder %v246, 0
        %v363 = vsub.s32 0, %v246
        %v364 = vsel %vm362, %v363, %v246
        %v365 = vshrl.u32 %v364, 4
        %v366 = vand.u32 %v364, 15
        %v367 = vsub.s32 0, %v366
        %v368 = vsel %vm362, %v367, %v366
        %vm369 = vcmp.lt.s32.totalorder %v247, 0
        %v370 = vsub.s32 0, %v247
        %v371 = vsel %vm369, %v370, %v247
        %v372 = vshrl.u32 %v371, 4
        %v373 = vand.u32 %v371, 15
        %v374 = vsub.s32 0, %v373
        %v375 = vsel %vm369, %v374, %v373
        %vm376 = vcmp.lt.s32.totalorder %v248, 0
        %v377 = vsub.s32 0, %v248
        %v378 = vsel %vm376, %v377, %v248
        %v379 = vshrl.u32 %v378, 4
        %v380 = vand.u32 %v378, 15
        %v381 = vsub.s32 0, %v380
        %v382 = vsel %vm376, %v381, %v380
        %vm383 = vcmp.lt.s32.totalorder %v249, 0
        %v384 = vsub.s32 0, %v249
        %v385 = vsel %vm383, %v384, %v249
        %v386 = vshrl.u32 %v385, 4
        %v387 = vand.u32 %v385, 15
        %v388 = vsub.s32 0, %v387
        %v389 = vsel %vm383, %v388, %v387
        %vm390 = vcmp.lt.s32.totalorder %v250, 0
        %v391 = vsub.s32 0, %v250
        %v392 = vsel %vm390, %v391, %v250
        %v393 = vshrl.u32 %v392, 4
        %v394 = vand.u32 %v392, 15
        %v395 = vsub.s32 0, %v394
        %v396 = vsel %vm390, %v395, %v394
        %vm397 = vcmp.lt.s32.totalorder %v251, 0
        %v398 = vsub.s32 0, %v251
        %v399 = vsel %vm397, %v398, %v251
        %v400 = vshrl.u32 %v399, 4
        %v401 = vand.u32 %v399, 15
        %v402 = vsub.s32 0, %v401
        %v403 = vsel %vm397, %v402, %v401
        %vm404 = vcmp.lt.s32.totalorder %v252, 0
        %v405 = vsub.s32 0, %v252
        %v406 = vsel %vm404, %v405, %v252
        %v407 = vshrl.u32 %v406, 4
        %v408 = vand.u32 %v406, 15
        %v409 = vsub.s32 0, %v408
        %v410 = vsel %vm404, %v409, %v408
        %vm411 = vcmp.lt.s32.totalorder %v253, 0
        %v412 = vsub.s32 0, %v253
        %v413 = vsel %vm411, %v412, %v253
        %v414 = vshrl.u32 %v413, 4
        %v415 = vand.u32 %v413, 15
        %v416 = vsub.s32 0, %v415
        %v417 = vsel %vm411, %v416, %v415
        %vm418 = vcmp.lt.s32.totalorder %v254, 0
        %v419 = vsub.s32 0, %v254
        %v420 = vsel %vm418, %v419, %v254
        %v421 = vshrl.u32 %v420, 4
        %v422 = vand.u32 %v420, 15
        %v423 = vsub.s32 0, %v422
        %v424 = vsel %vm418, %v423, %v422
        %vm425 = vcmp.lt.s32.totalorder %v255, 0
        %v426 = vsub.s32 0, %v255
        %v427 = vsel %vm425, %v426, %v255
        %v428 = vshrl.u32 %v427, 4
        %v429 = vand.u32 %v427, 15
        %v430 = vsub.s32 0, %v429
        %v431 = vsel %vm425, %v430, %v429
        %vm432 = vcmp.lt.s32.totalorder %v256, 0
        %v433 = vsub.s32 0, %v256
        %v434 = vsel %vm432, %v433, %v256
        %v435 = vshrl.u32 %v434, 4
        %v436 = vand.u32 %v434, 15
        %v437 = vsub.s32 0, %v436
        %v438 = vsel %vm432, %v437, %v436
        %vm439 = vcmp.lt.s32.totalorder %v257, 0
        %v440 = vsub.s32 0, %v257
        %v441 = vsel %vm439, %v440, %v257
        %v442 = vshrl.u32 %v441, 4
        %v443 = vand.u32 %v441, 15
        %v444 = vsub.s32 0, %v443
        %v445 = vsel %vm439, %v444, %v443
        %vm446 = vcmp.lt.s32.totalorder %v258, 0
        %v447 = vsub.s32 0, %v258
        %v448 = vsel %vm446, %v447, %v258
        %v449 = vshrl.u32 %v448, 4
        %v450 = vand.u32 %v448, 15
        %v451 = vsub.s32 0, %v450
        %v452 = vsel %vm446, %v451, %v450
        %vm453 = vcmp.lt.s32.totalorder %v259, 0
        %v454 = vsub.s32 0, %v259
        %v455 = vsel %vm453, %v454, %v259
        %v456 = vshrl.u32 %v455, 4
        %v457 = vand.u32 %v455, 15
        %v458 = vsub.s32 0, %v457
        %v459 = vsel %vm453, %v458, %v457
        %vm460 = vcmp.lt.s32.totalorder %v260, 0
        %v461 = vsub.s32 0, %v260
        %v462 = vsel %vm460, %v461, %v260
        %v463 = vshrl.u32 %v462, 4
        %v464 = vand.u32 %v462, 15
        %v465 = vsub.s32 0, %v464
        %v466 = vsel %vm460, %v465, %v464
        %vm467 = vcmp.lt.s32.totalorder %v261, 0
        %v468 = vsub.s32 0, %v261
        %v469 = vsel %vm467, %v468, %v261
        %v470 = vshrl.u32 %v469, 4
        %v471 = vand.u32 %v469, 15
        %v472 = vsub.s32 0, %v471
        %v473 = vsel %vm467, %v472, %v471
        %vm474 = vcmp.lt.s32.totalorder %v262, 0
        %v475 = vsub.s32 0, %v262
        %v476 = vsel %vm474, %v475, %v262
        %v477 = vshrl.u32 %v476, 4
        %v478 = vand.u32 %v476, 15
        %v479 = vsub.s32 0, %v478
        %v480 = vsel %vm474, %v479, %v478
        %vm481 = vcmp.lt.s32.totalorder %v263, 0
        %v482 = vsub.s32 0, %v263
        %v483 = vsel %vm481, %v482, %v263
        %v484 = vshrl.u32 %v483, 4
        %v485 = vand.u32 %v483, 15
        %v486 = vsub.s32 0, %v485
        %v487 = vsel %vm481, %v486, %v485
        %vm488 = vcmp.ne.s32.totalorder %v270, 0
        %vm489 = vcmp.ne.s32.totalorder %v277, 0
        %vm490 = vcmp.ne.s32.totalorder %v284, 0
        %vm491 = vcmp.ne.s32.totalorder %v291, 0
        %vm492 = vcmp.ne.s32.totalorder %v298, 0
        %vm493 = vcmp.ne.s32.totalorder %v305, 0
        %vm494 = vcmp.ne.s32.totalorder %v312, 0
        %vm495 = vcmp.ne.s32.totalorder %v319, 0
        %vm496 = vcmp.ne.s32.totalorder %v326, 0
        %vm497 = vcmp.ne.s32.totalorder %v333, 0
        %vm498 = vcmp.ne.s32.totalorder %v340, 0
        %vm499 = vcmp.ne.s32.totalorder %v347, 0
        %vm500 = vcmp.ne.s32.totalorder %v354, 0
        %vm501 = vcmp.ne.s32.totalorder %v361, 0
        %vm502 = vcmp.ne.s32.totalorder %v368, 0
        %vm503 = vcmp.ne.s32.totalorder %v375, 0
        %vm504 = vcmp.ne.s32.totalorder %v382, 0
        %vm505 = vcmp.ne.s32.totalorder %v389, 0
        %vm506 = vcmp.ne.s32.totalorder %v396, 0
        %vm507 = vcmp.ne.s32.totalorder %v403, 0
        %vm508 = vcmp.ne.s32.totalorder %v410, 0
        %vm509 = vcmp.ne.s32.totalorder %v417, 0
        %vm510 = vcmp.ne.s32.totalorder %v424, 0
        %vm511 = vcmp.ne.s32.totalorder %v431, 0
        %vm512 = vcmp.ne.s32.totalorder %v438, 0
        %vm513 = vcmp.ne.s32.totalorder %v445, 0
        %vm514 = vcmp.ne.s32.totalorder %v452, 0
        %vm515 = vcmp.ne.s32.totalorder %v459, 0
        %vm516 = vcmp.ne.s32.totalorder %v466, 0
        %vm517 = vcmp.ne.s32.totalorder %v473, 0
        %vm518 = vcmp.ne.s32.totalorder %v480, 0
        %vm519 = vcmp.ne.s32.totalorder %v487, 0
        %vm520 = vcmp.lt.s32.totalorder %v270, 0
        %vm521 = vcmp.lt.s32.totalorder %v277, 0
        %vm522 = vcmp.lt.s32.totalorder %v284, 0
        %vm523 = vcmp.lt.s32.totalorder %v291, 0
        %vm524 = vcmp.lt.s32.totalorder %v298, 0
        %vm525 = vcmp.lt.s32.totalorder %v305, 0
        %vm526 = vcmp.lt.s32.totalorder %v312, 0
        %vm527 = vcmp.lt.s32.totalorder %v319, 0
        %vm528 = vcmp.lt.s32.totalorder %v326, 0
        %vm529 = vcmp.lt.s32.totalorder %v333, 0
        %vm530 = vcmp.lt.s32.totalorder %v340, 0
        %vm531 = vcmp.lt.s32.totalorder %v347, 0
        %vm532 = vcmp.lt.s32.totalorder %v354, 0
        %vm533 = vcmp.lt.s32.totalorder %v361, 0
        %vm534 = vcmp.lt.s32.totalorder %v368, 0
        %vm535 = vcmp.lt.s32.totalorder %v375, 0
        %vm536 = vcmp.lt.s32.totalorder %v382, 0
        %vm537 = vcmp.lt.s32.totalorder %v389, 0
        %vm538 = vcmp.lt.s32.totalorder %v396, 0
        %vm539 = vcmp.lt.s32.totalorder %v403, 0
        %vm540 = vcmp.lt.s32.totalorder %v410, 0
        %vm541 = vcmp.lt.s32.totalorder %v417, 0
        %vm542 = vcmp.lt.s32.totalorder %v424, 0
        %vm543 = vcmp.lt.s32.totalorder %v431, 0
        %vm544 = vcmp.lt.s32.totalorder %v438, 0
        %vm545 = vcmp.lt.s32.totalorder %v445, 0
        %vm546 = vcmp.lt.s32.totalorder %v452, 0
        %vm547 = vcmp.lt.s32.totalorder %v459, 0
        %vm548 = vcmp.lt.s32.totalorder %v466, 0
        %vm549 = vcmp.lt.s32.totalorder %v473, 0
        %vm550 = vcmp.lt.s32.totalorder %v480, 0
        %vm551 = vcmp.lt.s32.totalorder %v487, 0
        %vm552 = vmand %vm520, %vm488
        %vm553 = vmand %vm521, %vm489
        %vm554 = vmand %vm522, %vm490
        %vm555 = vmand %vm523, %vm491
        %vm556 = vmand %vm524, %vm492
        %vm557 = vmand %vm525, %vm493
        %vm558 = vmand %vm526, %vm494
        %vm559 = vmand %vm527, %vm495
        %vm560 = vmand %vm528, %vm496
        %vm561 = vmand %vm529, %vm497
        %vm562 = vmand %vm530, %vm498
        %vm563 = vmand %vm531, %vm499
        %vm564 = vmand %vm532, %vm500
        %vm565 = vmand %vm533, %vm501
        %vm566 = vmand %vm534, %vm502
        %vm567 = vmand %vm535, %vm503
        %vm568 = vmand %vm536, %vm504
        %vm569 = vmand %vm537, %vm505
        %vm570 = vmand %vm538, %vm506
        %vm571 = vmand %vm539, %vm507
        %vm572 = vmand %vm540, %vm508
        %vm573 = vmand %vm541, %vm509
        %vm574 = vmand %vm542, %vm510
        %vm575 = vmand %vm543, %vm511
        %vm576 = vmand %vm544, %vm512
        %vm577 = vmand %vm545, %vm513
        %vm578 = vmand %vm546, %vm514
        %vm579 = vmand %vm547, %vm515
        %vm580 = vmand %vm548, %vm516
        %vm581 = vmand %vm549, %vm517
        %vm582 = vmand %vm550, %vm518
        %vm583 = vmand %vm551, %vm519
        %v584 = vadd.s32 %v270, 16
        %v585 = vadd.s32 %v277, 16
        %v586 = vadd.s32 %v284, 16
        %v587 = vadd.s32 %v291, 16
        %v588 = vadd.s32 %v298, 16
        %v589 = vadd.s32 %v305, 16
        %v590 = vadd.s32 %v312, 16
        %v591 = vadd.s32 %v319, 16
        %v592 = vadd.s32 %v326, 16
        %v593 = vadd.s32 %v333, 16
        %v594 = vadd.s32 %v340, 16
        %v595 = vadd.s32 %v347, 16
        %v596 = vadd.s32 %v354, 16
        %v597 = vadd.s32 %v361, 16
        %v598 = vadd.s32 %v368, 16
        %v599 = vadd.s32 %v375, 16
        %v600 = vadd.s32 %v382, 16
        %v601 = vadd.s32 %v389, 16
        %v602 = vadd.s32 %v396, 16
        %v603 = vadd.s32 %v403, 16
        %v604 = vadd.s32 %v410, 16
        %v605 = vadd.s32 %v417, 16
        %v606 = vadd.s32 %v424, 16
        %v607 = vadd.s32 %v431, 16
        %v608 = vadd.s32 %v438, 16
        %v609 = vadd.s32 %v445, 16
        %v610 = vadd.s32 %v452, 16
        %v611 = vadd.s32 %v459, 16
        %v612 = vadd.s32 %v466, 16
        %v613 = vadd.s32 %v473, 16
        %v614 = vadd.s32 %v480, 16
        %v615 = vadd.s32 %v487, 16
        %v616 = vsel %vm552, %v584, %v270
        %v617 = vsel %vm553, %v585, %v277
        %v618 = vsel %vm554, %v586, %v284
        %v619 = vsel %vm555, %v587, %v291
        %v620 = vsel %vm556, %v588, %v298
        %v621 = vsel %vm557, %v589, %v305
        %v622 = vsel %vm558, %v590, %v312
        %v623 = vsel %vm559, %v591, %v319
        %v624 = vsel %vm560, %v592, %v326
        %v625 = vsel %vm561, %v593, %v333
        %v626 = vsel %vm562, %v594, %v340
        %v627 = vsel %vm563, %v595, %v347
        %v628 = vsel %vm564, %v596, %v354
        %v629 = vsel %vm565, %v597, %v361
        %v630 = vsel %vm566, %v598, %v368
        %v631 = vsel %vm567, %v599, %v375
        %v632 = vsel %vm568, %v600, %v382
        %v633 = vsel %vm569, %v601, %v389
        %v634 = vsel %vm570, %v602, %v396
        %v635 = vsel %vm571, %v603, %v403
        %v636 = vsel %vm572, %v604, %v410
        %v637 = vsel %vm573, %v605, %v417
        %v638 = vsel %vm574, %v606, %v424
        %v639 = vsel %vm575, %v607, %v431
        %v640 = vsel %vm576, %v608, %v438
        %v641 = vsel %vm577, %v609, %v445
        %v642 = vsel %vm578, %v610, %v452
        %v643 = vsel %vm579, %v611, %v459
        %v644 = vsel %vm580, %v612, %v466
        %v645 = vsel %vm581, %v613, %v473
        %v646 = vsel %vm582, %v614, %v480
        %v647 = vsel %vm583, %v615, %v487
        %vm648 = vcmp.gt.s32.totalorder %v616, 0
        %vm649 = vcmp.gt.s32.totalorder %v617, 0
        %vm650 = vcmp.gt.s32.totalorder %v618, 0
        %vm651 = vcmp.gt.s32.totalorder %v619, 0
        %vm652 = vcmp.gt.s32.totalorder %v620, 0
        %vm653 = vcmp.gt.s32.totalorder %v621, 0
        %vm654 = vcmp.gt.s32.totalorder %v622, 0
        %vm655 = vcmp.gt.s32.totalorder %v623, 0
        %vm656 = vcmp.gt.s32.totalorder %v624, 0
        %vm657 = vcmp.gt.s32.totalorder %v625, 0
        %vm658 = vcmp.gt.s32.totalorder %v626, 0
        %vm659 = vcmp.gt.s32.totalorder %v627, 0
        %vm660 = vcmp.gt.s32.totalorder %v628, 0
        %vm661 = vcmp.gt.s32.totalorder %v629, 0
        %vm662 = vcmp.gt.s32.totalorder %v630, 0
        %vm663 = vcmp.gt.s32.totalorder %v631, 0
        %vm664 = vcmp.gt.s32.totalorder %v632, 0
        %vm665 = vcmp.gt.s32.totalorder %v633, 0
        %vm666 = vcmp.gt.s32.totalorder %v634, 0
        %vm667 = vcmp.gt.s32.totalorder %v635, 0
        %vm668 = vcmp.gt.s32.totalorder %v636, 0
        %vm669 = vcmp.gt.s32.totalorder %v637, 0
        %vm670 = vcmp.gt.s32.totalorder %v638, 0
        %vm671 = vcmp.gt.s32.totalorder %v639, 0
        %vm672 = vcmp.gt.s32.totalorder %v640, 0
        %vm673 = vcmp.gt.s32.totalorder %v641, 0
        %vm674 = vcmp.gt.s32.totalorder %v642, 0
        %vm675 = vcmp.gt.s32.totalorder %v643, 0
        %vm676 = vcmp.gt.s32.totalorder %v644, 0
        %vm677 = vcmp.gt.s32.totalorder %v645, 0
        %vm678 = vcmp.gt.s32.totalorder %v646, 0
        %vm679 = vcmp.gt.s32.totalorder %v647, 0
        %v680 = vsel %vm648, 1, 0
        %v681 = vsel %vm649, 1, 0
        %v682 = vsel %vm650, 1, 0
        %v683 = vsel %vm651, 1, 0
        %v684 = vsel %vm652, 1, 0
        %v685 = vsel %vm653, 1, 0
        %v686 = vsel %vm654, 1, 0
        %v687 = vsel %vm655, 1, 0
        %v688 = vsel %vm656, 1, 0
        %v689 = vsel %vm657, 1, 0
        %v690 = vsel %vm658, 1, 0
        %v691 = vsel %vm659, 1, 0
        %v692 = vsel %vm660, 1, 0
        %v693 = vsel %vm661, 1, 0
        %v694 = vsel %vm662, 1, 0
        %v695 = vsel %vm663, 1, 0
        %v696 = vsel %vm664, 1, 0
        %v697 = vsel %vm665, 1, 0
        %v698 = vsel %vm666, 1, 0
        %v699 = vsel %vm667, 1, 0
        %v700 = vsel %vm668, 1, 0
        %v701 = vsel %vm669, 1, 0
        %v702 = vsel %vm670, 1, 0
        %v703 = vsel %vm671, 1, 0
        %v704 = vsel %vm672, 1, 0
        %v705 = vsel %vm673, 1, 0
        %v706 = vsel %vm674, 1, 0
        %v707 = vsel %vm675, 1, 0
        %v708 = vsel %vm676, 1, 0
        %v709 = vsel %vm677, 1, 0
        %v710 = vsel %vm678, 1, 0
        %v711 = vsel %vm679, 1, 0
        %v712 = vcvt.s32.f32 %v680
        %v713 = vcvt.s32.f32 %v681
        %v714 = vcvt.s32.f32 %v682
        %v715 = vcvt.s32.f32 %v683
        %v716 = vcvt.s32.f32 %v684
        %v717 = vcvt.s32.f32 %v685
        %v718 = vcvt.s32.f32 %v686
        %v719 = vcvt.s32.f32 %v687
        %v720 = vcvt.s32.f32 %v688
        %v721 = vcvt.s32.f32 %v689
        %v722 = vcvt.s32.f32 %v690
        %v723 = vcvt.s32.f32 %v691
        %v724 = vcvt.s32.f32 %v692
        %v725 = vcvt.s32.f32 %v693
        %v726 = vcvt.s32.f32 %v694
        %v727 = vcvt.s32.f32 %v695
        %v728 = vcvt.s32.f32 %v696
        %v729 = vcvt.s32.f32 %v697
        %v730 = vcvt.s32.f32 %v698
        %v731 = vcvt.s32.f32 %v699
        %v732 = vcvt.s32.f32 %v700
        %v733 = vcvt.s32.f32 %v701
        %v734 = vcvt.s32.f32 %v702
        %v735 = vcvt.s32.f32 %v703
        %v736 = vcvt.s32.f32 %v704
        %v737 = vcvt.s32.f32 %v705
        %v738 = vcvt.s32.f32 %v706
        %v739 = vcvt.s32.f32 %v707
        %v740 = vcvt.s32.f32 %v708
        %v741 = vcvt.s32.f32 %v709
        %v742 = vcvt.s32.f32 %v710
        %v743 = vcvt.s32.f32 %v711
        %vm744 = vcmp.lt.s32.totalorder %v616, 15
        %vm745 = vcmp.lt.s32.totalorder %v617, 15
        %vm746 = vcmp.lt.s32.totalorder %v618, 15
        %vm747 = vcmp.lt.s32.totalorder %v619, 15
        %vm748 = vcmp.lt.s32.totalorder %v620, 15
        %vm749 = vcmp.lt.s32.totalorder %v621, 15
        %vm750 = vcmp.lt.s32.totalorder %v622, 15
        %vm751 = vcmp.lt.s32.totalorder %v623, 15
        %vm752 = vcmp.lt.s32.totalorder %v624, 15
        %vm753 = vcmp.lt.s32.totalorder %v625, 15
        %vm754 = vcmp.lt.s32.totalorder %v626, 15
        %vm755 = vcmp.lt.s32.totalorder %v627, 15
        %vm756 = vcmp.lt.s32.totalorder %v628, 15
        %vm757 = vcmp.lt.s32.totalorder %v629, 15
        %vm758 = vcmp.lt.s32.totalorder %v630, 15
        %vm759 = vcmp.lt.s32.totalorder %v631, 15
        %vm760 = vcmp.lt.s32.totalorder %v632, 15
        %vm761 = vcmp.lt.s32.totalorder %v633, 15
        %vm762 = vcmp.lt.s32.totalorder %v634, 15
        %vm763 = vcmp.lt.s32.totalorder %v635, 15
        %vm764 = vcmp.lt.s32.totalorder %v636, 15
        %vm765 = vcmp.lt.s32.totalorder %v637, 15
        %vm766 = vcmp.lt.s32.totalorder %v638, 15
        %vm767 = vcmp.lt.s32.totalorder %v639, 15
        %vm768 = vcmp.lt.s32.totalorder %v640, 15
        %vm769 = vcmp.lt.s32.totalorder %v641, 15
        %vm770 = vcmp.lt.s32.totalorder %v642, 15
        %vm771 = vcmp.lt.s32.totalorder %v643, 15
        %vm772 = vcmp.lt.s32.totalorder %v644, 15
        %vm773 = vcmp.lt.s32.totalorder %v645, 15
        %vm774 = vcmp.lt.s32.totalorder %v646, 15
        %vm775 = vcmp.lt.s32.totalorder %v647, 15
        %v776 = vsel %vm744, 1, 0
        %v777 = vsel %vm745, 1, 0
        %v778 = vsel %vm746, 1, 0
        %v779 = vsel %vm747, 1, 0
        %v780 = vsel %vm748, 1, 0
        %v781 = vsel %vm749, 1, 0
        %v782 = vsel %vm750, 1, 0
        %v783 = vsel %vm751, 1, 0
        %v784 = vsel %vm752, 1, 0
        %v785 = vsel %vm753, 1, 0
        %v786 = vsel %vm754, 1, 0
        %v787 = vsel %vm755, 1, 0
        %v788 = vsel %vm756, 1, 0
        %v789 = vsel %vm757, 1, 0
        %v790 = vsel %vm758, 1, 0
        %v791 = vsel %vm759, 1, 0
        %v792 = vsel %vm760, 1, 0
        %v793 = vsel %vm761, 1, 0
        %v794 = vsel %vm762, 1, 0
        %v795 = vsel %vm763, 1, 0
        %v796 = vsel %vm764, 1, 0
        %v797 = vsel %vm765, 1, 0
        %v798 = vsel %vm766, 1, 0
        %v799 = vsel %vm767, 1, 0
        %v800 = vsel %vm768, 1, 0
        %v801 = vsel %vm769, 1, 0
        %v802 = vsel %vm770, 1, 0
        %v803 = vsel %vm771, 1, 0
        %v804 = vsel %vm772, 1, 0
        %v805 = vsel %vm773, 1, 0
        %v806 = vsel %vm774, 1, 0
        %v807 = vsel %vm775, 1, 0
        %v808 = vcvt.s32.f32 %v776
        %v809 = vcvt.s32.f32 %v777
        %v810 = vcvt.s32.f32 %v778
        %v811 = vcvt.s32.f32 %v779
        %v812 = vcvt.s32.f32 %v780
        %v813 = vcvt.s32.f32 %v781
        %v814 = vcvt.s32.f32 %v782
        %v815 = vcvt.s32.f32 %v783
        %v816 = vcvt.s32.f32 %v784
        %v817 = vcvt.s32.f32 %v785
        %v818 = vcvt.s32.f32 %v786
        %v819 = vcvt.s32.f32 %v787
        %v820 = vcvt.s32.f32 %v788
        %v821 = vcvt.s32.f32 %v789
        %v822 = vcvt.s32.f32 %v790
        %v823 = vcvt.s32.f32 %v791
        %v824 = vcvt.s32.f32 %v792
        %v825 = vcvt.s32.f32 %v793
        %v826 = vcvt.s32.f32 %v794
        %v827 = vcvt.s32.f32 %v795
        %v828 = vcvt.s32.f32 %v796
        %v829 = vcvt.s32.f32 %v797
        %v830 = vcvt.s32.f32 %v798
        %v831 = vcvt.s32.f32 %v799
        %v832 = vcvt.s32.f32 %v800
        %v833 = vcvt.s32.f32 %v801
        %v834 = vcvt.s32.f32 %v802
        %v835 = vcvt.s32.f32 %v803
        %v836 = vcvt.s32.f32 %v804
        %v837 = vcvt.s32.f32 %v805
        %v838 = vcvt.s32.f32 %v806
        %v839 = vcvt.s32.f32 %v807
        %v840 = vld [vmem:[%s222] sm:$0xff]
        %v841 = vld [vmem:[%s222 + $0x8] sm:$0xff]
        %v842 = vld [vmem:[%s222 + $0x10] sm:$0xff]
        %v843 = vld [vmem:[%s222 + $0x18] sm:$0xff]
        %v844 = vld [vmem:[%s222 + $0x20] sm:$0xff]
        %v845 = vld [vmem:[%s222 + $0x28] sm:$0xff]
        %v846 = vld [vmem:[%s222 + $0x30] sm:$0xff]
        %v847 = vld [vmem:[%s222 + $0x38] sm:$0xff]
        %v848 = vld [vmem:[%s222 + $0x40] sm:$0xff]
        %v849 = vld [vmem:[%s222 + $0x48] sm:$0xff]
        %v850 = vld [vmem:[%s222 + $0x50] sm:$0xff]
        %v851 = vld [vmem:[%s222 + $0x58] sm:$0xff]
        %v852 = vld [vmem:[%s222 + $0x60] sm:$0xff]
        %v853 = vld [vmem:[%s222 + $0x68] sm:$0xff]
        %v854 = vld [vmem:[%s222 + $0x70] sm:$0xff]
        %v855 = vld [vmem:[%s222 + $0x78] sm:$0xff]
        %v856 = vld [vmem:[%s222 + $0x80] sm:$0xff]
        %v857 = vld [vmem:[%s222 + $0x88] sm:$0xff]
        %v858 = vld [vmem:[%s222 + $0x90] sm:$0xff]
        %v859 = vld [vmem:[%s222 + $0x98] sm:$0xff]
        %v860 = vld [vmem:[%s222 + $0xa0] sm:$0xff]
        %v861 = vld [vmem:[%s222 + $0xa8] sm:$0xff]
        %v862 = vld [vmem:[%s222 + $0xb0] sm:$0xff]
        %v863 = vld [vmem:[%s222 + $0xb8] sm:$0xff]
        %v864 = vld [vmem:[%s222 + $0xc0] sm:$0xff]
        %v865 = vld [vmem:[%s222 + $0xc8] sm:$0xff]
        %v866 = vld [vmem:[%s222 + $0xd0] sm:$0xff]
        %v867 = vld [vmem:[%s222 + $0xd8] sm:$0xff]
        %v868 = vld [vmem:[%s222 + $0xe0] sm:$0xff]
        %v869 = vld [vmem:[%s222 + $0xe8] sm:$0xff]
        %v870 = vld [vmem:[%s222 + $0xf0] sm:$0xff]
        %v871 = vld [vmem:[%s222 + $0xf8] sm:$0xff]
        %872 = vst.msk [vmem:[#allocation2 + $0x11] sm:$0xff] %vm223, %v840
        %873 = vst.msk [vmem:[#allocation2 + $0x19] sm:$0xff] %vm223, %v841
        %874 = vst.msk [vmem:[#allocation2 + $0x21] sm:$0xff] %vm223, %v842
        %875 = vst.msk [vmem:[#allocation2 + $0x29] sm:$0xff] %vm223, %v843
        %876 = vst.msk [vmem:[#allocation2 + $0x31] sm:$0xff] %vm223, %v844
        %877 = vst.msk [vmem:[#allocation2 + $0x39] sm:$0xff] %vm223, %v845
        %878 = vst.msk [vmem:[#allocation2 + $0x41] sm:$0xff] %vm223, %v846
        %879 = vst.msk [vmem:[#allocation2 + $0x49] sm:$0xff] %vm223, %v847
        %880 = vst.msk [vmem:[#allocation2 + $0x51] sm:$0xff] %vm223, %v848
        %881 = vst.msk [vmem:[#allocation2 + $0x59] sm:$0xff] %vm223, %v849
        %882 = vst.msk [vmem:[#allocation2 + $0x61] sm:$0xff] %vm223, %v850
        %883 = vst.msk [vmem:[#allocation2 + $0x69] sm:$0xff] %vm223, %v851
        %884 = vst.msk [vmem:[#allocation2 + $0x71] sm:$0xff] %vm223, %v852
        %885 = vst.msk [vmem:[#allocation2 + $0x79] sm:$0xff] %vm223, %v853
        %886 = vst.msk [vmem:[#allocation2 + $0x81] sm:$0xff] %vm223, %v854
        %887 = vst.msk [vmem:[#allocation2 + $0x89] sm:$0xff] %vm223, %v855
        %888 = vst.msk [vmem:[#allocation2 + $0x91] sm:$0xff] %vm223, %v856
        %889 = vst.msk [vmem:[#allocation2 + $0x99] sm:$0xff] %vm223, %v857
        %890 = vst.msk [vmem:[#allocation2 + $0xa1] sm:$0xff] %vm223, %v858
        %891 = vst.msk [vmem:[#allocation2 + $0xa9] sm:$0xff] %vm223, %v859
        %892 = vst.msk [vmem:[#allocation2 + $0xb1] sm:$0xff] %vm223, %v860
        %893 = vst.msk [vmem:[#allocation2 + $0xb9] sm:$0xff] %vm223, %v861
        %894 = vst.msk [vmem:[#allocation2 + $0xc1] sm:$0xff] %vm223, %v862
        %895 = vst.msk [vmem:[#allocation2 + $0xc9] sm:$0xff] %vm223, %v863
        %896 = vst.msk [vmem:[#allocation2 + $0xd1] sm:$0xff] %vm223, %v864
        %897 = vst.msk [vmem:[#allocation2 + $0xd9] sm:$0xff] %vm223, %v865
        %898 = vst.msk [vmem:[#allocation2 + $0xe1] sm:$0xff] %vm223, %v866
        %899 = vst.msk [vmem:[#allocation2 + $0xe9] sm:$0xff] %vm223, %v867
        %900 = vst.msk [vmem:[#allocation2 + $0xf1] sm:$0xff] %vm223, %v868
        %901 = vst.msk [vmem:[#allocation2 + $0xf9] sm:$0xff] %vm223, %v869
        %902 = vst.msk [vmem:[#allocation2 + $0x101] sm:$0xff] %vm223, %v870
        %903 = vst.msk [vmem:[#allocation2 + $0x109] sm:$0xff] %vm223, %v871
        %v904 = vld [vmem:[#allocation2] sm:$0xff]
        %v905 = vld [vmem:[#allocation2 + $0x8] sm:$0xff]
        %v906 = vld [vmem:[#allocation2 + $0x10] sm:$0xff]
        %v907 = vld [vmem:[#allocation2 + $0x18] sm:$0xff]
        %v908 = vld [vmem:[#allocation2 + $0x20] sm:$0xff]
        %v909 = vld [vmem:[#allocation2 + $0x28] sm:$0xff]
        %v910 = vld [vmem:[#allocation2 + $0x30] sm:$0xff]
        %v911 = vld [vmem:[#allocation2 + $0x38] sm:$0xff]
        %v912 = vld [vmem:[#allocation2 + $0x40] sm:$0xff]
        %v913 = vld [vmem:[#allocation2 + $0x48] sm:$0xff]
        %v914 = vld [vmem:[#allocation2 + $0x50] sm:$0xff]
        %v915 = vld [vmem:[#allocation2 + $0x58] sm:$0xff]
        %v916 = vld [vmem:[#allocation2 + $0x60] sm:$0xff]
        %v917 = vld [vmem:[#allocation2 + $0x68] sm:$0xff]
        %v918 = vld [vmem:[#allocation2 + $0x70] sm:$0xff]
        %v919 = vld [vmem:[#allocation2 + $0x78] sm:$0xff]
        %v920 = vld [vmem:[#allocation2 + $0x80] sm:$0xff]
        %v921 = vld [vmem:[#allocation2 + $0x88] sm:$0xff]
        %v922 = vld [vmem:[#allocation2 + $0x90] sm:$0xff]
        %v923 = vld [vmem:[#allocation2 + $0x98] sm:$0xff]
        %v924 = vld [vmem:[#allocation2 + $0xa0] sm:$0xff]
        %v925 = vld [vmem:[#allocation2 + $0xa8] sm:$0xff]
        %v926 = vld [vmem:[#allocation2 + $0xb0] sm:$0xff]
        %v927 = vld [vmem:[#allocation2 + $0xb8] sm:$0xff]
        %v928 = vld [vmem:[#allocation2 + $0xc0] sm:$0xff]
        %v929 = vld [vmem:[#allocation2 + $0xc8] sm:$0xff]
        %v930 = vld [vmem:[#allocation2 + $0xd0] sm:$0xff]
        %v931 = vld [vmem:[#allocation2 + $0xd8] sm:$0xff]
        %v932 = vld [vmem:[#allocation2 + $0xe0] sm:$0xff]
        %v933 = vld [vmem:[#allocation2 + $0xe8] sm:$0xff]
        %v934 = vld [vmem:[#allocation2 + $0xf0] sm:$0xff]
        %v935 = vld [vmem:[#allocation2 + $0xf8] sm:$0xff]
        %v936 = vmul.f32 %v904, %v712
        %v937 = vmul.f32 %v905, %v713
        %v938 = vmul.f32 %v906, %v714
        %v939 = vmul.f32 %v907, %v715
        %v940 = vmul.f32 %v908, %v716
        %v941 = vmul.f32 %v909, %v717
        %v942 = vmul.f32 %v910, %v718
        %v943 = vmul.f32 %v911, %v719
        %v944 = vmul.f32 %v912, %v720
        %v945 = vmul.f32 %v913, %v721
        %v946 = vmul.f32 %v914, %v722
        %v947 = vmul.f32 %v915, %v723
        %v948 = vmul.f32 %v916, %v724
        %v949 = vmul.f32 %v917, %v725
        %v950 = vmul.f32 %v918, %v726
        %v951 = vmul.f32 %v919, %v727
        %v952 = vmul.f32 %v920, %v728
        %v953 = vmul.f32 %v921, %v729
        %v954 = vmul.f32 %v922, %v730
        %v955 = vmul.f32 %v923, %v731
        %v956 = vmul.f32 %v924, %v732
        %v957 = vmul.f32 %v925, %v733
        %v958 = vmul.f32 %v926, %v734
        %v959 = vmul.f32 %v927, %v735
        %v960 = vmul.f32 %v928, %v736
        %v961 = vmul.f32 %v929, %v737
        %v962 = vmul.f32 %v930, %v738
        %v963 = vmul.f32 %v931, %v739
        %v964 = vmul.f32 %v932, %v740
        %v965 = vmul.f32 %v933, %v741
        %v966 = vmul.f32 %v934, %v742
        %v967 = vmul.f32 %v935, %v743
        %v968 = vld [vmem:[#allocation2 + $0x1] sm:$0xff]
        %v969 = vld [vmem:[#allocation2 + $0x9] sm:$0xff]
        %v970 = vld [vmem:[#allocation2 + $0x11] sm:$0xff]
        %v971 = vld [vmem:[#allocation2 + $0x19] sm:$0xff]
        %v972 = vld [vmem:[#allocation2 + $0x21] sm:$0xff]
        %v973 = vld [vmem:[#allocation2 + $0x29] sm:$0xff]
        %v974 = vld [vmem:[#allocation2 + $0x31] sm:$0xff]
        %v975 = vld [vmem:[#allocation2 + $0x39] sm:$0xff]
        %v976 = vld [vmem:[#allocation2 + $0x41] sm:$0xff]
        %v977 = vld [vmem:[#allocation2 + $0x49] sm:$0xff]
        %v978 = vld [vmem:[#allocation2 + $0x51] sm:$0xff]
        %v979 = vld [vmem:[#allocation2 + $0x59] sm:$0xff]
        %v980 = vld [vmem:[#allocation2 + $0x61] sm:$0xff]
        %v981 = vld [vmem:[#allocation2 + $0x69] sm:$0xff]
        %v982 = vld [vmem:[#allocation2 + $0x71] sm:$0xff]
        %v983 = vld [vmem:[#allocation2 + $0x79] sm:$0xff]
        %v984 = vld [vmem:[#allocation2 + $0x81] sm:$0xff]
        %v985 = vld [vmem:[#allocation2 + $0x89] sm:$0xff]
        %v986 = vld [vmem:[#allocation2 + $0x91] sm:$0xff]
        %v987 = vld [vmem:[#allocation2 + $0x99] sm:$0xff]
        %v988 = vld [vmem:[#allocation2 + $0xa1] sm:$0xff]
        %v989 = vld [vmem:[#allocation2 + $0xa9] sm:$0xff]
        %v990 = vld [vmem:[#allocation2 + $0xb1] sm:$0xff]
        %v991 = vld [vmem:[#allocation2 + $0xb9] sm:$0xff]
        %v992 = vld [vmem:[#allocation2 + $0xc1] sm:$0xff]
        %v993 = vld [vmem:[#allocation2 + $0xc9] sm:$0xff]
        %v994 = vld [vmem:[#allocation2 + $0xd1] sm:$0xff]
        %v995 = vld [vmem:[#allocation2 + $0xd9] sm:$0xff]
        %v996 = vld [vmem:[#allocation2 + $0xe1] sm:$0xff]
        %v997 = vld [vmem:[#allocation2 + $0xe9] sm:$0xff]
        %v998 = vld [vmem:[#allocation2 + $0xf1] sm:$0xff]
        %v999 = vld [vmem:[#allocation2 + $0xf9] sm:$0xff]
        %v1000 = vld [vmem:[#allocation2 + $0x2] sm:$0xff]
        %v1001 = vld [vmem:[#allocation2 + $0xa] sm:$0xff]
        %v1002 = vld [vmem:[#allocation2 + $0x12] sm:$0xff]
        %v1003 = vld [vmem:[#allocation2 + $0x1a] sm:$0xff]
        %v1004 = vld [vmem:[#allocation2 + $0x22] sm:$0xff]
        %v1005 = vld [vmem:[#allocation2 + $0x2a] sm:$0xff]
        %v1006 = vld [vmem:[#allocation2 + $0x32] sm:$0xff]
        %v1007 = vld [vmem:[#allocation2 + $0x3a] sm:$0xff]
        %v1008 = vld [vmem:[#allocation2 + $0x42] sm:$0xff]
        %v1009 = vld [vmem:[#allocation2 + $0x4a] sm:$0xff]
        %v1010 = vld [vmem:[#allocation2 + $0x52] sm:$0xff]
        %v1011 = vld [vmem:[#allocation2 + $0x5a] sm:$0xff]
        %v1012 = vld [vmem:[#allocation2 + $0x62] sm:$0xff]
        %v1013 = vld [vmem:[#allocation2 + $0x6a] sm:$0xff]
        %v1014 = vld [vmem:[#allocation2 + $0x72] sm:$0xff]
        %v1015 = vld [vmem:[#allocation2 + $0x7a] sm:$0xff]
        %v1016 = vld [vmem:[#allocation2 + $0x82] sm:$0xff]
        %v1017 = vld [vmem:[#allocation2 + $0x8a] sm:$0xff]
        %v1018 = vld [vmem:[#allocation2 + $0x92] sm:$0xff]
        %v1019 = vld [vmem:[#allocation2 + $0x9a] sm:$0xff]
        %v1020 = vld [vmem:[#allocation2 + $0xa2] sm:$0xff]
        %v1021 = vld [vmem:[#allocation2 + $0xaa] sm:$0xff]
        %v1022 = vld [vmem:[#allocation2 + $0xb2] sm:$0xff]
        %v1023 = vld [vmem:[#allocation2 + $0xba] sm:$0xff]
        %v1024 = vld [vmem:[#allocation2 + $0xc2] sm:$0xff]
        %v1025 = vld [vmem:[#allocation2 + $0xca] sm:$0xff]
        %v1026 = vld [vmem:[#allocation2 + $0xd2] sm:$0xff]
        %v1027 = vld [vmem:[#allocation2 + $0xda] sm:$0xff]
        %v1028 = vld [vmem:[#allocation2 + $0xe2] sm:$0xff]
        %v1029 = vld [vmem:[#allocation2 + $0xea] sm:$0xff]
        %v1030 = vld [vmem:[#allocation2 + $0xf2] sm:$0xff]
        %v1031 = vld [vmem:[#allocation2 + $0xfa] sm:$0xff]
        %v1032 = vmul.f32 %v1000, %v808
        %v1033 = vmul.f32 %v1001, %v809
        %v1034 = vmul.f32 %v1002, %v810
        %v1035 = vmul.f32 %v1003, %v811
        %v1036 = vmul.f32 %v1004, %v812
        %v1037 = vmul.f32 %v1005, %v813
        %v1038 = vmul.f32 %v1006, %v814
        %v1039 = vmul.f32 %v1007, %v815
        %v1040 = vmul.f32 %v1008, %v816
        %v1041 = vmul.f32 %v1009, %v817
        %v1042 = vmul.f32 %v1010, %v818
        %v1043 = vmul.f32 %v1011, %v819
        %v1044 = vmul.f32 %v1012, %v820
        %v1045 = vmul.f32 %v1013, %v821
        %v1046 = vmul.f32 %v1014, %v822
        %v1047 = vmul.f32 %v1015, %v823
        %v1048 = vmul.f32 %v1016, %v824
        %v1049 = vmul.f32 %v1017, %v825
        %v1050 = vmul.f32 %v1018, %v826
        %v1051 = vmul.f32 %v1019, %v827
        %v1052 = vmul.f32 %v1020, %v828
        %v1053 = vmul.f32 %v1021, %v829
        %v1054 = vmul.f32 %v1022, %v830
        %v1055 = vmul.f32 %v1023, %v831
        %v1056 = vmul.f32 %v1024, %v832
        %v1057 = vmul.f32 %v1025, %v833
        %v1058 = vmul.f32 %v1026, %v834
        %v1059 = vmul.f32 %v1027, %v835
        %v1060 = vmul.f32 %v1028, %v836
        %v1061 = vmul.f32 %v1029, %v837
        %v1062 = vmul.f32 %v1030, %v838
        %v1063 = vmul.f32 %v1031, %v839
        %v1064 = vld [vmem:[#allocation2 + $0x100] sm:$0xff]
        %v1065 = vld [vmem:[#allocation2 + $0x108] sm:$0xff]
        %v1066 = vmul.f32 %v906, %v712
        %v1067 = vmul.f32 %v907, %v713
        %v1068 = vmul.f32 %v908, %v714
        %v1069 = vmul.f32 %v909, %v715
        %v1070 = vmul.f32 %v910, %v716
        %v1071 = vmul.f32 %v911, %v717
        %v1072 = vmul.f32 %v912, %v718
        %v1073 = vmul.f32 %v913, %v719
        %v1074 = vmul.f32 %v914, %v720
        %v1075 = vmul.f32 %v915, %v721
        %v1076 = vmul.f32 %v916, %v722
        %v1077 = vmul.f32 %v917, %v723
        %v1078 = vmul.f32 %v918, %v724
        %v1079 = vmul.f32 %v919, %v725
        %v1080 = vmul.f32 %v920, %v726
        %v1081 = vmul.f32 %v921, %v727
        %v1082 = vmul.f32 %v922, %v728
        %v1083 = vmul.f32 %v923, %v729
        %v1084 = vmul.f32 %v924, %v730
        %v1085 = vmul.f32 %v925, %v731
        %v1086 = vmul.f32 %v926, %v732
        %v1087 = vmul.f32 %v927, %v733
        %v1088 = vmul.f32 %v928, %v734
        %v1089 = vmul.f32 %v929, %v735
        %v1090 = vmul.f32 %v930, %v736
        %v1091 = vmul.f32 %v931, %v737
        %v1092 = vmul.f32 %v932, %v738
        %v1093 = vmul.f32 %v933, %v739
        %v1094 = vmul.f32 %v934, %v740
        %v1095 = vmul.f32 %v935, %v741
        %v1096 = vmul.f32 %v1064, %v742
        %v1097 = vmul.f32 %v1065, %v743
        %v1098 = vld [vmem:[#allocation2 + $0x101] sm:$0xff]
        %v1099 = vld [vmem:[#allocation2 + $0x109] sm:$0xff]
        %v1100 = vld [vmem:[#allocation2 + $0x102] sm:$0xff]
        %v1101 = vld [vmem:[#allocation2 + $0x10a] sm:$0xff]
        %v1102 = vmul.f32 %v1002, %v808
        %v1103 = vmul.f32 %v1003, %v809
        %v1104 = vmul.f32 %v1004, %v810
        %v1105 = vmul.f32 %v1005, %v811
        %v1106 = vmul.f32 %v1006, %v812
        %v1107 = vmul.f32 %v1007, %v813
        %v1108 = vmul.f32 %v1008, %v814
        %v1109 = vmul.f32 %v1009, %v815
        %v1110 = vmul.f32 %v1010, %v816
        %v1111 = vmul.f32 %v1011, %v817
        %v1112 = vmul.f32 %v1012, %v818
        %v1113 = vmul.f32 %v1013, %v819
        %v1114 = vmul.f32 %v1014, %v820
        %v1115 = vmul.f32 %v1015, %v821
        %v1116 = vmul.f32 %v1016, %v822
        %v1117 = vmul.f32 %v1017, %v823
        %v1118 = vmul.f32 %v1018, %v824
        %v1119 = vmul.f32 %v1019, %v825
        %v1120 = vmul.f32 %v1020, %v826
        %v1121 = vmul.f32 %v1021, %v827
        %v1122 = vmul.f32 %v1022, %v828
        %v1123 = vmul.f32 %v1023, %v829
        %v1124 = vmul.f32 %v1024, %v830
        %v1125 = vmul.f32 %v1025, %v831
        %v1126 = vmul.f32 %v1026, %v832
        %v1127 = vmul.f32 %v1027, %v833
        %v1128 = vmul.f32 %v1028, %v834
        %v1129 = vmul.f32 %v1029, %v835
        %v1130 = vmul.f32 %v1030, %v836
        %v1131 = vmul.f32 %v1031, %v837
        %v1132 = vmul.f32 %v1100, %v838
        %v1133 = vmul.f32 %v1101, %v839
        %v1134 = vld [vmem:[#allocation2 + $0x110] sm:$0xff]
        %v1135 = vld [vmem:[#allocation2 + $0x118] sm:$0xff]
        %v1136 = vmul.f32 %v908, %v712
        %v1137 = vmul.f32 %v909, %v713
        %v1138 = vmul.f32 %v910, %v714
        %v1139 = vmul.f32 %v911, %v715
        %v1140 = vmul.f32 %v912, %v716
        %v1141 = vmul.f32 %v913, %v717
        %v1142 = vmul.f32 %v914, %v718
        %v1143 = vmul.f32 %v915, %v719
        %v1144 = vmul.f32 %v916, %v720
        %v1145 = vmul.f32 %v917, %v721
        %v1146 = vmul.f32 %v918, %v722
        %v1147 = vmul.f32 %v919, %v723
        %v1148 = vmul.f32 %v920, %v724
        %v1149 = vmul.f32 %v921, %v725
        %v1150 = vmul.f32 %v922, %v726
        %v1151 = vmul.f32 %v923, %v727
        %v1152 = vmul.f32 %v924, %v728
        %v1153 = vmul.f32 %v925, %v729
        %v1154 = vmul.f32 %v926, %v730
        %v1155 = vmul.f32 %v927, %v731
        %v1156 = vmul.f32 %v928, %v732
        %v1157 = vmul.f32 %v929, %v733
        %v1158 = vmul.f32 %v930, %v734
        %v1159 = vmul.f32 %v931, %v735
        %v1160 = vmul.f32 %v932, %v736
        %v1161 = vmul.f32 %v933, %v737
        %v1162 = vmul.f32 %v934, %v738
        %v1163 = vmul.f32 %v935, %v739
        %v1164 = vmul.f32 %v1064, %v740
        %v1165 = vmul.f32 %v1065, %v741
        %v1166 = vmul.f32 %v1134, %v742
        %v1167 = vmul.f32 %v1135, %v743
        %v1168 = vld [vmem:[#allocation2 + $0x111] sm:$0xff]
        %v1169 = vld [vmem:[#allocation2 + $0x119] sm:$0xff]
        %v1170 = vld [vmem:[#allocation2 + $0x112] sm:$0xff]
        %v1171 = vld [vmem:[#allocation2 + $0x11a] sm:$0xff]
        %v1172 = vmul.f32 %v1004, %v808
        %v1173 = vmul.f32 %v1005, %v809
        %v1174 = vmul.f32 %v1006, %v810
        %v1175 = vmul.f32 %v1007, %v811
        %v1176 = vmul.f32 %v1008, %v812
        %v1177 = vmul.f32 %v1009, %v813
        %v1178 = vmul.f32 %v1010, %v814
        %v1179 = vmul.f32 %v1011, %v815
        %v1180 = vmul.f32 %v1012, %v816
        %v1181 = vmul.f32 %v1013, %v817
        %v1182 = vmul.f32 %v1014, %v818
        %v1183 = vmul.f32 %v1015, %v819
        %v1184 = vmul.f32 %v1016, %v820
        %v1185 = vmul.f32 %v1017, %v821
        %v1186 = vmul.f32 %v1018, %v822
        %v1187 = vmul.f32 %v1019, %v823
        %v1188 = vmul.f32 %v1020, %v824
        %v1189 = vmul.f32 %v1021, %v825
        %v1190 = vmul.f32 %v1022, %v826
        %v1191 = vmul.f32 %v1023, %v827
        %v1192 = vmul.f32 %v1024, %v828
        %v1193 = vmul.f32 %v1025, %v829
        %v1194 = vmul.f32 %v1026, %v830
        %v1195 = vmul.f32 %v1027, %v831
        %v1196 = vmul.f32 %v1028, %v832
        %v1197 = vmul.f32 %v1029, %v833
        %v1198 = vmul.f32 %v1030, %v834
        %v1199 = vmul.f32 %v1031, %v835
        %v1200 = vmul.f32 %v1100, %v836
        %v1201 = vmul.f32 %v1101, %v837
        %v1202 = vmul.f32 %v1170, %v838
        %v1203 = vmul.f32 %v1171, %v839
        %1236 = vrot.lane.b32.xlu0 %v968, 4
        %v1237 = vpop.permute.xlu0 %1236
        %1238 = vrot.lane.b32.xlu0 %v969, 4
        %v1239 = vpop.permute.xlu0 %1238
        %1240 = vrot.lane.b32.xlu0 %v970, 4
        %v1241 = vpop.permute.xlu0 %1240
        %1242 = vrot.lane.b32.xlu0 %v971, 4
        %v1243 = vpop.permute.xlu0 %1242
        %1244 = vrot.lane.b32.xlu0 %v972, 4
        %v1245 = vpop.permute.xlu0 %1244
        %1246 = vrot.lane.b32.xlu0 %v973, 4
        %v1247 = vpop.permute.xlu0 %1246
        %1248 = vrot.lane.b32.xlu0 %v974, 4
        %v1249 = vpop.permute.xlu0 %1248
        %1250 = vrot.lane.b32.xlu0 %v975, 4
        %v1251 = vpop.permute.xlu0 %1250
        %1252 = vrot.lane.b32.xlu0 %v976, 4
        %v1253 = vpop.permute.xlu0 %1252
        %1254 = vrot.lane.b32.xlu0 %v977, 4
        %v1255 = vpop.permute.xlu0 %1254
        %1256 = vrot.lane.b32.xlu0 %v978, 4
        %v1257 = vpop.permute.xlu0 %1256
        %1258 = vrot.lane.b32.xlu0 %v979, 4
        %v1259 = vpop.permute.xlu0 %1258
        %1260 = vrot.lane.b32.xlu0 %v980, 4
        %v1261 = vpop.permute.xlu0 %1260
        %1262 = vrot.lane.b32.xlu0 %v981, 4
        %v1263 = vpop.permute.xlu0 %1262
        %1264 = vrot.lane.b32.xlu0 %v982, 4
        %v1265 = vpop.permute.xlu0 %1264
        %1266 = vrot.lane.b32.xlu0 %v983, 4
        %v1267 = vpop.permute.xlu0 %1266
        %1268 = vrot.lane.b32.xlu0 %v984, 4
        %v1269 = vpop.permute.xlu0 %1268
        %1270 = vrot.lane.b32.xlu0 %v985, 4
        %v1271 = vpop.permute.xlu0 %1270
        %1272 = vrot.lane.b32.xlu0 %v986, 4
        %v1273 = vpop.permute.xlu0 %1272
        %1274 = vrot.lane.b32.xlu0 %v987, 4
        %v1275 = vpop.permute.xlu0 %1274
        %1276 = vrot.lane.b32.xlu0 %v988, 4
        %v1277 = vpop.permute.xlu0 %1276
        %1278 = vrot.lane.b32.xlu0 %v989, 4
        %v1279 = vpop.permute.xlu0 %1278
        %1280 = vrot.lane.b32.xlu0 %v990, 4
        %v1281 = vpop.permute.xlu0 %1280
        %1282 = vrot.lane.b32.xlu0 %v991, 4
        %v1283 = vpop.permute.xlu0 %1282
        %1284 = vrot.lane.b32.xlu0 %v992, 4
        %v1285 = vpop.permute.xlu0 %1284
        %1286 = vrot.lane.b32.xlu0 %v993, 4
        %v1287 = vpop.permute.xlu0 %1286
        %1288 = vrot.lane.b32.xlu0 %v994, 4
        %v1289 = vpop.permute.xlu0 %1288
        %1290 = vrot.lane.b32.xlu0 %v995, 4
        %v1291 = vpop.permute.xlu0 %1290
        %1292 = vrot.lane.b32.xlu0 %v996, 4
        %v1293 = vpop.permute.xlu0 %1292
        %1294 = vrot.lane.b32.xlu0 %v997, 4
        %v1295 = vpop.permute.xlu0 %1294
        %1296 = vrot.lane.b32.xlu0 %v998, 4
        %v1297 = vpop.permute.xlu0 %1296
        %1298 = vrot.lane.b32.xlu0 %v999, 4
        %v1299 = vpop.permute.xlu0 %1298
        %1364 = vrot.lane.b32.xlu0 %v1032, 8
        %v1365 = vpop.permute.xlu0 %1364
        %1366 = vrot.lane.b32.xlu0 %v1033, 8
        %v1367 = vpop.permute.xlu0 %1366
        %1368 = vrot.lane.b32.xlu0 %v1034, 8
        %v1369 = vpop.permute.xlu0 %1368
        %1370 = vrot.lane.b32.xlu0 %v1035, 8
        %v1371 = vpop.permute.xlu0 %1370
        %1372 = vrot.lane.b32.xlu0 %v1036, 8
        %v1373 = vpop.permute.xlu0 %1372
        %1374 = vrot.lane.b32.xlu0 %v1037, 8
        %v1375 = vpop.permute.xlu0 %1374
        %1376 = vrot.lane.b32.xlu0 %v1038, 8
        %v1377 = vpop.permute.xlu0 %1376
        %1378 = vrot.lane.b32.xlu0 %v1039, 8
        %v1379 = vpop.permute.xlu0 %1378
        %1380 = vrot.lane.b32.xlu0 %v1040, 8
        %v1381 = vpop.permute.xlu0 %1380
        %1382 = vrot.lane.b32.xlu0 %v1041, 8
        %v1383 = vpop.permute.xlu0 %1382
        %1384 = vrot.lane.b32.xlu0 %v1042, 8
        %v1385 = vpop.permute.xlu0 %1384
        %1386 = vrot.lane.b32.xlu0 %v1043, 8
        %v1387 = vpop.permute.xlu0 %1386
        %1388 = vrot.lane.b32.xlu0 %v1044, 8
        %v1389 = vpop.permute.xlu0 %1388
        %1390 = vrot.lane.b32.xlu0 %v1045, 8
        %v1391 = vpop.permute.xlu0 %1390
        %1392 = vrot.lane.b32.xlu0 %v1046, 8
        %v1393 = vpop.permute.xlu0 %1392
        %1394 = vrot.lane.b32.xlu0 %v1047, 8
        %v1395 = vpop.permute.xlu0 %1394
        %1396 = vrot.lane.b32.xlu0 %v1048, 8
        %v1397 = vpop.permute.xlu0 %1396
        %1398 = vrot.lane.b32.xlu0 %v1049, 8
        %v1399 = vpop.permute.xlu0 %1398
        %1400 = vrot.lane.b32.xlu0 %v1050, 8
        %v1401 = vpop.permute.xlu0 %1400
        %1402 = vrot.lane.b32.xlu0 %v1051, 8
        %v1403 = vpop.permute.xlu0 %1402
        %1404 = vrot.lane.b32.xlu0 %v1052, 8
        %v1405 = vpop.permute.xlu0 %1404
        %1406 = vrot.lane.b32.xlu0 %v1053, 8
        %v1407 = vpop.permute.xlu0 %1406
        %1408 = vrot.lane.b32.xlu0 %v1054, 8
        %v1409 = vpop.permute.xlu0 %1408
        %1410 = vrot.lane.b32.xlu0 %v1055, 8
        %v1411 = vpop.permute.xlu0 %1410
        %1412 = vrot.lane.b32.xlu0 %v1056, 8
        %v1413 = vpop.permute.xlu0 %1412
        %1414 = vrot.lane.b32.xlu0 %v1057, 8
        %v1415 = vpop.permute.xlu0 %1414
        %1416 = vrot.lane.b32.xlu0 %v1058, 8
        %v1417 = vpop.permute.xlu0 %1416
        %1418 = vrot.lane.b32.xlu0 %v1059, 8
        %v1419 = vpop.permute.xlu0 %1418
        %1420 = vrot.lane.b32.xlu0 %v1060, 8
        %v1421 = vpop.permute.xlu0 %1420
        %1422 = vrot.lane.b32.xlu0 %v1061, 8
        %v1423 = vpop.permute.xlu0 %1422
        %1424 = vrot.lane.b32.xlu0 %v1062, 8
        %v1425 = vpop.permute.xlu0 %1424
        %1426 = vrot.lane.b32.xlu0 %v1063, 8
        %v1427 = vpop.permute.xlu0 %1426
        %1492 = vrot.lane.b32.xlu0 %v1066, 12
        %v1493 = vpop.permute.xlu0 %1492
        %1494 = vrot.lane.b32.xlu0 %v1067, 12
        %v1495 = vpop.permute.xlu0 %1494
        %1496 = vrot.lane.b32.xlu0 %v1068, 12
        %v1497 = vpop.permute.xlu0 %1496
        %1498 = vrot.lane.b32.xlu0 %v1069, 12
        %v1499 = vpop.permute.xlu0 %1498
        %1500 = vrot.lane.b32.xlu0 %v1070, 12
        %v1501 = vpop.permute.xlu0 %1500
        %1502 = vrot.lane.b32.xlu0 %v1071, 12
        %v1503 = vpop.permute.xlu0 %1502
        %1504 = vrot.lane.b32.xlu0 %v1072, 12
        %v1505 = vpop.permute.xlu0 %1504
        %1506 = vrot.lane.b32.xlu0 %v1073, 12
        %v1507 = vpop.permute.xlu0 %1506
        %1508 = vrot.lane.b32.xlu0 %v1074, 12
        %v1509 = vpop.permute.xlu0 %1508
        %1510 = vrot.lane.b32.xlu0 %v1075, 12
        %v1511 = vpop.permute.xlu0 %1510
        %1512 = vrot.lane.b32.xlu0 %v1076, 12
        %v1513 = vpop.permute.xlu0 %1512
        %1514 = vrot.lane.b32.xlu0 %v1077, 12
        %v1515 = vpop.permute.xlu0 %1514
        %1516 = vrot.lane.b32.xlu0 %v1078, 12
        %v1517 = vpop.permute.xlu0 %1516
        %1518 = vrot.lane.b32.xlu0 %v1079, 12
        %v1519 = vpop.permute.xlu0 %1518
        %1520 = vrot.lane.b32.xlu0 %v1080, 12
        %v1521 = vpop.permute.xlu0 %1520
        %1522 = vrot.lane.b32.xlu0 %v1081, 12
        %v1523 = vpop.permute.xlu0 %1522
        %1524 = vrot.lane.b32.xlu0 %v1082, 12
        %v1525 = vpop.permute.xlu0 %1524
        %1526 = vrot.lane.b32.xlu0 %v1083, 12
        %v1527 = vpop.permute.xlu0 %1526
        %1528 = vrot.lane.b32.xlu0 %v1084, 12
        %v1529 = vpop.permute.xlu0 %1528
        %1530 = vrot.lane.b32.xlu0 %v1085, 12
        %v1531 = vpop.permute.xlu0 %1530
        %1532 = vrot.lane.b32.xlu0 %v1086, 12
        %v1533 = vpop.permute.xlu0 %1532
        %1534 = vrot.lane.b32.xlu0 %v1087, 12
        %v1535 = vpop.permute.xlu0 %1534
        %1536 = vrot.lane.b32.xlu0 %v1088, 12
        %v1537 = vpop.permute.xlu0 %1536
        %1538 = vrot.lane.b32.xlu0 %v1089, 12
        %v1539 = vpop.permute.xlu0 %1538
        %1540 = vrot.lane.b32.xlu0 %v1090, 12
        %v1541 = vpop.permute.xlu0 %1540
        %1542 = vrot.lane.b32.xlu0 %v1091, 12
        %v1543 = vpop.permute.xlu0 %1542
        %1544 = vrot.lane.b32.xlu0 %v1092, 12
        %v1545 = vpop.permute.xlu0 %1544
        %1546 = vrot.lane.b32.xlu0 %v1093, 12
        %v1547 = vpop.permute.xlu0 %1546
        %1548 = vrot.lane.b32.xlu0 %v1094, 12
        %v1549 = vpop.permute.xlu0 %1548
        %1550 = vrot.lane.b32.xlu0 %v1095, 12
        %v1551 = vpop.permute.xlu0 %1550
        %1552 = vrot.lane.b32.xlu0 %v1096, 12
        %v1553 = vpop.permute.xlu0 %1552
        %1554 = vrot.lane.b32.xlu0 %v1097, 12
        %v1555 = vpop.permute.xlu0 %1554
        %1590 = vrot.lane.b32.xlu0 %v970, 16
        %v1591 = vpop.permute.xlu0 %1590
        %1592 = vrot.lane.b32.xlu0 %v971, 16
        %v1593 = vpop.permute.xlu0 %1592
        %1594 = vrot.lane.b32.xlu0 %v972, 16
        %v1595 = vpop.permute.xlu0 %1594
        %1596 = vrot.lane.b32.xlu0 %v973, 16
        %v1597 = vpop.permute.xlu0 %1596
        %1598 = vrot.lane.b32.xlu0 %v974, 16
        %v1599 = vpop.permute.xlu0 %1598
        %1600 = vrot.lane.b32.xlu0 %v975, 16
        %v1601 = vpop.permute.xlu0 %1600
        %1602 = vrot.lane.b32.xlu0 %v976, 16
        %v1603 = vpop.permute.xlu0 %1602
        %1604 = vrot.lane.b32.xlu0 %v977, 16
        %v1605 = vpop.permute.xlu0 %1604
        %1606 = vrot.lane.b32.xlu0 %v978, 16
        %v1607 = vpop.permute.xlu0 %1606
        %1608 = vrot.lane.b32.xlu0 %v979, 16
        %v1609 = vpop.permute.xlu0 %1608
        %1610 = vrot.lane.b32.xlu0 %v980, 16
        %v1611 = vpop.permute.xlu0 %1610
        %1612 = vrot.lane.b32.xlu0 %v981, 16
        %v1613 = vpop.permute.xlu0 %1612
        %1614 = vrot.lane.b32.xlu0 %v982, 16
        %v1615 = vpop.permute.xlu0 %1614
        %1616 = vrot.lane.b32.xlu0 %v983, 16
        %v1617 = vpop.permute.xlu0 %1616
        %1618 = vrot.lane.b32.xlu0 %v984, 16
        %v1619 = vpop.permute.xlu0 %1618
        %1620 = vrot.lane.b32.xlu0 %v985, 16
        %v1621 = vpop.permute.xlu0 %1620
        %1622 = vrot.lane.b32.xlu0 %v986, 16
        %v1623 = vpop.permute.xlu0 %1622
        %1624 = vrot.lane.b32.xlu0 %v987, 16
        %v1625 = vpop.permute.xlu0 %1624
        %1626 = vrot.lane.b32.xlu0 %v988, 16
        %v1627 = vpop.permute.xlu0 %1626
        %1628 = vrot.lane.b32.xlu0 %v989, 16
        %v1629 = vpop.permute.xlu0 %1628
        %1630 = vrot.lane.b32.xlu0 %v990, 16
        %v1631 = vpop.permute.xlu0 %1630
        %1632 = vrot.lane.b32.xlu0 %v991, 16
        %v1633 = vpop.permute.xlu0 %1632
        %1634 = vrot.lane.b32.xlu0 %v992, 16
        %v1635 = vpop.permute.xlu0 %1634
        %1636 = vrot.lane.b32.xlu0 %v993, 16
        %v1637 = vpop.permute.xlu0 %1636
        %1638 = vrot.lane.b32.xlu0 %v994, 16
        %v1639 = vpop.permute.xlu0 %1638
        %1640 = vrot.lane.b32.xlu0 %v995, 16
        %v1641 = vpop.permute.xlu0 %1640
        %1642 = vrot.lane.b32.xlu0 %v996, 16
        %v1643 = vpop.permute.xlu0 %1642
        %1644 = vrot.lane.b32.xlu0 %v997, 16
        %v1645 = vpop.permute.xlu0 %1644
        %1646 = vrot.lane.b32.xlu0 %v998, 16
        %v1647 = vpop.permute.xlu0 %1646
        %1648 = vrot.lane.b32.xlu0 %v999, 16
        %v1649 = vpop.permute.xlu0 %1648
        %1650 = vrot.lane.b32.xlu0 %v1098, 16
        %v1651 = vpop.permute.xlu0 %1650
        %1652 = vrot.lane.b32.xlu0 %v1099, 16
        %v1653 = vpop.permute.xlu0 %1652
        %1718 = vrot.lane.b32.xlu0 %v1102, 20
        %v1719 = vpop.permute.xlu0 %1718
        %1720 = vrot.lane.b32.xlu0 %v1103, 20
        %v1721 = vpop.permute.xlu0 %1720
        %1722 = vrot.lane.b32.xlu0 %v1104, 20
        %v1723 = vpop.permute.xlu0 %1722
        %1724 = vrot.lane.b32.xlu0 %v1105, 20
        %v1725 = vpop.permute.xlu0 %1724
        %1726 = vrot.lane.b32.xlu0 %v1106, 20
        %v1727 = vpop.permute.xlu0 %1726
        %1728 = vrot.lane.b32.xlu0 %v1107, 20
        %v1729 = vpop.permute.xlu0 %1728
        %1730 = vrot.lane.b32.xlu0 %v1108, 20
        %v1731 = vpop.permute.xlu0 %1730
        %1732 = vrot.lane.b32.xlu0 %v1109, 20
        %v1733 = vpop.permute.xlu0 %1732
        %1734 = vrot.lane.b32.xlu0 %v1110, 20
        %v1735 = vpop.permute.xlu0 %1734
        %1736 = vrot.lane.b32.xlu0 %v1111, 20
        %v1737 = vpop.permute.xlu0 %1736
        %1738 = vrot.lane.b32.xlu0 %v1112, 20
        %v1739 = vpop.permute.xlu0 %1738
        %1740 = vrot.lane.b32.xlu0 %v1113, 20
        %v1741 = vpop.permute.xlu0 %1740
        %1742 = vrot.lane.b32.xlu0 %v1114, 20
        %v1743 = vpop.permute.xlu0 %1742
        %1744 = vrot.lane.b32.xlu0 %v1115, 20
        %v1745 = vpop.permute.xlu0 %1744
        %1746 = vrot.lane.b32.xlu0 %v1116, 20
        %v1747 = vpop.permute.xlu0 %1746
        %1748 = vrot.lane.b32.xlu0 %v1117, 20
        %v1749 = vpop.permute.xlu0 %1748
        %1750 = vrot.lane.b32.xlu0 %v1118, 20
        %v1751 = vpop.permute.xlu0 %1750
        %1752 = vrot.lane.b32.xlu0 %v1119, 20
        %v1753 = vpop.permute.xlu0 %1752
        %1754 = vrot.lane.b32.xlu0 %v1120, 20
        %v1755 = vpop.permute.xlu0 %1754
        %1756 = vrot.lane.b32.xlu0 %v1121, 20
        %v1757 = vpop.permute.xlu0 %1756
        %1758 = vrot.lane.b32.xlu0 %v1122, 20
        %v1759 = vpop.permute.xlu0 %1758
        %1760 = vrot.lane.b32.xlu0 %v1123, 20
        %v1761 = vpop.permute.xlu0 %1760
        %1762 = vrot.lane.b32.xlu0 %v1124, 20
        %v1763 = vpop.permute.xlu0 %1762
        %1764 = vrot.lane.b32.xlu0 %v1125, 20
        %v1765 = vpop.permute.xlu0 %1764
        %1766 = vrot.lane.b32.xlu0 %v1126, 20
        %v1767 = vpop.permute.xlu0 %1766
        %1768 = vrot.lane.b32.xlu0 %v1127, 20
        %v1769 = vpop.permute.xlu0 %1768
        %1770 = vrot.lane.b32.xlu0 %v1128, 20
        %v1771 = vpop.permute.xlu0 %1770
        %1772 = vrot.lane.b32.xlu0 %v1129, 20
        %v1773 = vpop.permute.xlu0 %1772
        %1774 = vrot.lane.b32.xlu0 %v1130, 20
        %v1775 = vpop.permute.xlu0 %1774
        %1776 = vrot.lane.b32.xlu0 %v1131, 20
        %v1777 = vpop.permute.xlu0 %1776
        %1778 = vrot.lane.b32.xlu0 %v1132, 20
        %v1779 = vpop.permute.xlu0 %1778
        %1780 = vrot.lane.b32.xlu0 %v1133, 20
        %v1781 = vpop.permute.xlu0 %1780
        %1846 = vrot.lane.b32.xlu0 %v1136, 24
        %v1847 = vpop.permute.xlu0 %1846
        %1848 = vrot.lane.b32.xlu0 %v1137, 24
        %v1849 = vpop.permute.xlu0 %1848
        %1850 = vrot.lane.b32.xlu0 %v1138, 24
        %v1851 = vpop.permute.xlu0 %1850
        %1852 = vrot.lane.b32.xlu0 %v1139, 24
        %v1853 = vpop.permute.xlu0 %1852
        %1854 = vrot.lane.b32.xlu0 %v1140, 24
        %v1855 = vpop.permute.xlu0 %1854
        %1856 = vrot.lane.b32.xlu0 %v1141, 24
        %v1857 = vpop.permute.xlu0 %1856
        %1858 = vrot.lane.b32.xlu0 %v1142, 24
        %v1859 = vpop.permute.xlu0 %1858
        %1860 = vrot.lane.b32.xlu0 %v1143, 24
        %v1861 = vpop.permute.xlu0 %1860
        %1862 = vrot.lane.b32.xlu0 %v1144, 24
        %v1863 = vpop.permute.xlu0 %1862
        %1864 = vrot.lane.b32.xlu0 %v1145, 24
        %v1865 = vpop.permute.xlu0 %1864
        %1866 = vrot.lane.b32.xlu0 %v1146, 24
        %v1867 = vpop.permute.xlu0 %1866
        %1868 = vrot.lane.b32.xlu0 %v1147, 24
        %v1869 = vpop.permute.xlu0 %1868
        %1870 = vrot.lane.b32.xlu0 %v1148, 24
        %v1871 = vpop.permute.xlu0 %1870
        %1872 = vrot.lane.b32.xlu0 %v1149, 24
        %v1873 = vpop.permute.xlu0 %1872
        %1874 = vrot.lane.b32.xlu0 %v1150, 24
        %v1875 = vpop.permute.xlu0 %1874
        %1876 = vrot.lane.b32.xlu0 %v1151, 24
        %v1877 = vpop.permute.xlu0 %1876
        %1878 = vrot.lane.b32.xlu0 %v1152, 24
        %v1879 = vpop.permute.xlu0 %1878
        %1880 = vrot.lane.b32.xlu0 %v1153, 24
        %v1881 = vpop.permute.xlu0 %1880
        %1882 = vrot.lane.b32.xlu0 %v1154, 24
        %v1883 = vpop.permute.xlu0 %1882
        %1884 = vrot.lane.b32.xlu0 %v1155, 24
        %v1885 = vpop.permute.xlu0 %1884
        %1886 = vrot.lane.b32.xlu0 %v1156, 24
        %v1887 = vpop.permute.xlu0 %1886
        %1888 = vrot.lane.b32.xlu0 %v1157, 24
        %v1889 = vpop.permute.xlu0 %1888
        %1890 = vrot.lane.b32.xlu0 %v1158, 24
        %v1891 = vpop.permute.xlu0 %1890
        %1892 = vrot.lane.b32.xlu0 %v1159, 24
        %v1893 = vpop.permute.xlu0 %1892
        %1894 = vrot.lane.b32.xlu0 %v1160, 24
        %v1895 = vpop.permute.xlu0 %1894
        %1896 = vrot.lane.b32.xlu0 %v1161, 24
        %v1897 = vpop.permute.xlu0 %1896
        %1898 = vrot.lane.b32.xlu0 %v1162, 24
        %v1899 = vpop.permute.xlu0 %1898
        %1900 = vrot.lane.b32.xlu0 %v1163, 24
        %v1901 = vpop.permute.xlu0 %1900
        %1902 = vrot.lane.b32.xlu0 %v1164, 24
        %v1903 = vpop.permute.xlu0 %1902
        %1904 = vrot.lane.b32.xlu0 %v1165, 24
        %v1905 = vpop.permute.xlu0 %1904
        %1906 = vrot.lane.b32.xlu0 %v1166, 24
        %v1907 = vpop.permute.xlu0 %1906
        %1908 = vrot.lane.b32.xlu0 %v1167, 24
        %v1909 = vpop.permute.xlu0 %1908
        %1944 = vrot.lane.b32.xlu0 %v972, 28
        %v1945 = vpop.permute.xlu0 %1944
        %1946 = vrot.lane.b32.xlu0 %v973, 28
        %v1947 = vpop.permute.xlu0 %1946
        %1948 = vrot.lane.b32.xlu0 %v974, 28
        %v1949 = vpop.permute.xlu0 %1948
        %1950 = vrot.lane.b32.xlu0 %v975, 28
        %v1951 = vpop.permute.xlu0 %1950
        %1952 = vrot.lane.b32.xlu0 %v976, 28
        %v1953 = vpop.permute.xlu0 %1952
        %1954 = vrot.lane.b32.xlu0 %v977, 28
        %v1955 = vpop.permute.xlu0 %1954
        %1956 = vrot.lane.b32.xlu0 %v978, 28
        %v1957 = vpop.permute.xlu0 %1956
        %1958 = vrot.lane.b32.xlu0 %v979, 28
        %v1959 = vpop.permute.xlu0 %1958
        %1960 = vrot.lane.b32.xlu0 %v980, 28
        %v1961 = vpop.permute.xlu0 %1960
        %1962 = vrot.lane.b32.xlu0 %v981, 28
        %v1963 = vpop.permute.xlu0 %1962
        %1964 = vrot.lane.b32.xlu0 %v982, 28
        %v1965 = vpop.permute.xlu0 %1964
        %1966 = vrot.lane.b32.xlu0 %v983, 28
        %v1967 = vpop.permute.xlu0 %1966
        %1968 = vrot.lane.b32.xlu0 %v984, 28
        %v1969 = vpop.permute.xlu0 %1968
        %1970 = vrot.lane.b32.xlu0 %v985, 28
        %v1971 = vpop.permute.xlu0 %1970
        %1972 = vrot.lane.b32.xlu0 %v986, 28
        %v1973 = vpop.permute.xlu0 %1972
        %1974 = vrot.lane.b32.xlu0 %v987, 28
        %v1975 = vpop.permute.xlu0 %1974
        %1976 = vrot.lane.b32.xlu0 %v988, 28
        %v1977 = vpop.permute.xlu0 %1976
        %1978 = vrot.lane.b32.xlu0 %v989, 28
        %v1979 = vpop.permute.xlu0 %1978
        %1980 = vrot.lane.b32.xlu0 %v990, 28
        %v1981 = vpop.permute.xlu0 %1980
        %1982 = vrot.lane.b32.xlu0 %v991, 28
        %v1983 = vpop.permute.xlu0 %1982
        %1984 = vrot.lane.b32.xlu0 %v992, 28
        %v1985 = vpop.permute.xlu0 %1984
        %1986 = vrot.lane.b32.xlu0 %v993, 28
        %v1987 = vpop.permute.xlu0 %1986
        %1988 = vrot.lane.b32.xlu0 %v994, 28
        %v1989 = vpop.permute.xlu0 %1988
        %1990 = vrot.lane.b32.xlu0 %v995, 28
        %v1991 = vpop.permute.xlu0 %1990
        %1992 = vrot.lane.b32.xlu0 %v996, 28
        %v1993 = vpop.permute.xlu0 %1992
        %1994 = vrot.lane.b32.xlu0 %v997, 28
        %v1995 = vpop.permute.xlu0 %1994
        %1996 = vrot.lane.b32.xlu0 %v998, 28
        %v1997 = vpop.permute.xlu0 %1996
        %1998 = vrot.lane.b32.xlu0 %v999, 28
        %v1999 = vpop.permute.xlu0 %1998
        %2000 = vrot.lane.b32.xlu0 %v1098, 28
        %v2001 = vpop.permute.xlu0 %2000
        %2002 = vrot.lane.b32.xlu0 %v1099, 28
        %v2003 = vpop.permute.xlu0 %2002
        %2004 = vrot.lane.b32.xlu0 %v1168, 28
        %v2005 = vpop.permute.xlu0 %2004
        %2006 = vrot.lane.b32.xlu0 %v1169, 28
        %v2007 = vpop.permute.xlu0 %2006
        %2072 = vrot.lane.b32.xlu0 %v1172, 32
        %v2073 = vpop.permute.xlu0 %2072
        %2074 = vrot.lane.b32.xlu0 %v1173, 32
        %v2075 = vpop.permute.xlu0 %2074
        %2076 = vrot.lane.b32.xlu0 %v1174, 32
        %v2077 = vpop.permute.xlu0 %2076
        %2078 = vrot.lane.b32.xlu0 %v1175, 32
        %v2079 = vpop.permute.xlu0 %2078
        %2080 = vrot.lane.b32.xlu0 %v1176, 32
        %v2081 = vpop.permute.xlu0 %2080
        %2082 = vrot.lane.b32.xlu0 %v1177, 32
        %v2083 = vpop.permute.xlu0 %2082
        %2084 = vrot.lane.b32.xlu0 %v1178, 32
        %v2085 = vpop.permute.xlu0 %2084
        %2086 = vrot.lane.b32.xlu0 %v1179, 32
        %v2087 = vpop.permute.xlu0 %2086
        %2088 = vrot.lane.b32.xlu0 %v1180, 32
        %v2089 = vpop.permute.xlu0 %2088
        %2090 = vrot.lane.b32.xlu0 %v1181, 32
        %v2091 = vpop.permute.xlu0 %2090
        %2092 = vrot.lane.b32.xlu0 %v1182, 32
        %v2093 = vpop.permute.xlu0 %2092
        %2094 = vrot.lane.b32.xlu0 %v1183, 32
        %v2095 = vpop.permute.xlu0 %2094
        %2096 = vrot.lane.b32.xlu0 %v1184, 32
        %v2097 = vpop.permute.xlu0 %2096
        %2098 = vrot.lane.b32.xlu0 %v1185, 32
        %v2099 = vpop.permute.xlu0 %2098
        %2100 = vrot.lane.b32.xlu0 %v1186, 32
        %v2101 = vpop.permute.xlu0 %2100
        %2102 = vrot.lane.b32.xlu0 %v1187, 32
        %v2103 = vpop.permute.xlu0 %2102
        %2104 = vrot.lane.b32.xlu0 %v1188, 32
        %v2105 = vpop.permute.xlu0 %2104
        %2106 = vrot.lane.b32.xlu0 %v1189, 32
        %v2107 = vpop.permute.xlu0 %2106
        %2108 = vrot.lane.b32.xlu0 %v1190, 32
        %v2109 = vpop.permute.xlu0 %2108
        %2110 = vrot.lane.b32.xlu0 %v1191, 32
        %v2111 = vpop.permute.xlu0 %2110
        %2112 = vrot.lane.b32.xlu0 %v1192, 32
        %v2113 = vpop.permute.xlu0 %2112
        %2114 = vrot.lane.b32.xlu0 %v1193, 32
        %v2115 = vpop.permute.xlu0 %2114
        %2116 = vrot.lane.b32.xlu0 %v1194, 32
        %v2117 = vpop.permute.xlu0 %2116
        %2118 = vrot.lane.b32.xlu0 %v1195, 32
        %v2119 = vpop.permute.xlu0 %2118
        %2120 = vrot.lane.b32.xlu0 %v1196, 32
        %v2121 = vpop.permute.xlu0 %2120
        %2122 = vrot.lane.b32.xlu0 %v1197, 32
        %v2123 = vpop.permute.xlu0 %2122
        %2124 = vrot.lane.b32.xlu0 %v1198, 32
        %v2125 = vpop.permute.xlu0 %2124
        %2126 = vrot.lane.b32.xlu0 %v1199, 32
        %v2127 = vpop.permute.xlu0 %2126
        %2128 = vrot.lane.b32.xlu0 %v1200, 32
        %v2129 = vpop.permute.xlu0 %2128
        %2130 = vrot.lane.b32.xlu0 %v1201, 32
        %v2131 = vpop.permute.xlu0 %2130
        %2132 = vrot.lane.b32.xlu0 %v1202, 32
        %v2133 = vpop.permute.xlu0 %2132
        %2134 = vrot.lane.b32.xlu0 %v1203, 32
        %v2135 = vpop.permute.xlu0 %2134
        %v2168 = vsel %vm223, %v936, %v1237
        %v2169 = vsel %vm223, %v937, %v1239
        %v2170 = vsel %vm223, %v938, %v1241
        %v2171 = vsel %vm223, %v939, %v1243
        %v2172 = vsel %vm223, %v940, %v1245
        %v2173 = vsel %vm223, %v941, %v1247
        %v2174 = vsel %vm223, %v942, %v1249
        %v2175 = vsel %vm223, %v943, %v1251
        %v2176 = vsel %vm223, %v944, %v1253
        %v2177 = vsel %vm223, %v945, %v1255
        %v2178 = vsel %vm223, %v946, %v1257
        %v2179 = vsel %vm223, %v947, %v1259
        %v2180 = vsel %vm223, %v948, %v1261
        %v2181 = vsel %vm223, %v949, %v1263
        %v2182 = vsel %vm223, %v950, %v1265
        %v2183 = vsel %vm223, %v951, %v1267
        %v2184 = vsel %vm223, %v952, %v1269
        %v2185 = vsel %vm223, %v953, %v1271
        %v2186 = vsel %vm223, %v954, %v1273
        %v2187 = vsel %vm223, %v955, %v1275
        %v2188 = vsel %vm223, %v956, %v1277
        %v2189 = vsel %vm223, %v957, %v1279
        %v2190 = vsel %vm223, %v958, %v1281
        %v2191 = vsel %vm223, %v959, %v1283
        %v2192 = vsel %vm223, %v960, %v1285
        %v2193 = vsel %vm223, %v961, %v1287
        %v2194 = vsel %vm223, %v962, %v1289
        %v2195 = vsel %vm223, %v963, %v1291
        %v2196 = vsel %vm223, %v964, %v1293
        %v2197 = vsel %vm223, %v965, %v1295
        %v2198 = vsel %vm223, %v966, %v1297
        %v2199 = vsel %vm223, %v967, %v1299
        %vm2200 = vcmask 64512
        %v2201 = vsel %vm2200, %v2168, %v1365
        %v2202 = vsel %vm2200, %v2169, %v1367
        %v2203 = vsel %vm2200, %v2170, %v1369
        %v2204 = vsel %vm2200, %v2171, %v1371
        %v2205 = vsel %vm2200, %v2172, %v1373
        %v2206 = vsel %vm2200, %v2173, %v1375
        %v2207 = vsel %vm2200, %v2174, %v1377
        %v2208 = vsel %vm2200, %v2175, %v1379
        %v2209 = vsel %vm2200, %v2176, %v1381
        %v2210 = vsel %vm2200, %v2177, %v1383
        %v2211 = vsel %vm2200, %v2178, %v1385
        %v2212 = vsel %vm2200, %v2179, %v1387
        %v2213 = vsel %vm2200, %v2180, %v1389
        %v2214 = vsel %vm2200, %v2181, %v1391
        %v2215 = vsel %vm2200, %v2182, %v1393
        %v2216 = vsel %vm2200, %v2183, %v1395
        %v2217 = vsel %vm2200, %v2184, %v1397
        %v2218 = vsel %vm2200, %v2185, %v1399
        %v2219 = vsel %vm2200, %v2186, %v1401
        %v2220 = vsel %vm2200, %v2187, %v1403
        %v2221 = vsel %vm2200, %v2188, %v1405
        %v2222 = vsel %vm2200, %v2189, %v1407
        %v2223 = vsel %vm2200, %v2190, %v1409
        %v2224 = vsel %vm2200, %v2191, %v1411
        %v2225 = vsel %vm2200, %v2192, %v1413
        %v2226 = vsel %vm2200, %v2193, %v1415
        %v2227 = vsel %vm2200, %v2194, %v1417
        %v2228 = vsel %vm2200, %v2195, %v1419
        %v2229 = vsel %vm2200, %v2196, %v1421
        %v2230 = vsel %vm2200, %v2197, %v1423
        %v2231 = vsel %vm2200, %v2198, %v1425
        %v2232 = vsel %vm2200, %v2199, %v1427
        %vm2233 = vcmask 97280
        %v2234 = vsel %vm2233, %v2201, %v1493
        %v2235 = vsel %vm2233, %v2202, %v1495
        %v2236 = vsel %vm2233, %v2203, %v1497
        %v2237 = vsel %vm2233, %v2204, %v1499
        %v2238 = vsel %vm2233, %v2205, %v1501
        %v2239 = vsel %vm2233, %v2206, %v1503
        %v2240 = vsel %vm2233, %v2207, %v1505
        %v2241 = vsel %vm2233, %v2208, %v1507
        %v2242 = vsel %vm2233, %v2209, %v1509
        %v2243 = vsel %vm2233, %v2210, %v1511
        %v2244 = vsel %vm2233, %v2211, %v1513
        %v2245 = vsel %vm2233, %v2212, %v1515
        %v2246 = vsel %vm2233, %v2213, %v1517
        %v2247 = vsel %vm2233, %v2214, %v1519
        %v2248 = vsel %vm2233, %v2215, %v1521
        %v2249 = vsel %vm2233, %v2216, %v1523
        %v2250 = vsel %vm2233, %v2217, %v1525
        %v2251 = vsel %vm2233, %v2218, %v1527
        %v2252 = vsel %vm2233, %v2219, %v1529
        %v2253 = vsel %vm2233, %v2220, %v1531
        %v2254 = vsel %vm2233, %v2221, %v1533
        %v2255 = vsel %vm2233, %v2222, %v1535
        %v2256 = vsel %vm2233, %v2223, %v1537
        %v2257 = vsel %vm2233, %v2224, %v1539
        %v2258 = vsel %vm2233, %v2225, %v1541
        %v2259 = vsel %vm2233, %v2226, %v1543
        %v2260 = vsel %vm2233, %v2227, %v1545
        %v2261 = vsel %vm2233, %v2228, %v1547
        %v2262 = vsel %vm2233, %v2229, %v1549
        %v2263 = vsel %vm2233, %v2230, %v1551
        %v2264 = vsel %vm2233, %v2231, %v1553
        %v2265 = vsel %vm2233, %v2232, %v1555
        %vm2266 = vcmask 130048
        %v2267 = vsel %vm2266, %v2234, %v1591
        %v2268 = vsel %vm2266, %v2235, %v1593
        %v2269 = vsel %vm2266, %v2236, %v1595
        %v2270 = vsel %vm2266, %v2237, %v1597
        %v2271 = vsel %vm2266, %v2238, %v1599
        %v2272 = vsel %vm2266, %v2239, %v1601
        %v2273 = vsel %vm2266, %v2240, %v1603
        %v2274 = vsel %vm2266, %v2241, %v1605
        %v2275 = vsel %vm2266, %v2242, %v1607
        %v2276 = vsel %vm2266, %v2243, %v1609
        %v2277 = vsel %vm2266, %v2244, %v1611
        %v2278 = vsel %vm2266, %v2245, %v1613
        %v2279 = vsel %vm2266, %v2246, %v1615
        %v2280 = vsel %vm2266, %v2247, %v1617
        %v2281 = vsel %vm2266, %v2248, %v1619
        %v2282 = vsel %vm2266, %v2249, %v1621
        %v2283 = vsel %vm2266, %v2250, %v1623
        %v2284 = vsel %vm2266, %v2251, %v1625
        %v2285 = vsel %vm2266, %v2252, %v1627
        %v2286 = vsel %vm2266, %v2253, %v1629
        %v2287 = vsel %vm2266, %v2254, %v1631
        %v2288 = vsel %vm2266, %v2255, %v1633
        %v2289 = vsel %vm2266, %v2256, %v1635
        %v2290 = vsel %vm2266, %v2257, %v1637
        %v2291 = vsel %vm2266, %v2258, %v1639
        %v2292 = vsel %vm2266, %v2259, %v1641
        %v2293 = vsel %vm2266, %v2260, %v1643
        %v2294 = vsel %vm2266, %v2261, %v1645
        %v2295 = vsel %vm2266, %v2262, %v1647
        %v2296 = vsel %vm2266, %v2263, %v1649
        %v2297 = vsel %vm2266, %v2264, %v1651
        %v2298 = vsel %vm2266, %v2265, %v1653
        %vm2299 = vcmask 162816
        %v2300 = vsel %vm2299, %v2267, %v1719
        %v2301 = vsel %vm2299, %v2268, %v1721
        %v2302 = vsel %vm2299, %v2269, %v1723
        %v2303 = vsel %vm2299, %v2270, %v1725
        %v2304 = vsel %vm2299, %v2271, %v1727
        %v2305 = vsel %vm2299, %v2272, %v1729
        %v2306 = vsel %vm2299, %v2273, %v1731
        %v2307 = vsel %vm2299, %v2274, %v1733
        %v2308 = vsel %vm2299, %v2275, %v1735
        %v2309 = vsel %vm2299, %v2276, %v1737
        %v2310 = vsel %vm2299, %v2277, %v1739
        %v2311 = vsel %vm2299, %v2278, %v1741
        %v2312 = vsel %vm2299, %v2279, %v1743
        %v2313 = vsel %vm2299, %v2280, %v1745
        %v2314 = vsel %vm2299, %v2281, %v1747
        %v2315 = vsel %vm2299, %v2282, %v1749
        %v2316 = vsel %vm2299, %v2283, %v1751
        %v2317 = vsel %vm2299, %v2284, %v1753
        %v2318 = vsel %vm2299, %v2285, %v1755
        %v2319 = vsel %vm2299, %v2286, %v1757
        %v2320 = vsel %vm2299, %v2287, %v1759
        %v2321 = vsel %vm2299, %v2288, %v1761
        %v2322 = vsel %vm2299, %v2289, %v1763
        %v2323 = vsel %vm2299, %v2290, %v1765
        %v2324 = vsel %vm2299, %v2291, %v1767
        %v2325 = vsel %vm2299, %v2292, %v1769
        %v2326 = vsel %vm2299, %v2293, %v1771
        %v2327 = vsel %vm2299, %v2294, %v1773
        %v2328 = vsel %vm2299, %v2295, %v1775
        %v2329 = vsel %vm2299, %v2296, %v1777
        %v2330 = vsel %vm2299, %v2297, %v1779
        %v2331 = vsel %vm2299, %v2298, %v1781
        %vm2332 = vcmask 195584
        %v2333 = vsel %vm2332, %v2300, %v1847
        %v2334 = vsel %vm2332, %v2301, %v1849
        %v2335 = vsel %vm2332, %v2302, %v1851
        %v2336 = vsel %vm2332, %v2303, %v1853
        %v2337 = vsel %vm2332, %v2304, %v1855
        %v2338 = vsel %vm2332, %v2305, %v1857
        %v2339 = vsel %vm2332, %v2306, %v1859
        %v2340 = vsel %vm2332, %v2307, %v1861
        %v2341 = vsel %vm2332, %v2308, %v1863
        %v2342 = vsel %vm2332, %v2309, %v1865
        %v2343 = vsel %vm2332, %v2310, %v1867
        %v2344 = vsel %vm2332, %v2311, %v1869
        %v2345 = vsel %vm2332, %v2312, %v1871
        %v2346 = vsel %vm2332, %v2313, %v1873
        %v2347 = vsel %vm2332, %v2314, %v1875
        %v2348 = vsel %vm2332, %v2315, %v1877
        %v2349 = vsel %vm2332, %v2316, %v1879
        %v2350 = vsel %vm2332, %v2317, %v1881
        %v2351 = vsel %vm2332, %v2318, %v1883
        %v2352 = vsel %vm2332, %v2319, %v1885
        %v2353 = vsel %vm2332, %v2320, %v1887
        %v2354 = vsel %vm2332, %v2321, %v1889
        %v2355 = vsel %vm2332, %v2322, %v1891
        %v2356 = vsel %vm2332, %v2323, %v1893
        %v2357 = vsel %vm2332, %v2324, %v1895
        %v2358 = vsel %vm2332, %v2325, %v1897
        %v2359 = vsel %vm2332, %v2326, %v1899
        %v2360 = vsel %vm2332, %v2327, %v1901
        %v2361 = vsel %vm2332, %v2328, %v1903
        %v2362 = vsel %vm2332, %v2329, %v1905
        %v2363 = vsel %vm2332, %v2330, %v1907
        %v2364 = vsel %vm2332, %v2331, %v1909
        %vm2365 = vcmask 228352
        %v2366 = vsel %vm2365, %v2333, %v1945
        %v2367 = vsel %vm2365, %v2334, %v1947
        %v2368 = vsel %vm2365, %v2335, %v1949
        %v2369 = vsel %vm2365, %v2336, %v1951
        %v2370 = vsel %vm2365, %v2337, %v1953
        %v2371 = vsel %vm2365, %v2338, %v1955
        %v2372 = vsel %vm2365, %v2339, %v1957
        %v2373 = vsel %vm2365, %v2340, %v1959
        %v2374 = vsel %vm2365, %v2341, %v1961
        %v2375 = vsel %vm2365, %v2342, %v1963
        %v2376 = vsel %vm2365, %v2343, %v1965
        %v2377 = vsel %vm2365, %v2344, %v1967
        %v2378 = vsel %vm2365, %v2345, %v1969
        %v2379 = vsel %vm2365, %v2346, %v1971
        %v2380 = vsel %vm2365, %v2347, %v1973
        %v2381 = vsel %vm2365, %v2348, %v1975
        %v2382 = vsel %vm2365, %v2349, %v1977
        %v2383 = vsel %vm2365, %v2350, %v1979
        %v2384 = vsel %vm2365, %v2351, %v1981
        %v2385 = vsel %vm2365, %v2352, %v1983
        %v2386 = vsel %vm2365, %v2353, %v1985
        %v2387 = vsel %vm2365, %v2354, %v1987
        %v2388 = vsel %vm2365, %v2355, %v1989
        %v2389 = vsel %vm2365, %v2356, %v1991
        %v2390 = vsel %vm2365, %v2357, %v1993
        %v2391 = vsel %vm2365, %v2358, %v1995
        %v2392 = vsel %vm2365, %v2359, %v1997
        %v2393 = vsel %vm2365, %v2360, %v1999
        %v2394 = vsel %vm2365, %v2361, %v2001
        %v2395 = vsel %vm2365, %v2362, %v2003
        %v2396 = vsel %vm2365, %v2363, %v2005
        %v2397 = vsel %vm2365, %v2364, %v2007
        %vm2398 = vcmask 261120
        %v2399 = vsel %vm2398, %v2366, %v2073
        %v2400 = vsel %vm2398, %v2367, %v2075
        %v2401 = vsel %vm2398, %v2368, %v2077
        %v2402 = vsel %vm2398, %v2369, %v2079
        %v2403 = vsel %vm2398, %v2370, %v2081
        %v2404 = vsel %vm2398, %v2371, %v2083
        %v2405 = vsel %vm2398, %v2372, %v2085
        %v2406 = vsel %vm2398, %v2373, %v2087
        %v2407 = vsel %vm2398, %v2374, %v2089
        %v2408 = vsel %vm2398, %v2375, %v2091
        %v2409 = vsel %vm2398, %v2376, %v2093
        %v2410 = vsel %vm2398, %v2377, %v2095
        %v2411 = vsel %vm2398, %v2378, %v2097
        %v2412 = vsel %vm2398, %v2379, %v2099
        %v2413 = vsel %vm2398, %v2380, %v2101
        %v2414 = vsel %vm2398, %v2381, %v2103
        %v2415 = vsel %vm2398, %v2382, %v2105
        %v2416 = vsel %vm2398, %v2383, %v2107
        %v2417 = vsel %vm2398, %v2384, %v2109
        %v2418 = vsel %vm2398, %v2385, %v2111
        %v2419 = vsel %vm2398, %v2386, %v2113
        %v2420 = vsel %vm2398, %v2387, %v2115
        %v2421 = vsel %vm2398, %v2388, %v2117
        %v2422 = vsel %vm2398, %v2389, %v2119
        %v2423 = vsel %vm2398, %v2390, %v2121
        %v2424 = vsel %vm2398, %v2391, %v2123
        %v2425 = vsel %vm2398, %v2392, %v2125
        %v2426 = vsel %vm2398, %v2393, %v2127
        %v2427 = vsel %vm2398, %v2394, %v2129
        %v2428 = vsel %vm2398, %v2395, %v2131
        %v2429 = vsel %vm2398, %v2396, %v2133
        %v2430 = vsel %vm2398, %v2397, %v2135
        %vm2431 = vcmask 293888
        %v2432 = vsel %vm2431, %v2399, 0.0
        %v2433 = vsel %vm2431, %v2400, 0.0
        %v2434 = vsel %vm2431, %v2401, 0.0
        %v2435 = vsel %vm2431, %v2402, 0.0
        %v2436 = vsel %vm2431, %v2403, 0.0
        %v2437 = vsel %vm2431, %v2404, 0.0
        %v2438 = vsel %vm2431, %v2405, 0.0
        %v2439 = vsel %vm2431, %v2406, 0.0
        %v2440 = vsel %vm2431, %v2407, 0.0
        %v2441 = vsel %vm2431, %v2408, 0.0
        %v2442 = vsel %vm2431, %v2409, 0.0
        %v2443 = vsel %vm2431, %v2410, 0.0
        %v2444 = vsel %vm2431, %v2411, 0.0
        %v2445 = vsel %vm2431, %v2412, 0.0
        %v2446 = vsel %vm2431, %v2413, 0.0
        %v2447 = vsel %vm2431, %v2414, 0.0
        %v2448 = vsel %vm2431, %v2415, 0.0
        %v2449 = vsel %vm2431, %v2416, 0.0
        %v2450 = vsel %vm2431, %v2417, 0.0
        %v2451 = vsel %vm2431, %v2418, 0.0
        %v2452 = vsel %vm2431, %v2419, 0.0
        %v2453 = vsel %vm2431, %v2420, 0.0
        %v2454 = vsel %vm2431, %v2421, 0.0
        %v2455 = vsel %vm2431, %v2422, 0.0
        %v2456 = vsel %vm2431, %v2423, 0.0
        %v2457 = vsel %vm2431, %v2424, 0.0
        %v2458 = vsel %vm2431, %v2425, 0.0
        %v2459 = vsel %vm2431, %v2426, 0.0
        %v2460 = vsel %vm2431, %v2427, 0.0
        %v2461 = vsel %vm2431, %v2428, 0.0
        %v2462 = vsel %vm2431, %v2429, 0.0
        %v2463 = vsel %vm2431, %v2430, 0.0
        %v2464 = vld [vmem:[%s1] sm:$0xff]
        %v2465 = vld [vmem:[%s1 + $0x8] sm:$0xff]
        %v2466 = vld [vmem:[%s1 + $0x10] sm:$0xff]
        %v2467 = vld [vmem:[%s1 + $0x18] sm:$0xff]
        %v2468 = vld [vmem:[%s1 + $0x20] sm:$0xff]
        %v2469 = vld [vmem:[%s1 + $0x28] sm:$0xff]
        %v2470 = vld [vmem:[%s1 + $0x30] sm:$0xff]
        %v2471 = vld [vmem:[%s1 + $0x38] sm:$0xff]
        %v2472 = vld [vmem:[%s1 + $0x40] sm:$0xff]
        %v2473 = vld [vmem:[%s1 + $0x48] sm:$0xff]
        %v2474 = vld [vmem:[%s1 + $0x50] sm:$0xff]
        %v2475 = vld [vmem:[%s1 + $0x58] sm:$0xff]
        %v2476 = vld [vmem:[%s1 + $0x60] sm:$0xff]
        %v2477 = vld [vmem:[%s1 + $0x68] sm:$0xff]
        %v2478 = vld [vmem:[%s1 + $0x70] sm:$0xff]
        %v2479 = vld [vmem:[%s1 + $0x78] sm:$0xff]
        %v2480 = vld [vmem:[%s2] sm:$0x1]
        %v2482 = vlaneseq
        %v2483 = vshrl.u32 %v2482, 7
        %v2484 = vsub.s32 0, %v2483
        %v2485 = vrot.slane %v2480, %v2484
        %2487 = vmatprep.subr.mxu0 0.0
        %2488 = vmatpush1.msra.mxu0 %v2479
        %2489 = vmatprep.subr.mxu0 0.0
        %2490 = vmatpush1.msra.mxu0 %v2478
        %2491 = vmatprep.subr.mxu0 0.0
        %2492 = vmatpush1.msra.mxu0 %v2477
        %2493 = vmatprep.subr.mxu0 0.0
        %2494 = vmatpush1.msra.mxu0 %v2476
        %2495 = vmatprep.subr.mxu0 0.0
        %2496 = vmatpush1.msra.mxu0 %v2475
        %2497 = vmatprep.subr.mxu0 0.0
        %2498 = vmatpush1.msra.mxu0 %v2474
        %2499 = vmatprep.subr.mxu0 0.0
        %2500 = vmatpush1.msra.mxu0 %v2473
        %2501 = vmatprep.subr.mxu0 0.0
        %2502 = vmatpush1.msra.mxu0 %v2472
        %2503 = vmatprep.subr.mxu0 0.0
        %2504 = vmatpush1.msra.mxu0 %v2471
        %2505 = vmatprep.subr.mxu0 0.0
        %2506 = vmatpush1.msra.mxu0 %v2470
        %2507 = vmatprep.subr.mxu0 0.0
        %2508 = vmatpush1.msra.mxu0 %v2469
        %2509 = vmatprep.subr.mxu0 0.0
        %2510 = vmatpush1.msra.mxu0 %v2468
        %2511 = vmatprep.subr.mxu0 0.0
        %2512 = vmatpush1.msra.mxu0 %v2467
        %2513 = vmatprep.subr.mxu0 0.0
        %2514 = vmatpush1.msra.mxu0 %v2466
        %2515 = vmatprep.subr.mxu0 0.0
        %2516 = vmatpush1.msra.mxu0 %v2465
        %2517 = vmatprep.subr.mxu0 0.0
        %2518 = vmatpush1.msra.mxu0 %v2464
        %2519 = vmatprep.subr.mxu0 0.0
        %2520 = vmatpush2.msra.mxu0 0.0
        %2521 = vmatprep.subr.mxu0 0.0
        %2522 = vmatpush2.msra.mxu0 0.0
        %2523 = vmatprep.subr.mxu0 0.0
        %2524 = vmatpush2.msra.mxu0 0.0
        %2525 = vmatprep.subr.mxu0 0.0
        %2526 = vmatpush2.msra.mxu0 0.0
        %2527 = vmatprep.subr.mxu0 0.0
        %2528 = vmatpush2.msra.mxu0 0.0
        %2529 = vmatprep.subr.mxu0 0.0
        %2530 = vmatpush2.msra.mxu0 0.0
        %2531 = vmatprep.subr.mxu0 0.0
        %2532 = vmatpush2.msra.mxu0 0.0
        %2533 = vmatprep.subr.mxu0 0.0
        %2534 = vmatpush2.msra.mxu0 0.0
        %2535 = vmatprep.subr.mxu0 0.0
        %2536 = vmatpush2.msra.mxu0 0.0
        %2537 = vmatprep.subr.mxu0 0.0
        %2538 = vmatpush2.msra.mxu0 0.0
        %2539 = vmatprep.subr.mxu0 0.0
        %2540 = vmatpush2.msra.mxu0 0.0
        %2541 = vmatprep.subr.mxu0 0.0
        %2542 = vmatpush2.msra.mxu0 0.0
        %2543 = vmatprep.subr.mxu0 0.0
        %2544 = vmatpush2.msra.mxu0 0.0
        %2545 = vmatprep.subr.mxu0 0.0
        %2546 = vmatpush2.msra.mxu0 0.0
        %2547 = vmatprep.subr.mxu0 0.0
        %2548 = vmatpush2.msra.mxu0 0.0
        %2549 = vmatprep.subr.mxu0 0.0
        %2550 = vmatpush2.msra.mxu0 0.0
        %2551 = vmatprep.mubr.f32.mxu0 0.0
        %2552 = vmatmul.mubr.f32.gmra.mxu0 %v2432
        %v2553 = vpop.f32.mrf.mxu0
        %v2554 = vadd.f32 %v2485, %v2553
        %v2555 = vpop.f32.mrf.mxu0
        %2556 = vmatprep.mubr.f32.mxu0 0.0
        %2557 = vmatmul.mubr.f32.gmra.mxu0 %v2433
        %v2558 = vpop.f32.mrf.mxu0
        %v2559 = vadd.f32 %v2485, %v2558
        %v2560 = vpop.f32.mrf.mxu0
        %2561 = vmatprep.mubr.f32.mxu0 0.0
        %2562 = vmatmul.mubr.f32.gmra.mxu0 %v2434
        %v2563 = vpop.f32.mrf.mxu0
        %v2564 = vadd.f32 %v2485, %v2563
        %v2565 = vpop.f32.mrf.mxu0
        %2566 = vmatprep.mubr.f32.mxu0 0.0
        %2567 = vmatmul.mubr.f32.gmra.mxu0 %v2435
        %v2568 = vpop.f32.mrf.mxu0
        %v2569 = vadd.f32 %v2485, %v2568
        %v2570 = vpop.f32.mrf.mxu0
        %2571 = vmatprep.mubr.f32.mxu0 0.0
        %2572 = vmatmul.mubr.f32.gmra.mxu0 %v2436
        %v2573 = vpop.f32.mrf.mxu0
        %v2574 = vadd.f32 %v2485, %v2573
        %v2575 = vpop.f32.mrf.mxu0
        %2576 = vmatprep.mubr.f32.mxu0 0.0
        %2577 = vmatmul.mubr.f32.gmra.mxu0 %v2437
        %v2578 = vpop.f32.mrf.mxu0
        %v2579 = vadd.f32 %v2485, %v2578
        %v2580 = vpop.f32.mrf.mxu0
        %2581 = vmatprep.mubr.f32.mxu0 0.0
        %2582 = vmatmul.mubr.f32.gmra.mxu0 %v2438
        %v2583 = vpop.f32.mrf.mxu0
        %v2584 = vadd.f32 %v2485, %v2583
        %v2585 = vpop.f32.mrf.mxu0
        %2586 = vmatprep.mubr.f32.mxu0 0.0
        %2587 = vmatmul.mubr.f32.gmra.mxu0 %v2439
        %v2588 = vpop.f32.mrf.mxu0
        %v2589 = vadd.f32 %v2485, %v2588
        %v2590 = vpop.f32.mrf.mxu0
        %2591 = vmatprep.mubr.f32.mxu0 0.0
        %2592 = vmatmul.mubr.f32.gmra.mxu0 %v2440
        %v2593 = vpop.f32.mrf.mxu0
        %v2594 = vadd.f32 %v2485, %v2593
        %v2595 = vpop.f32.mrf.mxu0
        %2596 = vmatprep.mubr.f32.mxu0 0.0
        %2597 = vmatmul.mubr.f32.gmra.mxu0 %v2441
        %v2598 = vpop.f32.mrf.mxu0
        %v2599 = vadd.f32 %v2485, %v2598
        %v2600 = vpop.f32.mrf.mxu0
        %2601 = vmatprep.mubr.f32.mxu0 0.0
        %2602 = vmatmul.mubr.f32.gmra.mxu0 %v2442
        %v2603 = vpop.f32.mrf.mxu0
        %v2604 = vadd.f32 %v2485, %v2603
        %v2605 = vpop.f32.mrf.mxu0
        %2606 = vmatprep.mubr.f32.mxu0 0.0
        %2607 = vmatmul.mubr.f32.gmra.mxu0 %v2443
        %v2608 = vpop.f32.mrf.mxu0
        %v2609 = vadd.f32 %v2485, %v2608
        %v2610 = vpop.f32.mrf.mxu0
        %2611 = vmatprep.mubr.f32.mxu0 0.0
        %2612 = vmatmul.mubr.f32.gmra.mxu0 %v2444
        %v2613 = vpop.f32.mrf.mxu0
        %v2614 = vadd.f32 %v2485, %v2613
        %v2615 = vpop.f32.mrf.mxu0
        %2616 = vmatprep.mubr.f32.mxu0 0.0
        %2617 = vmatmul.mubr.f32.gmra.mxu0 %v2445
        %v2618 = vpop.f32.mrf.mxu0
        %v2619 = vadd.f32 %v2485, %v2618
        %v2620 = vpop.f32.mrf.mxu0
        %2621 = vmatprep.mubr.f32.mxu0 0.0
        %2622 = vmatmul.mubr.f32.gmra.mxu0 %v2446
        %v2623 = vpop.f32.mrf.mxu0
        %v2624 = vadd.f32 %v2485, %v2623
        %v2625 = vpop.f32.mrf.mxu0
        %2626 = vmatprep.mubr.f32.mxu0 0.0
        %2627 = vmatmul.mubr.f32.gmra.mxu0 %v2447
        %v2628 = vpop.f32.mrf.mxu0
        %v2629 = vadd.f32 %v2485, %v2628
        %v2630 = vpop.f32.mrf.mxu0
        %2631 = vmatprep.mubr.f32.mxu0 0.0
        %2632 = vmatmul.mubr.f32.gmra.mxu0 %v2448
        %v2633 = vpop.f32.mrf.mxu0
        %v2634 = vadd.f32 %v2485, %v2633
        %v2635 = vpop.f32.mrf.mxu0
        %2636 = vmatprep.mubr.f32.mxu0 0.0
        %2637 = vmatmul.mubr.f32.gmra.mxu0 %v2449
        %v2638 = vpop.f32.mrf.mxu0
        %v2639 = vadd.f32 %v2485, %v2638
        %v2640 = vpop.f32.mrf.mxu0
        %2641 = vmatprep.mubr.f32.mxu0 0.0
        %2642 = vmatmul.mubr.f32.gmra.mxu0 %v2450
        %v2643 = vpop.f32.mrf.mxu0
        %v2644 = vadd.f32 %v2485, %v2643
        %v2645 = vpop.f32.mrf.mxu0
        %2646 = vmatprep.mubr.f32.mxu0 0.0
        %2647 = vmatmul.mubr.f32.gmra.mxu0 %v2451
        %v2648 = vpop.f32.mrf.mxu0
        %v2649 = vadd.f32 %v2485, %v2648
        %v2650 = vpop.f32.mrf.mxu0
        %2651 = vmatprep.mubr.f32.mxu0 0.0
        %2652 = vmatmul.mubr.f32.gmra.mxu0 %v2452
        %v2653 = vpop.f32.mrf.mxu0
        %v2654 = vadd.f32 %v2485, %v2653
        %v2655 = vpop.f32.mrf.mxu0
        %2656 = vmatprep.mubr.f32.mxu0 0.0
        %2657 = vmatmul.mubr.f32.gmra.mxu0 %v2453
        %v2658 = vpop.f32.mrf.mxu0
        %v2659 = vadd.f32 %v2485, %v2658
        %v2660 = vpop.f32.mrf.mxu0
        %2661 = vmatprep.mubr.f32.mxu0 0.0
        %2662 = vmatmul.mubr.f32.gmra.mxu0 %v2454
        %v2663 = vpop.f32.mrf.mxu0
        %v2664 = vadd.f32 %v2485, %v2663
        %v2665 = vpop.f32.mrf.mxu0
        %2666 = vmatprep.mubr.f32.mxu0 0.0
        %2667 = vmatmul.mubr.f32.gmra.mxu0 %v2455
        %v2668 = vpop.f32.mrf.mxu0
        %v2669 = vadd.f32 %v2485, %v2668
        %v2670 = vpop.f32.mrf.mxu0
        %2671 = vmatprep.mubr.f32.mxu0 0.0
        %2672 = vmatmul.mubr.f32.gmra.mxu0 %v2456
        %v2673 = vpop.f32.mrf.mxu0
        %v2674 = vadd.f32 %v2485, %v2673
        %v2675 = vpop.f32.mrf.mxu0
        %2676 = vmatprep.mubr.f32.mxu0 0.0
        %2677 = vmatmul.mubr.f32.gmra.mxu0 %v2457
        %v2678 = vpop.f32.mrf.mxu0
        %v2679 = vadd.f32 %v2485, %v2678
        %v2680 = vpop.f32.mrf.mxu0
        %2681 = vmatprep.mubr.f32.mxu0 0.0
        %2682 = vmatmul.mubr.f32.gmra.mxu0 %v2458
        %v2683 = vpop.f32.mrf.mxu0
        %v2684 = vadd.f32 %v2485, %v2683
        %v2685 = vpop.f32.mrf.mxu0
        %2686 = vmatprep.mubr.f32.mxu0 0.0
        %2687 = vmatmul.mubr.f32.gmra.mxu0 %v2459
        %v2688 = vpop.f32.mrf.mxu0
        %v2689 = vadd.f32 %v2485, %v2688
        %v2690 = vpop.f32.mrf.mxu0
        %2691 = vmatprep.mubr.f32.mxu0 0.0
        %2692 = vmatmul.mubr.f32.gmra.mxu0 %v2460
        %v2693 = vpop.f32.mrf.mxu0
        %v2694 = vadd.f32 %v2485, %v2693
        %v2695 = vpop.f32.mrf.mxu0
        %2696 = vmatprep.mubr.f32.mxu0 0.0
        %2697 = vmatmul.mubr.f32.gmra.mxu0 %v2461
        %v2698 = vpop.f32.mrf.mxu0
        %v2699 = vadd.f32 %v2485, %v2698
        %v2700 = vpop.f32.mrf.mxu0
        %2701 = vmatprep.mubr.f32.mxu0 0.0
        %2702 = vmatmul.mubr.f32.gmra.mxu0 %v2462
        %v2703 = vpop.f32.mrf.mxu0
        %v2704 = vadd.f32 %v2485, %v2703
        %v2705 = vpop.f32.mrf.mxu0
        %2706 = vmatprep.mubr.f32.mxu0 0.0
        %2707 = vmatmul.mubr.f32.gmra.mxu0 %v2463
        %v2708 = vpop.f32.mrf.mxu0
        %v2709 = vadd.f32 %v2485, %v2708
        %v2710 = vpop.f32.mrf.mxu0
        %2711 = vdwg.mxu0
        %v2712 = vmax.f32 %v2554, 0.0
        %v2713 = vmax.f32 %v2559, 0.0
        %v2714 = vmax.f32 %v2564, 0.0
        %v2715 = vmax.f32 %v2569, 0.0
        %v2716 = vmax.f32 %v2574, 0.0
        %v2717 = vmax.f32 %v2579, 0.0
        %v2718 = vmax.f32 %v2584, 0.0
        %v2719 = vmax.f32 %v2589, 0.0
        %v2720 = vmax.f32 %v2594, 0.0
        %v2721 = vmax.f32 %v2599, 0.0
        %v2722 = vmax.f32 %v2604, 0.0
        %v2723 = vmax.f32 %v2609, 0.0
        %v2724 = vmax.f32 %v2614, 0.0
        %v2725 = vmax.f32 %v2619, 0.0
        %v2726 = vmax.f32 %v2624, 0.0
        %v2727 = vmax.f32 %v2629, 0.0
        %v2728 = vmax.f32 %v2634, 0.0
        %v2729 = vmax.f32 %v2639, 0.0
        %v2730 = vmax.f32 %v2644, 0.0
        %v2731 = vmax.f32 %v2649, 0.0
        %v2732 = vmax.f32 %v2654, 0.0
        %v2733 = vmax.f32 %v2659, 0.0
        %v2734 = vmax.f32 %v2664, 0.0
        %v2735 = vmax.f32 %v2669, 0.0
        %v2736 = vmax.f32 %v2674, 0.0
        %v2737 = vmax.f32 %v2679, 0.0
        %v2738 = vmax.f32 %v2684, 0.0
        %v2739 = vmax.f32 %v2689, 0.0
        %v2740 = vmax.f32 %v2694, 0.0
        %v2741 = vmax.f32 %v2699, 0.0
        %v2742 = vmax.f32 %v2704, 0.0
        %v2743 = vmax.f32 %v2709, 0.0
        %2744 = vst.msk [vmem:[#allocation2 + $0x11] sm:$0xff] %vm223, %v2712
        %2745 = vst.msk [vmem:[#allocation2 + $0x19] sm:$0xff] %vm223, %v2713
        %2746 = vst.msk [vmem:[#allocation2 + $0x21] sm:$0xff] %vm223, %v2714
        %2747 = vst.msk [vmem:[#allocation2 + $0x29] sm:$0xff] %vm223, %v2715
        %2748 = vst.msk [vmem:[#allocation2 + $0x31] sm:$0xff] %vm223, %v2716
        %2749 = vst.msk [vmem:[#allocation2 + $0x39] sm:$0xff] %vm223, %v2717
        %2750 = vst.msk [vmem:[#allocation2 + $0x41] sm:$0xff] %vm223, %v2718
        %2751 = vst.msk [vmem:[#allocation2 + $0x49] sm:$0xff] %vm223, %v2719
        %2752 = vst.msk [vmem:[#allocation2 + $0x51] sm:$0xff] %vm223, %v2720
        %2753 = vst.msk [vmem:[#allocation2 + $0x59] sm:$0xff] %vm223, %v2721
        %2754 = vst.msk [vmem:[#allocation2 + $0x61] sm:$0xff] %vm223, %v2722
        %2755 = vst.msk [vmem:[#allocation2 + $0x69] sm:$0xff] %vm223, %v2723
        %2756 = vst.msk [vmem:[#allocation2 + $0x71] sm:$0xff] %vm223, %v2724
        %2757 = vst.msk [vmem:[#allocation2 + $0x79] sm:$0xff] %vm223, %v2725
        %2758 = vst.msk [vmem:[#allocation2 + $0x81] sm:$0xff] %vm223, %v2726
        %2759 = vst.msk [vmem:[#allocation2 + $0x89] sm:$0xff] %vm223, %v2727
        %2760 = vst.msk [vmem:[#allocation2 + $0x91] sm:$0xff] %vm223, %v2728
        %2761 = vst.msk [vmem:[#allocation2 + $0x99] sm:$0xff] %vm223, %v2729
        %2762 = vst.msk [vmem:[#allocation2 + $0xa1] sm:$0xff] %vm223, %v2730
        %2763 = vst.msk [vmem:[#allocation2 + $0xa9] sm:$0xff] %vm223, %v2731
        %2764 = vst.msk [vmem:[#allocation2 + $0xb1] sm:$0xff] %vm223, %v2732
        %2765 = vst.msk [vmem:[#allocation2 + $0xb9] sm:$0xff] %vm223, %v2733
        %2766 = vst.msk [vmem:[#allocation2 + $0xc1] sm:$0xff] %vm223, %v2734
        %2767 = vst.msk [vmem:[#allocation2 + $0xc9] sm:$0xff] %vm223, %v2735
        %2768 = vst.msk [vmem:[#allocation2 + $0xd1] sm:$0xff] %vm223, %v2736
        %2769 = vst.msk [vmem:[#allocation2 + $0xd9] sm:$0xff] %vm223, %v2737
        %2770 = vst.msk [vmem:[#allocation2 + $0xe1] sm:$0xff] %vm223, %v2738
        %2771 = vst.msk [vmem:[#allocation2 + $0xe9] sm:$0xff] %vm223, %v2739
        %2772 = vst.msk [vmem:[#allocation2 + $0xf1] sm:$0xff] %vm223, %v2740
        %2773 = vst.msk [vmem:[#allocation2 + $0xf9] sm:$0xff] %vm223, %v2741
        %2774 = vst.msk [vmem:[#allocation2 + $0x101] sm:$0xff] %vm223, %v2742
        %2775 = vst.msk [vmem:[#allocation2 + $0x109] sm:$0xff] %vm223, %v2743
        %v2776 = vld [vmem:[#allocation2] sm:$0xff]
        %v2777 = vld [vmem:[#allocation2 + $0x8] sm:$0xff]
        %v2778 = vld [vmem:[#allocation2 + $0x10] sm:$0xff]
        %v2779 = vld [vmem:[#allocation2 + $0x18] sm:$0xff]
        %v2780 = vld [vmem:[#allocation2 + $0x20] sm:$0xff]
        %v2781 = vld [vmem:[#allocation2 + $0x28] sm:$0xff]
        %v2782 = vld [vmem:[#allocation2 + $0x30] sm:$0xff]
        %v2783 = vld [vmem:[#allocation2 + $0x38] sm:$0xff]
        %v2784 = vld [vmem:[#allocation2 + $0x40] sm:$0xff]
        %v2785 = vld [vmem:[#allocation2 + $0x48] sm:$0xff]
        %v2786 = vld [vmem:[#allocation2 + $0x50] sm:$0xff]
        %v2787 = vld [vmem:[#allocation2 + $0x58] sm:$0xff]
        %v2788 = vld [vmem:[#allocation2 + $0x60] sm:$0xff]
        %v2789 = vld [vmem:[#allocation2 + $0x68] sm:$0xff]
        %v2790 = vld [vmem:[#allocation2 + $0x70] sm:$0xff]
        %v2791 = vld [vmem:[#allocation2 + $0x78] sm:$0xff]
        %v2792 = vld [vmem:[#allocation2 + $0x80] sm:$0xff]
        %v2793 = vld [vmem:[#allocation2 + $0x88] sm:$0xff]
        %v2794 = vld [vmem:[#allocation2 + $0x90] sm:$0xff]
        %v2795 = vld [vmem:[#allocation2 + $0x98] sm:$0xff]
        %v2796 = vld [vmem:[#allocation2 + $0xa0] sm:$0xff]
        %v2797 = vld [vmem:[#allocation2 + $0xa8] sm:$0xff]
        %v2798 = vld [vmem:[#allocation2 + $0xb0] sm:$0xff]
        %v2799 = vld [vmem:[#allocation2 + $0xb8] sm:$0xff]
        %v2800 = vld [vmem:[#allocation2 + $0xc0] sm:$0xff]
        %v2801 = vld [vmem:[#allocation2 + $0xc8] sm:$0xff]
        %v2802 = vld [vmem:[#allocation2 + $0xd0] sm:$0xff]
        %v2803 = vld [vmem:[#allocation2 + $0xd8] sm:$0xff]
        %v2804 = vld [vmem:[#allocation2 + $0xe0] sm:$0xff]
        %v2805 = vld [vmem:[#allocation2 + $0xe8] sm:$0xff]
        %v2806 = vld [vmem:[#allocation2 + $0xf0] sm:$0xff]
        %v2807 = vld [vmem:[#allocation2 + $0xf8] sm:$0xff]
        %v2808 = vmul.f32 %v2776, %v712
        %v2809 = vmul.f32 %v2777, %v713
        %v2810 = vmul.f32 %v2778, %v714
        %v2811 = vmul.f32 %v2779, %v715
        %v2812 = vmul.f32 %v2780, %v716
        %v2813 = vmul.f32 %v2781, %v717
        %v2814 = vmul.f32 %v2782, %v718
        %v2815 = vmul.f32 %v2783, %v719
        %v2816 = vmul.f32 %v2784, %v720
        %v2817 = vmul.f32 %v2785, %v721
        %v2818 = vmul.f32 %v2786, %v722
        %v2819 = vmul.f32 %v2787, %v723
        %v2820 = vmul.f32 %v2788, %v724
        %v2821 = vmul.f32 %v2789, %v725
        %v2822 = vmul.f32 %v2790, %v726
        %v2823 = vmul.f32 %v2791, %v727
        %v2824 = vmul.f32 %v2792, %v728
        %v2825 = vmul.f32 %v2793, %v729
        %v2826 = vmul.f32 %v2794, %v730
        %v2827 = vmul.f32 %v2795, %v731
        %v2828 = vmul.f32 %v2796, %v732
        %v2829 = vmul.f32 %v2797, %v733
        %v2830 = vmul.f32 %v2798, %v734
        %v2831 = vmul.f32 %v2799, %v735
        %v2832 = vmul.f32 %v2800, %v736
        %v2833 = vmul.f32 %v2801, %v737
        %v2834 = vmul.f32 %v2802, %v738
        %v2835 = vmul.f32 %v2803, %v739
        %v2836 = vmul.f32 %v2804, %v740
        %v2837 = vmul.f32 %v2805, %v741
        %v2838 = vmul.f32 %v2806, %v742
        %v2839 = vmul.f32 %v2807, %v743
        %v2840 = vld [vmem:[#allocation2 + $0x1] sm:$0xff]
        %v2841 = vld [vmem:[#allocation2 + $0x9] sm:$0xff]
        %v2842 = vld [vmem:[#allocation2 + $0x11] sm:$0xff]
        %v2843 = vld [vmem:[#allocation2 + $0x19] sm:$0xff]
        %v2844 = vld [vmem:[#allocation2 + $0x21] sm:$0xff]
        %v2845 = vld [vmem:[#allocation2 + $0x29] sm:$0xff]
        %v2846 = vld [vmem:[#allocation2 + $0x31] sm:$0xff]
        %v2847 = vld [vmem:[#allocation2 + $0x39] sm:$0xff]
        %v2848 = vld [vmem:[#allocation2 + $0x41] sm:$0xff]
        %v2849 = vld [vmem:[#allocation2 + $0x49] sm:$0xff]
        %v2850 = vld [vmem:[#allocation2 + $0x51] sm:$0xff]
        %v2851 = vld [vmem:[#allocation2 + $0x59] sm:$0xff]
        %v2852 = vld [vmem:[#allocation2 + $0x61] sm:$0xff]
        %v2853 = vld [vmem:[#allocation2 + $0x69] sm:$0xff]
        %v2854 = vld [vmem:[#allocation2 + $0x71] sm:$0xff]
        %v2855 = vld [vmem:[#allocation2 + $0x79] sm:$0xff]
        %v2856 = vld [vmem:[#allocation2 + $0x81] sm:$0xff]
        %v2857 = vld [vmem:[#allocation2 + $0x89] sm:$0xff]
        %v2858 = vld [vmem:[#allocation2 + $0x91] sm:$0xff]
        %v2859 = vld [vmem:[#allocation2 + $0x99] sm:$0xff]
        %v2860 = vld [vmem:[#allocation2 + $0xa1] sm:$0xff]
        %v2861 = vld [vmem:[#allocation2 + $0xa9] sm:$0xff]
        %v2862 = vld [vmem:[#allocation2 + $0xb1] sm:$0xff]
        %v2863 = vld [vmem:[#allocation2 + $0xb9] sm:$0xff]
        %v2864 = vld [vmem:[#allocation2 + $0xc1] sm:$0xff]
        %v2865 = vld [vmem:[#allocation2 + $0xc9] sm:$0xff]
        %v2866 = vld [vmem:[#allocation2 + $0xd1] sm:$0xff]
        %v2867 = vld [vmem:[#allocation2 + $0xd9] sm:$0xff]
        %v2868 = vld [vmem:[#allocation2 + $0xe1] sm:$0xff]
        %v2869 = vld [vmem:[#allocation2 + $0xe9] sm:$0xff]
        %v2870 = vld [vmem:[#allocation2 + $0xf1] sm:$0xff]
        %v2871 = vld [vmem:[#allocation2 + $0xf9] sm:$0xff]
        %v2872 = vld [vmem:[#allocation2 + $0x2] sm:$0xff]
        %v2873 = vld [vmem:[#allocation2 + $0xa] sm:$0xff]
        %v2874 = vld [vmem:[#allocation2 + $0x12] sm:$0xff]
        %v2875 = vld [vmem:[#allocation2 + $0x1a] sm:$0xff]
        %v2876 = vld [vmem:[#allocation2 + $0x22] sm:$0xff]
        %v2877 = vld [vmem:[#allocation2 + $0x2a] sm:$0xff]
        %v2878 = vld [vmem:[#allocation2 + $0x32] sm:$0xff]
        %v2879 = vld [vmem:[#allocation2 + $0x3a] sm:$0xff]
        %v2880 = vld [vmem:[#allocation2 + $0x42] sm:$0xff]
        %v2881 = vld [vmem:[#allocation2 + $0x4a] sm:$0xff]
        %v2882 = vld [vmem:[#allocation2 + $0x52] sm:$0xff]
        %v2883 = vld [vmem:[#allocation2 + $0x5a] sm:$0xff]
        %v2884 = vld [vmem:[#allocation2 + $0x62] sm:$0xff]
        %v2885 = vld [vmem:[#allocation2 + $0x6a] sm:$0xff]
        %v2886 = vld [vmem:[#allocation2 + $0x72] sm:$0xff]
        %v2887 = vld [vmem:[#allocation2 + $0x7a] sm:$0xff]
        %v2888 = vld [vmem:[#allocation2 + $0x82] sm:$0xff]
        %v2889 = vld [vmem:[#allocation2 + $0x8a] sm:$0xff]
        %v2890 = vld [vmem:[#allocation2 + $0x92] sm:$0xff]
        %v2891 = vld [vmem:[#allocation2 + $0x9a] sm:$0xff]
        %v2892 = vld [vmem:[#allocation2 + $0xa2] sm:$0xff]
        %v2893 = vld [vmem:[#allocation2 + $0xaa] sm:$0xff]
        %v2894 = vld [vmem:[#allocation2 + $0xb2] sm:$0xff]
        %v2895 = vld [vmem:[#allocation2 + $0xba] sm:$0xff]
        %v2896 = vld [vmem:[#allocation2 + $0xc2] sm:$0xff]
        %v2897 = vld [vmem:[#allocation2 + $0xca] sm:$0xff]
        %v2898 = vld [vmem:[#allocation2 + $0xd2] sm:$0xff]
        %v2899 = vld [vmem:[#allocation2 + $0xda] sm:$0xff]
        %v2900 = vld [vmem:[#allocation2 + $0xe2] sm:$0xff]
        %v2901 = vld [vmem:[#allocation2 + $0xea] sm:$0xff]
        %v2902 = vld [vmem:[#allocation2 + $0xf2] sm:$0xff]
        %v2903 = vld [vmem:[#allocation2 + $0xfa] sm:$0xff]
        %v2904 = vmul.f32 %v2872, %v808
        %v2905 = vmul.f32 %v2873, %v809
        %v2906 = vmul.f32 %v2874, %v810
        %v2907 = vmul.f32 %v2875, %v811
        %v2908 = vmul.f32 %v2876, %v812
        %v2909 = vmul.f32 %v2877, %v813
        %v2910 = vmul.f32 %v2878, %v814
        %v2911 = vmul.f32 %v2879, %v815
        %v2912 = vmul.f32 %v2880, %v816
        %v2913 = vmul.f32 %v2881, %v817
        %v2914 = vmul.f32 %v2882, %v818
        %v2915 = vmul.f32 %v2883, %v819
        %v2916 = vmul.f32 %v2884, %v820
        %v2917 = vmul.f32 %v2885, %v821
        %v2918 = vmul.f32 %v2886, %v822
        %v2919 = vmul.f32 %v2887, %v823
        %v2920 = vmul.f32 %v2888, %v824
        %v2921 = vmul.f32 %v2889, %v825
        %v2922 = vmul.f32 %v2890, %v826
        %v2923 = vmul.f32 %v2891, %v827
        %v2924 = vmul.f32 %v2892, %v828
        %v2925 = vmul.f32 %v2893, %v829
        %v2926 = vmul.f32 %v2894, %v830
        %v2927 = vmul.f32 %v2895, %v831
        %v2928 = vmul.f32 %v2896, %v832
        %v2929 = vmul.f32 %v2897, %v833
        %v2930 = vmul.f32 %v2898, %v834
        %v2931 = vmul.f32 %v2899, %v835
        %v2932 = vmul.f32 %v2900, %v836
        %v2933 = vmul.f32 %v2901, %v837
        %v2934 = vmul.f32 %v2902, %v838
        %v2935 = vmul.f32 %v2903, %v839
        %v2936 = vld [vmem:[#allocation2 + $0x100] sm:$0xff]
        %v2937 = vld [vmem:[#allocation2 + $0x108] sm:$0xff]
        %v2938 = vmul.f32 %v2778, %v712
        %v2939 = vmul.f32 %v2779, %v713
        %v2940 = vmul.f32 %v2780, %v714
        %v2941 = vmul.f32 %v2781, %v715
        %v2942 = vmul.f32 %v2782, %v716
        %v2943 = vmul.f32 %v2783, %v717
        %v2944 = vmul.f32 %v2784, %v718
        %v2945 = vmul.f32 %v2785, %v719
        %v2946 = vmul.f32 %v2786, %v720
        %v2947 = vmul.f32 %v2787, %v721
        %v2948 = vmul.f32 %v2788, %v722
        %v2949 = vmul.f32 %v2789, %v723
        %v2950 = vmul.f32 %v2790, %v724
        %v2951 = vmul.f32 %v2791, %v725
        %v2952 = vmul.f32 %v2792, %v726
        %v2953 = vmul.f32 %v2793, %v727
        %v2954 = vmul.f32 %v2794, %v728
        %v2955 = vmul.f32 %v2795, %v729
        %v2956 = vmul.f32 %v2796, %v730
        %v2957 = vmul.f32 %v2797, %v731
        %v2958 = vmul.f32 %v2798, %v732
        %v2959 = vmul.f32 %v2799, %v733
        %v2960 = vmul.f32 %v2800, %v734
        %v2961 = vmul.f32 %v2801, %v735
        %v2962 = vmul.f32 %v2802, %v736
        %v2963 = vmul.f32 %v2803, %v737
        %v2964 = vmul.f32 %v2804, %v738
        %v2965 = vmul.f32 %v2805, %v739
        %v2966 = vmul.f32 %v2806, %v740
        %v2967 = vmul.f32 %v2807, %v741
        %v2968 = vmul.f32 %v2936, %v742
        %v2969 = vmul.f32 %v2937, %v743
        %v2970 = vld [vmem:[#allocation2 + $0x101] sm:$0xff]
        %v2971 = vld [vmem:[#allocation2 + $0x109] sm:$0xff]
        %v2972 = vld [vmem:[#allocation2 + $0x102] sm:$0xff]
        %v2973 = vld [vmem:[#allocation2 + $0x10a] sm:$0xff]
        %v2974 = vmul.f32 %v2874, %v808
        %v2975 = vmul.f32 %v2875, %v809
        %v2976 = vmul.f32 %v2876, %v810
        %v2977 = vmul.f32 %v2877, %v811
        %v2978 = vmul.f32 %v2878, %v812
        %v2979 = vmul.f32 %v2879, %v813
        %v2980 = vmul.f32 %v2880, %v814
        %v2981 = vmul.f32 %v2881, %v815
        %v2982 = vmul.f32 %v2882, %v816
        %v2983 = vmul.f32 %v2883, %v817
        %v2984 = vmul.f32 %v2884, %v818
        %v2985 = vmul.f32 %v2885, %v819
        %v2986 = vmul.f32 %v2886, %v820
        %v2987 = vmul.f32 %v2887, %v821
        %v2988 = vmul.f32 %v2888, %v822
        %v2989 = vmul.f32 %v2889, %v823
        %v2990 = vmul.f32 %v2890, %v824
        %v2991 = vmul.f32 %v2891, %v825
        %v2992 = vmul.f32 %v2892, %v826
        %v2993 = vmul.f32 %v2893, %v827
        %v2994 = vmul.f32 %v2894, %v828
        %v2995 = vmul.f32 %v2895, %v829
        %v2996 = vmul.f32 %v2896, %v830
        %v2997 = vmul.f32 %v2897, %v831
        %v2998 = vmul.f32 %v2898, %v832
        %v2999 = vmul.f32 %v2899, %v833
        %v3000 = vmul.f32 %v2900, %v834
        %v3001 = vmul.f32 %v2901, %v835
        %v3002 = vmul.f32 %v2902, %v836
        %v3003 = vmul.f32 %v2903, %v837
        %v3004 = vmul.f32 %v2972, %v838
        %v3005 = vmul.f32 %v2973, %v839
        %v3006 = vld [vmem:[#allocation2 + $0x110] sm:$0xff]
        %v3007 = vld [vmem:[#allocation2 + $0x118] sm:$0xff]
        %v3008 = vmul.f32 %v2780, %v712
        %v3009 = vmul.f32 %v2781, %v713
        %v3010 = vmul.f32 %v2782, %v714
        %v3011 = vmul.f32 %v2783, %v715
        %v3012 = vmul.f32 %v2784, %v716
        %v3013 = vmul.f32 %v2785, %v717
        %v3014 = vmul.f32 %v2786, %v718
        %v3015 = vmul.f32 %v2787, %v719
        %v3016 = vmul.f32 %v2788, %v720
        %v3017 = vmul.f32 %v2789, %v721
        %v3018 = vmul.f32 %v2790, %v722
        %v3019 = vmul.f32 %v2791, %v723
        %v3020 = vmul.f32 %v2792, %v724
        %v3021 = vmul.f32 %v2793, %v725
        %v3022 = vmul.f32 %v2794, %v726
        %v3023 = vmul.f32 %v2795, %v727
        %v3024 = vmul.f32 %v2796, %v728
        %v3025 = vmul.f32 %v2797, %v729
        %v3026 = vmul.f32 %v2798, %v730
        %v3027 = vmul.f32 %v2799, %v731
        %v3028 = vmul.f32 %v2800, %v732
        %v3029 = vmul.f32 %v2801, %v733
        %v3030 = vmul.f32 %v2802, %v734
        %v3031 = vmul.f32 %v2803, %v735
        %v3032 = vmul.f32 %v2804, %v736
        %v3033 = vmul.f32 %v2805, %v737
        %v3034 = vmul.f32 %v2806, %v738
        %v3035 = vmul.f32 %v2807, %v739
        %v3036 = vmul.f32 %v2936, %v740
        %v3037 = vmul.f32 %v2937, %v741
        %v3038 = vmul.f32 %v3006, %v742
        %v3039 = vmul.f32 %v3007, %v743
        %v3040 = vld [vmem:[#allocation2 + $0x111] sm:$0xff]
        %v3041 = vld [vmem:[#allocation2 + $0x119] sm:$0xff]
        %v3042 = vld [vmem:[#allocation2 + $0x112] sm:$0xff]
        %v3043 = vld [vmem:[#allocation2 + $0x11a] sm:$0xff]
        %v3044 = vmul.f32 %v2876, %v808
        %v3045 = vmul.f32 %v2877, %v809
        %v3046 = vmul.f32 %v2878, %v810
        %v3047 = vmul.f32 %v2879, %v811
        %v3048 = vmul.f32 %v2880, %v812
        %v3049 = vmul.f32 %v2881, %v813
        %v3050 = vmul.f32 %v2882, %v814
        %v3051 = vmul.f32 %v2883, %v815
        %v3052 = vmul.f32 %v2884, %v816
        %v3053 = vmul.f32 %v2885, %v817
        %v3054 = vmul.f32 %v2886, %v818
        %v3055 = vmul.f32 %v2887, %v819
        %v3056 = vmul.f32 %v2888, %v820
        %v3057 = vmul.f32 %v2889, %v821
        %v3058 = vmul.f32 %v2890, %v822
        %v3059 = vmul.f32 %v2891, %v823
        %v3060 = vmul.f32 %v2892, %v824
        %v3061 = vmul.f32 %v2893, %v825
        %v3062 = vmul.f32 %v2894, %v826
        %v3063 = vmul.f32 %v2895, %v827
        %v3064 = vmul.f32 %v2896, %v828
        %v3065 = vmul.f32 %v2897, %v829
        %v3066 = vmul.f32 %v2898, %v830
        %v3067 = vmul.f32 %v2899, %v831
        %v3068 = vmul.f32 %v2900, %v832
        %v3069 = vmul.f32 %v2901, %v833
        %v3070 = vmul.f32 %v2902, %v834
        %v3071 = vmul.f32 %v2903, %v835
        %v3072 = vmul.f32 %v2972, %v836
        %v3073 = vmul.f32 %v2973, %v837
        %v3074 = vmul.f32 %v3042, %v838
        %v3075 = vmul.f32 %v3043, %v839
        %3108 = vrot.lane.b32.xlu0 %v2840, 4
        %v3109 = vpop.permute.xlu0 %3108
        %3110 = vrot.lane.b32.xlu0 %v2841, 4
        %v3111 = vpop.permute.xlu0 %3110
        %3112 = vrot.lane.b32.xlu0 %v2842, 4
        %v3113 = vpop.permute.xlu0 %3112
        %3114 = vrot.lane.b32.xlu0 %v2843, 4
        %v3115 = vpop.permute.xlu0 %3114
        %3116 = vrot.lane.b32.xlu0 %v2844, 4
        %v3117 = vpop.permute.xlu0 %3116
        %3118 = vrot.lane.b32.xlu0 %v2845, 4
        %v3119 = vpop.permute.xlu0 %3118
        %3120 = vrot.lane.b32.xlu0 %v2846, 4
        %v3121 = vpop.permute.xlu0 %3120
        %3122 = vrot.lane.b32.xlu0 %v2847, 4
        %v3123 = vpop.permute.xlu0 %3122
        %3124 = vrot.lane.b32.xlu0 %v2848, 4
        %v3125 = vpop.permute.xlu0 %3124
        %3126 = vrot.lane.b32.xlu0 %v2849, 4
        %v3127 = vpop.permute.xlu0 %3126
        %3128 = vrot.lane.b32.xlu0 %v2850, 4
        %v3129 = vpop.permute.xlu0 %3128
        %3130 = vrot.lane.b32.xlu0 %v2851, 4
        %v3131 = vpop.permute.xlu0 %3130
        %3132 = vrot.lane.b32.xlu0 %v2852, 4
        %v3133 = vpop.permute.xlu0 %3132
        %3134 = vrot.lane.b32.xlu0 %v2853, 4
        %v3135 = vpop.permute.xlu0 %3134
        %3136 = vrot.lane.b32.xlu0 %v2854, 4
        %v3137 = vpop.permute.xlu0 %3136
        %3138 = vrot.lane.b32.xlu0 %v2855, 4
        %v3139 = vpop.permute.xlu0 %3138
        %3140 = vrot.lane.b32.xlu0 %v2856, 4
        %v3141 = vpop.permute.xlu0 %3140
        %3142 = vrot.lane.b32.xlu0 %v2857, 4
        %v3143 = vpop.permute.xlu0 %3142
        %3144 = vrot.lane.b32.xlu0 %v2858, 4
        %v3145 = vpop.permute.xlu0 %3144
        %3146 = vrot.lane.b32.xlu0 %v2859, 4
        %v3147 = vpop.permute.xlu0 %3146
        %3148 = vrot.lane.b32.xlu0 %v2860, 4
        %v3149 = vpop.permute.xlu0 %3148
        %3150 = vrot.lane.b32.xlu0 %v2861, 4
        %v3151 = vpop.permute.xlu0 %3150
        %3152 = vrot.lane.b32.xlu0 %v2862, 4
        %v3153 = vpop.permute.xlu0 %3152
        %3154 = vrot.lane.b32.xlu0 %v2863, 4
        %v3155 = vpop.permute.xlu0 %3154
        %3156 = vrot.lane.b32.xlu0 %v2864, 4
        %v3157 = vpop.permute.xlu0 %3156
        %3158 = vrot.lane.b32.xlu0 %v2865, 4
        %v3159 = vpop.permute.xlu0 %3158
        %3160 = vrot.lane.b32.xlu0 %v2866, 4
        %v3161 = vpop.permute.xlu0 %3160
        %3162 = vrot.lane.b32.xlu0 %v2867, 4
        %v3163 = vpop.permute.xlu0 %3162
        %3164 = vrot.lane.b32.xlu0 %v2868, 4
        %v3165 = vpop.permute.xlu0 %3164
        %3166 = vrot.lane.b32.xlu0 %v2869, 4
        %v3167 = vpop.permute.xlu0 %3166
        %3168 = vrot.lane.b32.xlu0 %v2870, 4
        %v3169 = vpop.permute.xlu0 %3168
        %3170 = vrot.lane.b32.xlu0 %v2871, 4
        %v3171 = vpop.permute.xlu0 %3170
        %3236 = vrot.lane.b32.xlu0 %v2904, 8
        %v3237 = vpop.permute.xlu0 %3236
        %3238 = vrot.lane.b32.xlu0 %v2905, 8
        %v3239 = vpop.permute.xlu0 %3238
        %3240 = vrot.lane.b32.xlu0 %v2906, 8
        %v3241 = vpop.permute.xlu0 %3240
        %3242 = vrot.lane.b32.xlu0 %v2907, 8
        %v3243 = vpop.permute.xlu0 %3242
        %3244 = vrot.lane.b32.xlu0 %v2908, 8
        %v3245 = vpop.permute.xlu0 %3244
        %3246 = vrot.lane.b32.xlu0 %v2909, 8
        %v3247 = vpop.permute.xlu0 %3246
        %3248 = vrot.lane.b32.xlu0 %v2910, 8
        %v3249 = vpop.permute.xlu0 %3248
        %3250 = vrot.lane.b32.xlu0 %v2911, 8
        %v3251 = vpop.permute.xlu0 %3250
        %3252 = vrot.lane.b32.xlu0 %v2912, 8
        %v3253 = vpop.permute.xlu0 %3252
        %3254 = vrot.lane.b32.xlu0 %v2913, 8
        %v3255 = vpop.permute.xlu0 %3254
        %3256 = vrot.lane.b32.xlu0 %v2914, 8
        %v3257 = vpop.permute.xlu0 %3256
        %3258 = vrot.lane.b32.xlu0 %v2915, 8
        %v3259 = vpop.permute.xlu0 %3258
        %3260 = vrot.lane.b32.xlu0 %v2916, 8
        %v3261 = vpop.permute.xlu0 %3260
        %3262 = vrot.lane.b32.xlu0 %v2917, 8
        %v3263 = vpop.permute.xlu0 %3262
        %3264 = vrot.lane.b32.xlu0 %v2918, 8
        %v3265 = vpop.permute.xlu0 %3264
        %3266 = vrot.lane.b32.xlu0 %v2919, 8
        %v3267 = vpop.permute.xlu0 %3266
        %3268 = vrot.lane.b32.xlu0 %v2920, 8
        %v3269 = vpop.permute.xlu0 %3268
        %3270 = vrot.lane.b32.xlu0 %v2921, 8
        %v3271 = vpop.permute.xlu0 %3270
        %3272 = vrot.lane.b32.xlu0 %v2922, 8
        %v3273 = vpop.permute.xlu0 %3272
        %3274 = vrot.lane.b32.xlu0 %v2923, 8
        %v3275 = vpop.permute.xlu0 %3274
        %3276 = vrot.lane.b32.xlu0 %v2924, 8
        %v3277 = vpop.permute.xlu0 %3276
        %3278 = vrot.lane.b32.xlu0 %v2925, 8
        %v3279 = vpop.permute.xlu0 %3278
        %3280 = vrot.lane.b32.xlu0 %v2926, 8
        %v3281 = vpop.permute.xlu0 %3280
        %3282 = vrot.lane.b32.xlu0 %v2927, 8
        %v3283 = vpop.permute.xlu0 %3282
        %3284 = vrot.lane.b32.xlu0 %v2928, 8
        %v3285 = vpop.permute.xlu0 %3284
        %3286 = vrot.lane.b32.xlu0 %v2929, 8
        %v3287 = vpop.permute.xlu0 %3286
        %3288 = vrot.lane.b32.xlu0 %v2930, 8
        %v3289 = vpop.permute.xlu0 %3288
        %3290 = vrot.lane.b32.xlu0 %v2931, 8
        %v3291 = vpop.permute.xlu0 %3290
        %3292 = vrot.lane.b32.xlu0 %v2932, 8
        %v3293 = vpop.permute.xlu0 %3292
        %3294 = vrot.lane.b32.xlu0 %v2933, 8
        %v3295 = vpop.permute.xlu0 %3294
        %3296 = vrot.lane.b32.xlu0 %v2934, 8
        %v3297 = vpop.permute.xlu0 %3296
        %3298 = vrot.lane.b32.xlu0 %v2935, 8
        %v3299 = vpop.permute.xlu0 %3298
        %3364 = vrot.lane.b32.xlu0 %v2938, 12
        %v3365 = vpop.permute.xlu0 %3364
        %3366 = vrot.lane.b32.xlu0 %v2939, 12
        %v3367 = vpop.permute.xlu0 %3366
        %3368 = vrot.lane.b32.xlu0 %v2940, 12
        %v3369 = vpop.permute.xlu0 %3368
        %3370 = vrot.lane.b32.xlu0 %v2941, 12
        %v3371 = vpop.permute.xlu0 %3370
        %3372 = vrot.lane.b32.xlu0 %v2942, 12
        %v3373 = vpop.permute.xlu0 %3372
        %3374 = vrot.lane.b32.xlu0 %v2943, 12
        %v3375 = vpop.permute.xlu0 %3374
        %3376 = vrot.lane.b32.xlu0 %v2944, 12
        %v3377 = vpop.permute.xlu0 %3376
        %3378 = vrot.lane.b32.xlu0 %v2945, 12
        %v3379 = vpop.permute.xlu0 %3378
        %3380 = vrot.lane.b32.xlu0 %v2946, 12
        %v3381 = vpop.permute.xlu0 %3380
        %3382 = vrot.lane.b32.xlu0 %v2947, 12
        %v3383 = vpop.permute.xlu0 %3382
        %3384 = vrot.lane.b32.xlu0 %v2948, 12
        %v3385 = vpop.permute.xlu0 %3384
        %3386 = vrot.lane.b32.xlu0 %v2949, 12
        %v3387 = vpop.permute.xlu0 %3386
        %3388 = vrot.lane.b32.xlu0 %v2950, 12
        %v3389 = vpop.permute.xlu0 %3388
        %3390 = vrot.lane.b32.xlu0 %v2951, 12
        %v3391 = vpop.permute.xlu0 %3390
        %3392 = vrot.lane.b32.xlu0 %v2952, 12
        %v3393 = vpop.permute.xlu0 %3392
        %3394 = vrot.lane.b32.xlu0 %v2953, 12
        %v3395 = vpop.permute.xlu0 %3394
        %3396 = vrot.lane.b32.xlu0 %v2954, 12
        %v3397 = vpop.permute.xlu0 %3396
        %3398 = vrot.lane.b32.xlu0 %v2955, 12
        %v3399 = vpop.permute.xlu0 %3398
        %3400 = vrot.lane.b32.xlu0 %v2956, 12
        %v3401 = vpop.permute.xlu0 %3400
        %3402 = vrot.lane.b32.xlu0 %v2957, 12
        %v3403 = vpop.permute.xlu0 %3402
        %3404 = vrot.lane.b32.xlu0 %v2958, 12
        %v3405 = vpop.permute.xlu0 %3404
        %3406 = vrot.lane.b32.xlu0 %v2959, 12
        %v3407 = vpop.permute.xlu0 %3406
        %3408 = vrot.lane.b32.xlu0 %v2960, 12
        %v3409 = vpop.permute.xlu0 %3408
        %3410 = vrot.lane.b32.xlu0 %v2961, 12
        %v3411 = vpop.permute.xlu0 %3410
        %3412 = vrot.lane.b32.xlu0 %v2962, 12
        %v3413 = vpop.permute.xlu0 %3412
        %3414 = vrot.lane.b32.xlu0 %v2963, 12
        %v3415 = vpop.permute.xlu0 %3414
        %3416 = vrot.lane.b32.xlu0 %v2964, 12
        %v3417 = vpop.permute.xlu0 %3416
        %3418 = vrot.lane.b32.xlu0 %v2965, 12
        %v3419 = vpop.permute.xlu0 %3418
        %3420 = vrot.lane.b32.xlu0 %v2966, 12
        %v3421 = vpop.permute.xlu0 %3420
        %3422 = vrot.lane.b32.xlu0 %v2967, 12
        %v3423 = vpop.permute.xlu0 %3422
        %3424 = vrot.lane.b32.xlu0 %v2968, 12
        %v3425 = vpop.permute.xlu0 %3424
        %3426 = vrot.lane.b32.xlu0 %v2969, 12
        %v3427 = vpop.permute.xlu0 %3426
        %3462 = vrot.lane.b32.xlu0 %v2842, 16
        %v3463 = vpop.permute.xlu0 %3462
        %3464 = vrot.lane.b32.xlu0 %v2843, 16
        %v3465 = vpop.permute.xlu0 %3464
        %3466 = vrot.lane.b32.xlu0 %v2844, 16
        %v3467 = vpop.permute.xlu0 %3466
        %3468 = vrot.lane.b32.xlu0 %v2845, 16
        %v3469 = vpop.permute.xlu0 %3468
        %3470 = vrot.lane.b32.xlu0 %v2846, 16
        %v3471 = vpop.permute.xlu0 %3470
        %3472 = vrot.lane.b32.xlu0 %v2847, 16
        %v3473 = vpop.permute.xlu0 %3472
        %3474 = vrot.lane.b32.xlu0 %v2848, 16
        %v3475 = vpop.permute.xlu0 %3474
        %3476 = vrot.lane.b32.xlu0 %v2849, 16
        %v3477 = vpop.permute.xlu0 %3476
        %3478 = vrot.lane.b32.xlu0 %v2850, 16
        %v3479 = vpop.permute.xlu0 %3478
        %3480 = vrot.lane.b32.xlu0 %v2851, 16
        %v3481 = vpop.permute.xlu0 %3480
        %3482 = vrot.lane.b32.xlu0 %v2852, 16
        %v3483 = vpop.permute.xlu0 %3482
        %3484 = vrot.lane.b32.xlu0 %v2853, 16
        %v3485 = vpop.permute.xlu0 %3484
        %3486 = vrot.lane.b32.xlu0 %v2854, 16
        %v3487 = vpop.permute.xlu0 %3486
        %3488 = vrot.lane.b32.xlu0 %v2855, 16
        %v3489 = vpop.permute.xlu0 %3488
        %3490 = vrot.lane.b32.xlu0 %v2856, 16
        %v3491 = vpop.permute.xlu0 %3490
        %3492 = vrot.lane.b32.xlu0 %v2857, 16
        %v3493 = vpop.permute.xlu0 %3492
        %3494 = vrot.lane.b32.xlu0 %v2858, 16
        %v3495 = vpop.permute.xlu0 %3494
        %3496 = vrot.lane.b32.xlu0 %v2859, 16
        %v3497 = vpop.permute.xlu0 %3496
        %3498 = vrot.lane.b32.xlu0 %v2860, 16
        %v3499 = vpop.permute.xlu0 %3498
        %3500 = vrot.lane.b32.xlu0 %v2861, 16
        %v3501 = vpop.permute.xlu0 %3500
        %3502 = vrot.lane.b32.xlu0 %v2862, 16
        %v3503 = vpop.permute.xlu0 %3502
        %3504 = vrot.lane.b32.xlu0 %v2863, 16
        %v3505 = vpop.permute.xlu0 %3504
        %3506 = vrot.lane.b32.xlu0 %v2864, 16
        %v3507 = vpop.permute.xlu0 %3506
        %3508 = vrot.lane.b32.xlu0 %v2865, 16
        %v3509 = vpop.permute.xlu0 %3508
        %3510 = vrot.lane.b32.xlu0 %v2866, 16
        %v3511 = vpop.permute.xlu0 %3510
        %3512 = vrot.lane.b32.xlu0 %v2867, 16
        %v3513 = vpop.permute.xlu0 %3512
        %3514 = vrot.lane.b32.xlu0 %v2868, 16
        %v3515 = vpop.permute.xlu0 %3514
        %3516 = vrot.lane.b32.xlu0 %v2869, 16
        %v3517 = vpop.permute.xlu0 %3516
        %3518 = vrot.lane.b32.xlu0 %v2870, 16
        %v3519 = vpop.permute.xlu0 %3518
        %3520 = vrot.lane.b32.xlu0 %v2871, 16
        %v3521 = vpop.permute.xlu0 %3520
        %3522 = vrot.lane.b32.xlu0 %v2970, 16
        %v3523 = vpop.permute.xlu0 %3522
        %3524 = vrot.lane.b32.xlu0 %v2971, 16
        %v3525 = vpop.permute.xlu0 %3524
        %3590 = vrot.lane.b32.xlu0 %v2974, 20
        %v3591 = vpop.permute.xlu0 %3590
        %3592 = vrot.lane.b32.xlu0 %v2975, 20
        %v3593 = vpop.permute.xlu0 %3592
        %3594 = vrot.lane.b32.xlu0 %v2976, 20
        %v3595 = vpop.permute.xlu0 %3594
        %3596 = vrot.lane.b32.xlu0 %v2977, 20
        %v3597 = vpop.permute.xlu0 %3596
        %3598 = vrot.lane.b32.xlu0 %v2978, 20
        %v3599 = vpop.permute.xlu0 %3598
        %3600 = vrot.lane.b32.xlu0 %v2979, 20
        %v3601 = vpop.permute.xlu0 %3600
        %3602 = vrot.lane.b32.xlu0 %v2980, 20
        %v3603 = vpop.permute.xlu0 %3602
        %3604 = vrot.lane.b32.xlu0 %v2981, 20
        %v3605 = vpop.permute.xlu0 %3604
        %3606 = vrot.lane.b32.xlu0 %v2982, 20
        %v3607 = vpop.permute.xlu0 %3606
        %3608 = vrot.lane.b32.xlu0 %v2983, 20
        %v3609 = vpop.permute.xlu0 %3608
        %3610 = vrot.lane.b32.xlu0 %v2984, 20
        %v3611 = vpop.permute.xlu0 %3610
        %3612 = vrot.lane.b32.xlu0 %v2985, 20
        %v3613 = vpop.permute.xlu0 %3612
        %3614 = vrot.lane.b32.xlu0 %v2986, 20
        %v3615 = vpop.permute.xlu0 %3614
        %3616 = vrot.lane.b32.xlu0 %v2987, 20
        %v3617 = vpop.permute.xlu0 %3616
        %3618 = vrot.lane.b32.xlu0 %v2988, 20
        %v3619 = vpop.permute.xlu0 %3618
        %3620 = vrot.lane.b32.xlu0 %v2989, 20
        %v3621 = vpop.permute.xlu0 %3620
        %3622 = vrot.lane.b32.xlu0 %v2990, 20
        %v3623 = vpop.permute.xlu0 %3622
        %3624 = vrot.lane.b32.xlu0 %v2991, 20
        %v3625 = vpop.permute.xlu0 %3624
        %3626 = vrot.lane.b32.xlu0 %v2992, 20
        %v3627 = vpop.permute.xlu0 %3626
        %3628 = vrot.lane.b32.xlu0 %v2993, 20
        %v3629 = vpop.permute.xlu0 %3628
        %3630 = vrot.lane.b32.xlu0 %v2994, 20
        %v3631 = vpop.permute.xlu0 %3630
        %3632 = vrot.lane.b32.xlu0 %v2995, 20
        %v3633 = vpop.permute.xlu0 %3632
        %3634 = vrot.lane.b32.xlu0 %v2996, 20
        %v3635 = vpop.permute.xlu0 %3634
        %3636 = vrot.lane.b32.xlu0 %v2997, 20
        %v3637 = vpop.permute.xlu0 %3636
        %3638 = vrot.lane.b32.xlu0 %v2998, 20
        %v3639 = vpop.permute.xlu0 %3638
        %3640 = vrot.lane.b32.xlu0 %v2999, 20
        %v3641 = vpop.permute.xlu0 %3640
        %3642 = vrot.lane.b32.xlu0 %v3000, 20
        %v3643 = vpop.permute.xlu0 %3642
        %3644 = vrot.lane.b32.xlu0 %v3001, 20
        %v3645 = vpop.permute.xlu0 %3644
        %3646 = vrot.lane.b32.xlu0 %v3002, 20
        %v3647 = vpop.permute.xlu0 %3646
        %3648 = vrot.lane.b32.xlu0 %v3003, 20
        %v3649 = vpop.permute.xlu0 %3648
        %3650 = vrot.lane.b32.xlu0 %v3004, 20
        %v3651 = vpop.permute.xlu0 %3650
        %3652 = vrot.lane.b32.xlu0 %v3005, 20
        %v3653 = vpop.permute.xlu0 %3652
        %3718 = vrot.lane.b32.xlu0 %v3008, 24
        %v3719 = vpop.permute.xlu0 %3718
        %3720 = vrot.lane.b32.xlu0 %v3009, 24
        %v3721 = vpop.permute.xlu0 %3720
        %3722 = vrot.lane.b32.xlu0 %v3010, 24
        %v3723 = vpop.permute.xlu0 %3722
        %3724 = vrot.lane.b32.xlu0 %v3011, 24
        %v3725 = vpop.permute.xlu0 %3724
        %3726 = vrot.lane.b32.xlu0 %v3012, 24
        %v3727 = vpop.permute.xlu0 %3726
        %3728 = vrot.lane.b32.xlu0 %v3013, 24
        %v3729 = vpop.permute.xlu0 %3728
        %3730 = vrot.lane.b32.xlu0 %v3014, 24
        %v3731 = vpop.permute.xlu0 %3730
        %3732 = vrot.lane.b32.xlu0 %v3015, 24
        %v3733 = vpop.permute.xlu0 %3732
        %3734 = vrot.lane.b32.xlu0 %v3016, 24
        %v3735 = vpop.permute.xlu0 %3734
        %3736 = vrot.lane.b32.xlu0 %v3017, 24
        %v3737 = vpop.permute.xlu0 %3736
        %3738 = vrot.lane.b32.xlu0 %v3018, 24
        %v3739 = vpop.permute.xlu0 %3738
        %3740 = vrot.lane.b32.xlu0 %v3019, 24
        %v3741 = vpop.permute.xlu0 %3740
        %3742 = vrot.lane.b32.xlu0 %v3020, 24
        %v3743 = vpop.permute.xlu0 %3742
        %3744 = vrot.lane.b32.xlu0 %v3021, 24
        %v3745 = vpop.permute.xlu0 %3744
        %3746 = vrot.lane.b32.xlu0 %v3022, 24
        %v3747 = vpop.permute.xlu0 %3746
        %3748 = vrot.lane.b32.xlu0 %v3023, 24
        %v3749 = vpop.permute.xlu0 %3748
        %3750 = vrot.lane.b32.xlu0 %v3024, 24
        %v3751 = vpop.permute.xlu0 %3750
        %3752 = vrot.lane.b32.xlu0 %v3025, 24
        %v3753 = vpop.permute.xlu0 %3752
        %3754 = vrot.lane.b32.xlu0 %v3026, 24
        %v3755 = vpop.permute.xlu0 %3754
        %3756 = vrot.lane.b32.xlu0 %v3027, 24
        %v3757 = vpop.permute.xlu0 %3756
        %3758 = vrot.lane.b32.xlu0 %v3028, 24
        %v3759 = vpop.permute.xlu0 %3758
        %3760 = vrot.lane.b32.xlu0 %v3029, 24
        %v3761 = vpop.permute.xlu0 %3760
        %3762 = vrot.lane.b32.xlu0 %v3030, 24
        %v3763 = vpop.permute.xlu0 %3762
        %3764 = vrot.lane.b32.xlu0 %v3031, 24
        %v3765 = vpop.permute.xlu0 %3764
        %3766 = vrot.lane.b32.xlu0 %v3032, 24
        %v3767 = vpop.permute.xlu0 %3766
        %3768 = vrot.lane.b32.xlu0 %v3033, 24
        %v3769 = vpop.permute.xlu0 %3768
        %3770 = vrot.lane.b32.xlu0 %v3034, 24
        %v3771 = vpop.permute.xlu0 %3770
        %3772 = vrot.lane.b32.xlu0 %v3035, 24
        %v3773 = vpop.permute.xlu0 %3772
        %3774 = vrot.lane.b32.xlu0 %v3036, 24
        %v3775 = vpop.permute.xlu0 %3774
        %3776 = vrot.lane.b32.xlu0 %v3037, 24
        %v3777 = vpop.permute.xlu0 %3776
        %3778 = vrot.lane.b32.xlu0 %v3038, 24
        %v3779 = vpop.permute.xlu0 %3778
        %3780 = vrot.lane.b32.xlu0 %v3039, 24
        %v3781 = vpop.permute.xlu0 %3780
        %3816 = vrot.lane.b32.xlu0 %v2844, 28
        %v3817 = vpop.permute.xlu0 %3816
        %3818 = vrot.lane.b32.xlu0 %v2845, 28
        %v3819 = vpop.permute.xlu0 %3818
        %3820 = vrot.lane.b32.xlu0 %v2846, 28
        %v3821 = vpop.permute.xlu0 %3820
        %3822 = vrot.lane.b32.xlu0 %v2847, 28
        %v3823 = vpop.permute.xlu0 %3822
        %3824 = vrot.lane.b32.xlu0 %v2848, 28
        %v3825 = vpop.permute.xlu0 %3824
        %3826 = vrot.lane.b32.xlu0 %v2849, 28
        %v3827 = vpop.permute.xlu0 %3826
        %3828 = vrot.lane.b32.xlu0 %v2850, 28
        %v3829 = vpop.permute.xlu0 %3828
        %3830 = vrot.lane.b32.xlu0 %v2851, 28
        %v3831 = vpop.permute.xlu0 %3830
        %3832 = vrot.lane.b32.xlu0 %v2852, 28
        %v3833 = vpop.permute.xlu0 %3832
        %3834 = vrot.lane.b32.xlu0 %v2853, 28
        %v3835 = vpop.permute.xlu0 %3834
        %3836 = vrot.lane.b32.xlu0 %v2854, 28
        %v3837 = vpop.permute.xlu0 %3836
        %3838 = vrot.lane.b32.xlu0 %v2855, 28
        %v3839 = vpop.permute.xlu0 %3838
        %3840 = vrot.lane.b32.xlu0 %v2856, 28
        %v3841 = vpop.permute.xlu0 %3840
        %3842 = vrot.lane.b32.xlu0 %v2857, 28
        %v3843 = vpop.permute.xlu0 %3842
        %3844 = vrot.lane.b32.xlu0 %v2858, 28
        %v3845 = vpop.permute.xlu0 %3844
        %3846 = vrot.lane.b32.xlu0 %v2859, 28
        %v3847 = vpop.permute.xlu0 %3846
        %3848 = vrot.lane.b32.xlu0 %v2860, 28
        %v3849 = vpop.permute.xlu0 %3848
        %3850 = vrot.lane.b32.xlu0 %v2861, 28
        %v3851 = vpop.permute.xlu0 %3850
        %3852 = vrot.lane.b32.xlu0 %v2862, 28
        %v3853 = vpop.permute.xlu0 %3852
        %3854 = vrot.lane.b32.xlu0 %v2863, 28
        %v3855 = vpop.permute.xlu0 %3854
        %3856 = vrot.lane.b32.xlu0 %v2864, 28
        %v3857 = vpop.permute.xlu0 %3856
        %3858 = vrot.lane.b32.xlu0 %v2865, 28
        %v3859 = vpop.permute.xlu0 %3858
        %3860 = vrot.lane.b32.xlu0 %v2866, 28
        %v3861 = vpop.permute.xlu0 %3860
        %3862 = vrot.lane.b32.xlu0 %v2867, 28
        %v3863 = vpop.permute.xlu0 %3862
        %3864 = vrot.lane.b32.xlu0 %v2868, 28
        %v3865 = vpop.permute.xlu0 %3864
        %3866 = vrot.lane.b32.xlu0 %v2869, 28
        %v3867 = vpop.permute.xlu0 %3866
        %3868 = vrot.lane.b32.xlu0 %v2870, 28
        %v3869 = vpop.permute.xlu0 %3868
        %3870 = vrot.lane.b32.xlu0 %v2871, 28
        %v3871 = vpop.permute.xlu0 %3870
        %3872 = vrot.lane.b32.xlu0 %v2970, 28
        %v3873 = vpop.permute.xlu0 %3872
        %3874 = vrot.lane.b32.xlu0 %v2971, 28
        %v3875 = vpop.permute.xlu0 %3874
        %3876 = vrot.lane.b32.xlu0 %v3040, 28
        %v3877 = vpop.permute.xlu0 %3876
        %3878 = vrot.lane.b32.xlu0 %v3041, 28
        %v3879 = vpop.permute.xlu0 %3878
        %3944 = vrot.lane.b32.xlu0 %v3044, 32
        %v3945 = vpop.permute.xlu0 %3944
        %3946 = vrot.lane.b32.xlu0 %v3045, 32
        %v3947 = vpop.permute.xlu0 %3946
        %3948 = vrot.lane.b32.xlu0 %v3046, 32
        %v3949 = vpop.permute.xlu0 %3948
        %3950 = vrot.lane.b32.xlu0 %v3047, 32
        %v3951 = vpop.permute.xlu0 %3950
        %3952 = vrot.lane.b32.xlu0 %v3048, 32
        %v3953 = vpop.permute.xlu0 %3952
        %3954 = vrot.lane.b32.xlu0 %v3049, 32
        %v3955 = vpop.permute.xlu0 %3954
        %3956 = vrot.lane.b32.xlu0 %v3050, 32
        %v3957 = vpop.permute.xlu0 %3956
        %3958 = vrot.lane.b32.xlu0 %v3051, 32
        %v3959 = vpop.permute.xlu0 %3958
        %3960 = vrot.lane.b32.xlu0 %v3052, 32
        %v3961 = vpop.permute.xlu0 %3960
        %3962 = vrot.lane.b32.xlu0 %v3053, 32
        %v3963 = vpop.permute.xlu0 %3962
        %3964 = vrot.lane.b32.xlu0 %v3054, 32
        %v3965 = vpop.permute.xlu0 %3964
        %3966 = vrot.lane.b32.xlu0 %v3055, 32
        %v3967 = vpop.permute.xlu0 %3966
        %3968 = vrot.lane.b32.xlu0 %v3056, 32
        %v3969 = vpop.permute.xlu0 %3968
        %3970 = vrot.lane.b32.xlu0 %v3057, 32
        %v3971 = vpop.permute.xlu0 %3970
        %3972 = vrot.lane.b32.xlu0 %v3058, 32
        %v3973 = vpop.permute.xlu0 %3972
        %3974 = vrot.lane.b32.xlu0 %v3059, 32
        %v3975 = vpop.permute.xlu0 %3974
        %3976 = vrot.lane.b32.xlu0 %v3060, 32
        %v3977 = vpop.permute.xlu0 %3976
        %3978 = vrot.lane.b32.xlu0 %v3061, 32
        %v3979 = vpop.permute.xlu0 %3978
        %3980 = vrot.lane.b32.xlu0 %v3062, 32
        %v3981 = vpop.permute.xlu0 %3980
        %3982 = vrot.lane.b32.xlu0 %v3063, 32
        %v3983 = vpop.permute.xlu0 %3982
        %3984 = vrot.lane.b32.xlu0 %v3064, 32
        %v3985 = vpop.permute.xlu0 %3984
        %3986 = vrot.lane.b32.xlu0 %v3065, 32
        %v3987 = vpop.permute.xlu0 %3986
        %3988 = vrot.lane.b32.xlu0 %v3066, 32
        %v3989 = vpop.permute.xlu0 %3988
        %3990 = vrot.lane.b32.xlu0 %v3067, 32
        %v3991 = vpop.permute.xlu0 %3990
        %3992 = vrot.lane.b32.xlu0 %v3068, 32
        %v3993 = vpop.permute.xlu0 %3992
        %3994 = vrot.lane.b32.xlu0 %v3069, 32
        %v3995 = vpop.permute.xlu0 %3994
        %3996 = vrot.lane.b32.xlu0 %v3070, 32
        %v3997 = vpop.permute.xlu0 %3996
        %3998 = vrot.lane.b32.xlu0 %v3071, 32
        %v3999 = vpop.permute.xlu0 %3998
        %4000 = vrot.lane.b32.xlu0 %v3072, 32
        %v4001 = vpop.permute.xlu0 %4000
        %4002 = vrot.lane.b32.xlu0 %v3073, 32
        %v4003 = vpop.permute.xlu0 %4002
        %4004 = vrot.lane.b32.xlu0 %v3074, 32
        %v4005 = vpop.permute.xlu0 %4004
        %4006 = vrot.lane.b32.xlu0 %v3075, 32
        %v4007 = vpop.permute.xlu0 %4006
        %v4040 = vsel %vm223, %v2808, %v3109
        %v4041 = vsel %vm223, %v2809, %v3111
        %v4042 = vsel %vm223, %v2810, %v3113
        %v4043 = vsel %vm223, %v2811, %v3115
        %v4044 = vsel %vm223, %v2812, %v3117
        %v4045 = vsel %vm223, %v2813, %v3119
        %v4046 = vsel %vm223, %v2814, %v3121
        %v4047 = vsel %vm223, %v2815, %v3123
        %v4048 = vsel %vm223, %v2816, %v3125
        %v4049 = vsel %vm223, %v2817, %v3127
        %v4050 = vsel %vm223, %v2818, %v3129
        %v4051 = vsel %vm223, %v2819, %v3131
        %v4052 = vsel %vm223, %v2820, %v3133
        %v4053 = vsel %vm223, %v2821, %v3135
        %v4054 = vsel %vm223, %v2822, %v3137
        %v4055 = vsel %vm223, %v2823, %v3139
        %v4056 = vsel %vm223, %v2824, %v3141
        %v4057 = vsel %vm223, %v2825, %v3143
        %v4058 = vsel %vm223, %v2826, %v3145
        %v4059 = vsel %vm223, %v2827, %v3147
        %v4060 = vsel %vm223, %v2828, %v3149
        %v4061 = vsel %vm223, %v2829, %v3151
        %v4062 = vsel %vm223, %v2830, %v3153
        %v4063 = vsel %vm223, %v2831, %v3155
        %v4064 = vsel %vm223, %v2832, %v3157
        %v4065 = vsel %vm223, %v2833, %v3159
        %v4066 = vsel %vm223, %v2834, %v3161
        %v4067 = vsel %vm223, %v2835, %v3163
        %v4068 = vsel %vm223, %v2836, %v3165
        %v4069 = vsel %vm223, %v2837, %v3167
        %v4070 = vsel %vm223, %v2838, %v3169
        %v4071 = vsel %vm223, %v2839, %v3171
        %v4072 = vsel %vm2200, %v4040, %v3237
        %v4073 = vsel %vm2200, %v4041, %v3239
        %v4074 = vsel %vm2200, %v4042, %v3241
        %v4075 = vsel %vm2200, %v4043, %v3243
        %v4076 = vsel %vm2200, %v4044, %v3245
        %v4077 = vsel %vm2200, %v4045, %v3247
        %v4078 = vsel %vm2200, %v4046, %v3249
        %v4079 = vsel %vm2200, %v4047, %v3251
        %v4080 = vsel %vm2200, %v4048, %v3253
        %v4081 = vsel %vm2200, %v4049, %v3255
        %v4082 = vsel %vm2200, %v4050, %v3257
        %v4083 = vsel %vm2200, %v4051, %v3259
        %v4084 = vsel %vm2200, %v4052, %v3261
        %v4085 = vsel %vm2200, %v4053, %v3263
        %v4086 = vsel %vm2200, %v4054, %v3265
        %v4087 = vsel %vm2200, %v4055, %v3267
        %v4088 = vsel %vm2200, %v4056, %v3269
        %v4089 = vsel %vm2200, %v4057, %v3271
        %v4090 = vsel %vm2200, %v4058, %v3273
        %v4091 = vsel %vm2200, %v4059, %v3275
        %v4092 = vsel %vm2200, %v4060, %v3277
        %v4093 = vsel %vm2200, %v4061, %v3279
        %v4094 = vsel %vm2200, %v4062, %v3281
        %v4095 = vsel %vm2200, %v4063, %v3283
        %v4096 = vsel %vm2200, %v4064, %v3285
        %v4097 = vsel %vm2200, %v4065, %v3287
        %v4098 = vsel %vm2200, %v4066, %v3289
        %v4099 = vsel %vm2200, %v4067, %v3291
        %v4100 = vsel %vm2200, %v4068, %v3293
        %v4101 = vsel %vm2200, %v4069, %v3295
        %v4102 = vsel %vm2200, %v4070, %v3297
        %v4103 = vsel %vm2200, %v4071, %v3299
        %v4104 = vsel %vm2233, %v4072, %v3365
        %v4105 = vsel %vm2233, %v4073, %v3367
        %v4106 = vsel %vm2233, %v4074, %v3369
        %v4107 = vsel %vm2233, %v4075, %v3371
        %v4108 = vsel %vm2233, %v4076, %v3373
        %v4109 = vsel %vm2233, %v4077, %v3375
        %v4110 = vsel %vm2233, %v4078, %v3377
        %v4111 = vsel %vm2233, %v4079, %v3379
        %v4112 = vsel %vm2233, %v4080, %v3381
        %v4113 = vsel %vm2233, %v4081, %v3383
        %v4114 = vsel %vm2233, %v4082, %v3385
        %v4115 = vsel %vm2233, %v4083, %v3387
        %v4116 = vsel %vm2233, %v4084, %v3389
        %v4117 = vsel %vm2233, %v4085, %v3391
        %v4118 = vsel %vm2233, %v4086, %v3393
        %v4119 = vsel %vm2233, %v4087, %v3395
        %v4120 = vsel %vm2233, %v4088, %v3397
        %v4121 = vsel %vm2233, %v4089, %v3399
        %v4122 = vsel %vm2233, %v4090, %v3401
        %v4123 = vsel %vm2233, %v4091, %v3403
        %v4124 = vsel %vm2233, %v4092, %v3405
        %v4125 = vsel %vm2233, %v4093, %v3407
        %v4126 = vsel %vm2233, %v4094, %v3409
        %v4127 = vsel %vm2233, %v4095, %v3411
        %v4128 = vsel %vm2233, %v4096, %v3413
        %v4129 = vsel %vm2233, %v4097, %v3415
        %v4130 = vsel %vm2233, %v4098, %v3417
        %v4131 = vsel %vm2233, %v4099, %v3419
        %v4132 = vsel %vm2233, %v4100, %v3421
        %v4133 = vsel %vm2233, %v4101, %v3423
        %v4134 = vsel %vm2233, %v4102, %v3425
        %v4135 = vsel %vm2233, %v4103, %v3427
        %v4136 = vsel %vm2266, %v4104, %v3463
        %v4137 = vsel %vm2266, %v4105, %v3465
        %v4138 = vsel %vm2266, %v4106, %v3467
        %v4139 = vsel %vm2266, %v4107, %v3469
        %v4140 = vsel %vm2266, %v4108, %v3471
        %v4141 = vsel %vm2266, %v4109, %v3473
        %v4142 = vsel %vm2266, %v4110, %v3475
        %v4143 = vsel %vm2266, %v4111, %v3477
        %v4144 = vsel %vm2266, %v4112, %v3479
        %v4145 = vsel %vm2266, %v4113, %v3481
        %v4146 = vsel %vm2266, %v4114, %v3483
        %v4147 = vsel %vm2266, %v4115, %v3485
        %v4148 = vsel %vm2266, %v4116, %v3487
        %v4149 = vsel %vm2266, %v4117, %v3489
        %v4150 = vsel %vm2266, %v4118, %v3491
        %v4151 = vsel %vm2266, %v4119, %v3493
        %v4152 = vsel %vm2266, %v4120, %v3495
        %v4153 = vsel %vm2266, %v4121, %v3497
        %v4154 = vsel %vm2266, %v4122, %v3499
        %v4155 = vsel %vm2266, %v4123, %v3501
        %v4156 = vsel %vm2266, %v4124, %v3503
        %v4157 = vsel %vm2266, %v4125, %v3505
        %v4158 = vsel %vm2266, %v4126, %v3507
        %v4159 = vsel %vm2266, %v4127, %v3509
        %v4160 = vsel %vm2266, %v4128, %v3511
        %v4161 = vsel %vm2266, %v4129, %v3513
        %v4162 = vsel %vm2266, %v4130, %v3515
        %v4163 = vsel %vm2266, %v4131, %v3517
        %v4164 = vsel %vm2266, %v4132, %v3519
        %v4165 = vsel %vm2266, %v4133, %v3521
        %v4166 = vsel %vm2266, %v4134, %v3523
        %v4167 = vsel %vm2266, %v4135, %v3525
        %v4168 = vsel %vm2299, %v4136, %v3591
        %v4169 = vsel %vm2299, %v4137, %v3593
        %v4170 = vsel %vm2299, %v4138, %v3595
        %v4171 = vsel %vm2299, %v4139, %v3597
        %v4172 = vsel %vm2299, %v4140, %v3599
        %v4173 = vsel %vm2299, %v4141, %v3601
        %v4174 = vsel %vm2299, %v4142, %v3603
        %v4175 = vsel %vm2299, %v4143, %v3605
        %v4176 = vsel %vm2299, %v4144, %v3607
        %v4177 = vsel %vm2299, %v4145, %v3609
        %v4178 = vsel %vm2299, %v4146, %v3611
        %v4179 = vsel %vm2299, %v4147, %v3613
        %v4180 = vsel %vm2299, %v4148, %v3615
        %v4181 = vsel %vm2299, %v4149, %v3617
        %v4182 = vsel %vm2299, %v4150, %v3619
        %v4183 = vsel %vm2299, %v4151, %v3621
        %v4184 = vsel %vm2299, %v4152, %v3623
        %v4185 = vsel %vm2299, %v4153, %v3625
        %v4186 = vsel %vm2299, %v4154, %v3627
        %v4187 = vsel %vm2299, %v4155, %v3629
        %v4188 = vsel %vm2299, %v4156, %v3631
        %v4189 = vsel %vm2299, %v4157, %v3633
        %v4190 = vsel %vm2299, %v4158, %v3635
        %v4191 = vsel %vm2299, %v4159, %v3637
        %v4192 = vsel %vm2299, %v4160, %v3639
        %v4193 = vsel %vm2299, %v4161, %v3641
        %v4194 = vsel %vm2299, %v4162, %v3643
        %v4195 = vsel %vm2299, %v4163, %v3645
        %v4196 = vsel %vm2299, %v4164, %v3647
        %v4197 = vsel %vm2299, %v4165, %v3649
        %v4198 = vsel %vm2299, %v4166, %v3651
        %v4199 = vsel %vm2299, %v4167, %v3653
        %v4200 = vsel %vm2332, %v4168, %v3719
        %v4201 = vsel %vm2332, %v4169, %v3721
        %v4202 = vsel %vm2332, %v4170, %v3723
        %v4203 = vsel %vm2332, %v4171, %v3725
        %v4204 = vsel %vm2332, %v4172, %v3727
        %v4205 = vsel %vm2332, %v4173, %v3729
        %v4206 = vsel %vm2332, %v4174, %v3731
        %v4207 = vsel %vm2332, %v4175, %v3733
        %v4208 = vsel %vm2332, %v4176, %v3735
        %v4209 = vsel %vm2332, %v4177, %v3737
        %v4210 = vsel %vm2332, %v4178, %v3739
        %v4211 = vsel %vm2332, %v4179, %v3741
        %v4212 = vsel %vm2332, %v4180, %v3743
        %v4213 = vsel %vm2332, %v4181, %v3745
        %v4214 = vsel %vm2332, %v4182, %v3747
        %v4215 = vsel %vm2332, %v4183, %v3749
        %v4216 = vsel %vm2332, %v4184, %v3751
        %v4217 = vsel %vm2332, %v4185, %v3753
        %v4218 = vsel %vm2332, %v4186, %v3755
        %v4219 = vsel %vm2332, %v4187, %v3757
        %v4220 = vsel %vm2332, %v4188, %v3759
        %v4221 = vsel %vm2332, %v4189, %v3761
        %v4222 = vsel %vm2332, %v4190, %v3763
        %v4223 = vsel %vm2332, %v4191, %v3765
        %v4224 = vsel %vm2332, %v4192, %v3767
        %v4225 = vsel %vm2332, %v4193, %v3769
        %v4226 = vsel %vm2332, %v4194, %v3771
        %v4227 = vsel %vm2332, %v4195, %v3773
        %v4228 = vsel %vm2332, %v4196, %v3775
        %v4229 = vsel %vm2332, %v4197, %v3777
        %v4230 = vsel %vm2332, %v4198, %v3779
        %v4231 = vsel %vm2332, %v4199, %v3781
        %v4232 = vsel %vm2365, %v4200, %v3817
        %v4233 = vsel %vm2365, %v4201, %v3819
        %v4234 = vsel %vm2365, %v4202, %v3821
        %v4235 = vsel %vm2365, %v4203, %v3823
        %v4236 = vsel %vm2365, %v4204, %v3825
        %v4237 = vsel %vm2365, %v4205, %v3827
        %v4238 = vsel %vm2365, %v4206, %v3829
        %v4239 = vsel %vm2365, %v4207, %v3831
        %v4240 = vsel %vm2365, %v4208, %v3833
        %v4241 = vsel %vm2365, %v4209, %v3835
        %v4242 = vsel %vm2365, %v4210, %v3837
        %v4243 = vsel %vm2365, %v4211, %v3839
        %v4244 = vsel %vm2365, %v4212, %v3841
        %v4245 = vsel %vm2365, %v4213, %v3843
        %v4246 = vsel %vm2365, %v4214, %v3845
        %v4247 = vsel %vm2365, %v4215, %v3847
        %v4248 = vsel %vm2365, %v4216, %v3849
        %v4249 = vsel %vm2365, %v4217, %v3851
        %v4250 = vsel %vm2365, %v4218, %v3853
        %v4251 = vsel %vm2365, %v4219, %v3855
        %v4252 = vsel %vm2365, %v4220, %v3857
        %v4253 = vsel %vm2365, %v4221, %v3859
        %v4254 = vsel %vm2365, %v4222, %v3861
        %v4255 = vsel %vm2365, %v4223, %v3863
        %v4256 = vsel %vm2365, %v4224, %v3865
        %v4257 = vsel %vm2365, %v4225, %v3867
        %v4258 = vsel %vm2365, %v4226, %v3869
        %v4259 = vsel %vm2365, %v4227, %v3871
        %v4260 = vsel %vm2365, %v4228, %v3873
        %v4261 = vsel %vm2365, %v4229, %v3875
        %v4262 = vsel %vm2365, %v4230, %v3877
        %v4263 = vsel %vm2365, %v4231, %v3879
        %v4264 = vsel %vm2398, %v4232, %v3945
        %v4265 = vsel %vm2398, %v4233, %v3947
        %v4266 = vsel %vm2398, %v4234, %v3949
        %v4267 = vsel %vm2398, %v4235, %v3951
        %v4268 = vsel %vm2398, %v4236, %v3953
        %v4269 = vsel %vm2398, %v4237, %v3955
        %v4270 = vsel %vm2398, %v4238, %v3957
        %v4271 = vsel %vm2398, %v4239, %v3959
        %v4272 = vsel %vm2398, %v4240, %v3961
        %v4273 = vsel %vm2398, %v4241, %v3963
        %v4274 = vsel %vm2398, %v4242, %v3965
        %v4275 = vsel %vm2398, %v4243, %v3967
        %v4276 = vsel %vm2398, %v4244, %v3969
        %v4277 = vsel %vm2398, %v4245, %v3971
        %v4278 = vsel %vm2398, %v4246, %v3973
        %v4279 = vsel %vm2398, %v4247, %v3975
        %v4280 = vsel %vm2398, %v4248, %v3977
        %v4281 = vsel %vm2398, %v4249, %v3979
        %v4282 = vsel %vm2398, %v4250, %v3981
        %v4283 = vsel %vm2398, %v4251, %v3983
        %v4284 = vsel %vm2398, %v4252, %v3985
        %v4285 = vsel %vm2398, %v4253, %v3987
        %v4286 = vsel %vm2398, %v4254, %v3989
        %v4287 = vsel %vm2398, %v4255, %v3991
        %v4288 = vsel %vm2398, %v4256, %v3993
        %v4289 = vsel %vm2398, %v4257, %v3995
        %v4290 = vsel %vm2398, %v4258, %v3997
        %v4291 = vsel %vm2398, %v4259, %v3999
        %v4292 = vsel %vm2398, %v4260, %v4001
        %v4293 = vsel %vm2398, %v4261, %v4003
        %v4294 = vsel %vm2398, %v4262, %v4005
        %v4295 = vsel %vm2398, %v4263, %v4007
        %v4296 = vsel %vm2431, %v4264, 0.0
        %v4297 = vsel %vm2431, %v4265, 0.0
        %v4298 = vsel %vm2431, %v4266, 0.0
        %v4299 = vsel %vm2431, %v4267, 0.0
        %v4300 = vsel %vm2431, %v4268, 0.0
        %v4301 = vsel %vm2431, %v4269, 0.0
        %v4302 = vsel %vm2431, %v4270, 0.0
        %v4303 = vsel %vm2431, %v4271, 0.0
        %v4304 = vsel %vm2431, %v4272, 0.0
        %v4305 = vsel %vm2431, %v4273, 0.0
        %v4306 = vsel %vm2431, %v4274, 0.0
        %v4307 = vsel %vm2431, %v4275, 0.0
        %v4308 = vsel %vm2431, %v4276, 0.0
        %v4309 = vsel %vm2431, %v4277, 0.0
        %v4310 = vsel %vm2431, %v4278, 0.0
        %v4311 = vsel %vm2431, %v4279, 0.0
        %v4312 = vsel %vm2431, %v4280, 0.0
        %v4313 = vsel %vm2431, %v4281, 0.0
        %v4314 = vsel %vm2431, %v4282, 0.0
        %v4315 = vsel %vm2431, %v4283, 0.0
        %v4316 = vsel %vm2431, %v4284, 0.0
        %v4317 = vsel %vm2431, %v4285, 0.0
        %v4318 = vsel %vm2431, %v4286, 0.0
        %v4319 = vsel %vm2431, %v4287, 0.0
        %v4320 = vsel %vm2431, %v4288, 0.0
        %v4321 = vsel %vm2431, %v4289, 0.0
        %v4322 = vsel %vm2431, %v4290, 0.0
        %v4323 = vsel %vm2431, %v4291, 0.0
        %v4324 = vsel %vm2431, %v4292, 0.0
        %v4325 = vsel %vm2431, %v4293, 0.0
        %v4326 = vsel %vm2431, %v4294, 0.0
        %v4327 = vsel %vm2431, %v4295, 0.0
        %v4328 = vld [vmem:[%s3] sm:$0xff]
        %v4329 = vld [vmem:[%s3 + $0x8] sm:$0xff]
        %v4330 = vld [vmem:[%s3 + $0x10] sm:$0xff]
        %v4331 = vld [vmem:[%s3 + $0x18] sm:$0xff]
        %v4332 = vld [vmem:[%s3 + $0x20] sm:$0xff]
        %v4333 = vld [vmem:[%s3 + $0x28] sm:$0xff]
        %v4334 = vld [vmem:[%s3 + $0x30] sm:$0xff]
        %v4335 = vld [vmem:[%s3 + $0x38] sm:$0xff]
        %v4336 = vld [vmem:[%s3 + $0x40] sm:$0xff]
        %v4337 = vld [vmem:[%s3 + $0x48] sm:$0xff]
        %v4338 = vld [vmem:[%s3 + $0x50] sm:$0xff]
        %v4339 = vld [vmem:[%s3 + $0x58] sm:$0xff]
        %v4340 = vld [vmem:[%s3 + $0x60] sm:$0xff]
        %v4341 = vld [vmem:[%s3 + $0x68] sm:$0xff]
        %v4342 = vld [vmem:[%s3 + $0x70] sm:$0xff]
        %v4343 = vld [vmem:[%s3 + $0x78] sm:$0xff]
        %v4344 = vld [vmem:[%s4] sm:$0x1]
        %v4346 = vlaneseq
        %v4347 = vshrl.u32 %v4346, 7
        %v4348 = vsub.s32 0, %v4347
        %v4349 = vrot.slane %v4344, %v4348
        %4351 = vmatprep.subr.mxu0 0.0
        %4352 = vmatpush1.msra.mxu0 %v4343
        %4353 = vmatprep.subr.mxu0 0.0
        %4354 = vmatpush1.msra.mxu0 %v4342
        %4355 = vmatprep.subr.mxu0 0.0
        %4356 = vmatpush1.msra.mxu0 %v4341
        %4357 = vmatprep.subr.mxu0 0.0
        %4358 = vmatpush1.msra.mxu0 %v4340
        %4359 = vmatprep.subr.mxu0 0.0
        %4360 = vmatpush1.msra.mxu0 %v4339
        %4361 = vmatprep.subr.mxu0 0.0
        %4362 = vmatpush1.msra.mxu0 %v4338
        %4363 = vmatprep.subr.mxu0 0.0
        %4364 = vmatpush1.msra.mxu0 %v4337
        %4365 = vmatprep.subr.mxu0 0.0
        %4366 = vmatpush1.msra.mxu0 %v4336
        %4367 = vmatprep.subr.mxu0 0.0
        %4368 = vmatpush1.msra.mxu0 %v4335
        %4369 = vmatprep.subr.mxu0 0.0
        %4370 = vmatpush1.msra.mxu0 %v4334
        %4371 = vmatprep.subr.mxu0 0.0
        %4372 = vmatpush1.msra.mxu0 %v4333
        %4373 = vmatprep.subr.mxu0 0.0
        %4374 = vmatpush1.msra.mxu0 %v4332
        %4375 = vmatprep.subr.mxu0 0.0
        %4376 = vmatpush1.msra.mxu0 %v4331
        %4377 = vmatprep.subr.mxu0 0.0
        %4378 = vmatpush1.msra.mxu0 %v4330
        %4379 = vmatprep.subr.mxu0 0.0
        %4380 = vmatpush1.msra.mxu0 %v4329
        %4381 = vmatprep.subr.mxu0 0.0
        %4382 = vmatpush1.msra.mxu0 %v4328
        %4383 = vmatprep.subr.mxu0 0.0
        %4384 = vmatpush2.msra.mxu0 0.0
        %4385 = vmatprep.subr.mxu0 0.0
        %4386 = vmatpush2.msra.mxu0 0.0
        %4387 = vmatprep.subr.mxu0 0.0
        %4388 = vmatpush2.msra.mxu0 0.0
        %4389 = vmatprep.subr.mxu0 0.0
        %4390 = vmatpush2.msra.mxu0 0.0
        %4391 = vmatprep.subr.mxu0 0.0
        %4392 = vmatpush2.msra.mxu0 0.0
        %4393 = vmatprep.subr.mxu0 0.0
        %4394 = vmatpush2.msra.mxu0 0.0
        %4395 = vmatprep.subr.mxu0 0.0
        %4396 = vmatpush2.msra.mxu0 0.0
        %4397 = vmatprep.subr.mxu0 0.0
        %4398 = vmatpush2.msra.mxu0 0.0
        %4399 = vmatprep.subr.mxu0 0.0
        %4400 = vmatpush2.msra.mxu0 0.0
        %4401 = vmatprep.subr.mxu0 0.0
        %4402 = vmatpush2.msra.mxu0 0.0
        %4403 = vmatprep.subr.mxu0 0.0
        %4404 = vmatpush2.msra.mxu0 0.0
        %4405 = vmatprep.subr.mxu0 0.0
        %4406 = vmatpush2.msra.mxu0 0.0
        %4407 = vmatprep.subr.mxu0 0.0
        %4408 = vmatpush2.msra.mxu0 0.0
        %4409 = vmatprep.subr.mxu0 0.0
        %4410 = vmatpush2.msra.mxu0 0.0
        %4411 = vmatprep.subr.mxu0 0.0
        %4412 = vmatpush2.msra.mxu0 0.0
        %4413 = vmatprep.subr.mxu0 0.0
        %4414 = vmatpush2.msra.mxu0 0.0
        %4415 = vmatprep.mubr.f32.mxu0 0.0
        %4416 = vmatmul.mubr.f32.gmra.mxu0 %v4296
        %v4417 = vpop.f32.mrf.mxu0
        %v4418 = vadd.f32 %v4349, %v4417
        %v4419 = vpop.f32.mrf.mxu0
        %4420 = vmatprep.mubr.f32.mxu0 0.0
        %4421 = vmatmul.mubr.f32.gmra.mxu0 %v4297
        %v4422 = vpop.f32.mrf.mxu0
        %v4423 = vadd.f32 %v4349, %v4422
        %v4424 = vpop.f32.mrf.mxu0
        %4425 = vmatprep.mubr.f32.mxu0 0.0
        %4426 = vmatmul.mubr.f32.gmra.mxu0 %v4298
        %v4427 = vpop.f32.mrf.mxu0
        %v4428 = vadd.f32 %v4349, %v4427
        %v4429 = vpop.f32.mrf.mxu0
        %4430 = vmatprep.mubr.f32.mxu0 0.0
        %4431 = vmatmul.mubr.f32.gmra.mxu0 %v4299
        %v4432 = vpop.f32.mrf.mxu0
        %v4433 = vadd.f32 %v4349, %v4432
        %v4434 = vpop.f32.mrf.mxu0
        %4435 = vmatprep.mubr.f32.mxu0 0.0
        %4436 = vmatmul.mubr.f32.gmra.mxu0 %v4300
        %v4437 = vpop.f32.mrf.mxu0
        %v4438 = vadd.f32 %v4349, %v4437
        %v4439 = vpop.f32.mrf.mxu0
        %4440 = vmatprep.mubr.f32.mxu0 0.0
        %4441 = vmatmul.mubr.f32.gmra.mxu0 %v4301
        %v4442 = vpop.f32.mrf.mxu0
        %v4443 = vadd.f32 %v4349, %v4442
        %v4444 = vpop.f32.mrf.mxu0
        %4445 = vmatprep.mubr.f32.mxu0 0.0
        %4446 = vmatmul.mubr.f32.gmra.mxu0 %v4302
        %v4447 = vpop.f32.mrf.mxu0
        %v4448 = vadd.f32 %v4349, %v4447
        %v4449 = vpop.f32.mrf.mxu0
        %4450 = vmatprep.mubr.f32.mxu0 0.0
        %4451 = vmatmul.mubr.f32.gmra.mxu0 %v4303
        %v4452 = vpop.f32.mrf.mxu0
        %v4453 = vadd.f32 %v4349, %v4452
        %v4454 = vpop.f32.mrf.mxu0
        %4455 = vmatprep.mubr.f32.mxu0 0.0
        %4456 = vmatmul.mubr.f32.gmra.mxu0 %v4304
        %v4457 = vpop.f32.mrf.mxu0
        %v4458 = vadd.f32 %v4349, %v4457
        %v4459 = vpop.f32.mrf.mxu0
        %4460 = vmatprep.mubr.f32.mxu0 0.0
        %4461 = vmatmul.mubr.f32.gmra.mxu0 %v4305
        %v4462 = vpop.f32.mrf.mxu0
        %v4463 = vadd.f32 %v4349, %v4462
        %v4464 = vpop.f32.mrf.mxu0
        %4465 = vmatprep.mubr.f32.mxu0 0.0
        %4466 = vmatmul.mubr.f32.gmra.mxu0 %v4306
        %v4467 = vpop.f32.mrf.mxu0
        %v4468 = vadd.f32 %v4349, %v4467
        %v4469 = vpop.f32.mrf.mxu0
        %4470 = vmatprep.mubr.f32.mxu0 0.0
        %4471 = vmatmul.mubr.f32.gmra.mxu0 %v4307
        %v4472 = vpop.f32.mrf.mxu0
        %v4473 = vadd.f32 %v4349, %v4472
        %v4474 = vpop.f32.mrf.mxu0
        %4475 = vmatprep.mubr.f32.mxu0 0.0
        %4476 = vmatmul.mubr.f32.gmra.mxu0 %v4308
        %v4477 = vpop.f32.mrf.mxu0
        %v4478 = vadd.f32 %v4349, %v4477
        %v4479 = vpop.f32.mrf.mxu0
        %4480 = vmatprep.mubr.f32.mxu0 0.0
        %4481 = vmatmul.mubr.f32.gmra.mxu0 %v4309
        %v4482 = vpop.f32.mrf.mxu0
        %v4483 = vadd.f32 %v4349, %v4482
        %v4484 = vpop.f32.mrf.mxu0
        %4485 = vmatprep.mubr.f32.mxu0 0.0
        %4486 = vmatmul.mubr.f32.gmra.mxu0 %v4310
        %v4487 = vpop.f32.mrf.mxu0
        %v4488 = vadd.f32 %v4349, %v4487
        %v4489 = vpop.f32.mrf.mxu0
        %4490 = vmatprep.mubr.f32.mxu0 0.0
        %4491 = vmatmul.mubr.f32.gmra.mxu0 %v4311
        %v4492 = vpop.f32.mrf.mxu0
        %v4493 = vadd.f32 %v4349, %v4492
        %v4494 = vpop.f32.mrf.mxu0
        %4495 = vmatprep.mubr.f32.mxu0 0.0
        %4496 = vmatmul.mubr.f32.gmra.mxu0 %v4312
        %v4497 = vpop.f32.mrf.mxu0
        %v4498 = vadd.f32 %v4349, %v4497
        %v4499 = vpop.f32.mrf.mxu0
        %4500 = vmatprep.mubr.f32.mxu0 0.0
        %4501 = vmatmul.mubr.f32.gmra.mxu0 %v4313
        %v4502 = vpop.f32.mrf.mxu0
        %v4503 = vadd.f32 %v4349, %v4502
        %v4504 = vpop.f32.mrf.mxu0
        %4505 = vmatprep.mubr.f32.mxu0 0.0
        %4506 = vmatmul.mubr.f32.gmra.mxu0 %v4314
        %v4507 = vpop.f32.mrf.mxu0
        %v4508 = vadd.f32 %v4349, %v4507
        %v4509 = vpop.f32.mrf.mxu0
        %4510 = vmatprep.mubr.f32.mxu0 0.0
        %4511 = vmatmul.mubr.f32.gmra.mxu0 %v4315
        %v4512 = vpop.f32.mrf.mxu0
        %v4513 = vadd.f32 %v4349, %v4512
        %v4514 = vpop.f32.mrf.mxu0
        %4515 = vmatprep.mubr.f32.mxu0 0.0
        %4516 = vmatmul.mubr.f32.gmra.mxu0 %v4316
        %v4517 = vpop.f32.mrf.mxu0
        %v4518 = vadd.f32 %v4349, %v4517
        %v4519 = vpop.f32.mrf.mxu0
        %4520 = vmatprep.mubr.f32.mxu0 0.0
        %4521 = vmatmul.mubr.f32.gmra.mxu0 %v4317
        %v4522 = vpop.f32.mrf.mxu0
        %v4523 = vadd.f32 %v4349, %v4522
        %v4524 = vpop.f32.mrf.mxu0
        %4525 = vmatprep.mubr.f32.mxu0 0.0
        %4526 = vmatmul.mubr.f32.gmra.mxu0 %v4318
        %v4527 = vpop.f32.mrf.mxu0
        %v4528 = vadd.f32 %v4349, %v4527
        %v4529 = vpop.f32.mrf.mxu0
        %4530 = vmatprep.mubr.f32.mxu0 0.0
        %4531 = vmatmul.mubr.f32.gmra.mxu0 %v4319
        %v4532 = vpop.f32.mrf.mxu0
        %v4533 = vadd.f32 %v4349, %v4532
        %v4534 = vpop.f32.mrf.mxu0
        %4535 = vmatprep.mubr.f32.mxu0 0.0
        %4536 = vmatmul.mubr.f32.gmra.mxu0 %v4320
        %v4537 = vpop.f32.mrf.mxu0
        %v4538 = vadd.f32 %v4349, %v4537
        %v4539 = vpop.f32.mrf.mxu0
        %4540 = vmatprep.mubr.f32.mxu0 0.0
        %4541 = vmatmul.mubr.f32.gmra.mxu0 %v4321
        %v4542 = vpop.f32.mrf.mxu0
        %v4543 = vadd.f32 %v4349, %v4542
        %v4544 = vpop.f32.mrf.mxu0
        %4545 = vmatprep.mubr.f32.mxu0 0.0
        %4546 = vmatmul.mubr.f32.gmra.mxu0 %v4322
        %v4547 = vpop.f32.mrf.mxu0
        %v4548 = vadd.f32 %v4349, %v4547
        %v4549 = vpop.f32.mrf.mxu0
        %4550 = vmatprep.mubr.f32.mxu0 0.0
        %4551 = vmatmul.mubr.f32.gmra.mxu0 %v4323
        %v4552 = vpop.f32.mrf.mxu0
        %v4553 = vadd.f32 %v4349, %v4552
        %v4554 = vpop.f32.mrf.mxu0
        %4555 = vmatprep.mubr.f32.mxu0 0.0
        %4556 = vmatmul.mubr.f32.gmra.mxu0 %v4324
        %v4557 = vpop.f32.mrf.mxu0
        %v4558 = vadd.f32 %v4349, %v4557
        %v4559 = vpop.f32.mrf.mxu0
        %4560 = vmatprep.mubr.f32.mxu0 0.0
        %4561 = vmatmul.mubr.f32.gmra.mxu0 %v4325
        %v4562 = vpop.f32.mrf.mxu0
        %v4563 = vadd.f32 %v4349, %v4562
        %v4564 = vpop.f32.mrf.mxu0
        %4565 = vmatprep.mubr.f32.mxu0 0.0
        %4566 = vmatmul.mubr.f32.gmra.mxu0 %v4326
        %v4567 = vpop.f32.mrf.mxu0
        %v4568 = vadd.f32 %v4349, %v4567
        %v4569 = vpop.f32.mrf.mxu0
        %4570 = vmatprep.mubr.f32.mxu0 0.0
        %4571 = vmatmul.mubr.f32.gmra.mxu0 %v4327
        %v4572 = vpop.f32.mrf.mxu0
        %v4573 = vadd.f32 %v4349, %v4572
        %v4574 = vpop.f32.mrf.mxu0
        %4575 = vdwg.mxu0
        %v4576 = vsel %vm223, %v840, 0.0
        %v4577 = vsel %vm223, %v841, 0.0
        %v4578 = vsel %vm223, %v842, 0.0
        %v4579 = vsel %vm223, %v843, 0.0
        %v4580 = vsel %vm223, %v844, 0.0
        %v4581 = vsel %vm223, %v845, 0.0
        %v4582 = vsel %vm223, %v846, 0.0
        %v4583 = vsel %vm223, %v847, 0.0
        %v4584 = vsel %vm223, %v848, 0.0
        %v4585 = vsel %vm223, %v849, 0.0
        %v4586 = vsel %vm223, %v850, 0.0
        %v4587 = vsel %vm223, %v851, 0.0
        %v4588 = vsel %vm223, %v852, 0.0
        %v4589 = vsel %vm223, %v853, 0.0
        %v4590 = vsel %vm223, %v854, 0.0
        %v4591 = vsel %vm223, %v855, 0.0
        %v4592 = vsel %vm223, %v856, 0.0
        %v4593 = vsel %vm223, %v857, 0.0
        %v4594 = vsel %vm223, %v858, 0.0
        %v4595 = vsel %vm223, %v859, 0.0
        %v4596 = vsel %vm223, %v860, 0.0
        %v4597 = vsel %vm223, %v861, 0.0
        %v4598 = vsel %vm223, %v862, 0.0
        %v4599 = vsel %vm223, %v863, 0.0
        %v4600 = vsel %vm223, %v864, 0.0
        %v4601 = vsel %vm223, %v865, 0.0
        %v4602 = vsel %vm223, %v866, 0.0
        %v4603 = vsel %vm223, %v867, 0.0
        %v4604 = vsel %vm223, %v868, 0.0
        %v4605 = vsel %vm223, %v869, 0.0
        %v4606 = vsel %vm223, %v870, 0.0
        %v4607 = vsel %vm223, %v871, 0.0
        %v4608 = vadd.f32 %v4576, %v4418
        %v4609 = vadd.f32 %v4577, %v4423
        %v4610 = vadd.f32 %v4578, %v4428
        %v4611 = vadd.f32 %v4579, %v4433
        %v4612 = vadd.f32 %v4580, %v4438
        %v4613 = vadd.f32 %v4581, %v4443
        %v4614 = vadd.f32 %v4582, %v4448
        %v4615 = vadd.f32 %v4583, %v4453
        %v4616 = vadd.f32 %v4584, %v4458
        %v4617 = vadd.f32 %v4585, %v4463
        %v4618 = vadd.f32 %v4586, %v4468
        %v4619 = vadd.f32 %v4587, %v4473
        %v4620 = vadd.f32 %v4588, %v4478
        %v4621 = vadd.f32 %v4589, %v4483
        %v4622 = vadd.f32 %v4590, %v4488
        %v4623 = vadd.f32 %v4591, %v4493
        %v4624 = vadd.f32 %v4592, %v4498
        %v4625 = vadd.f32 %v4593, %v4503
        %v4626 = vadd.f32 %v4594, %v4508
        %v4627 = vadd.f32 %v4595, %v4513
        %v4628 = vadd.f32 %v4596, %v4518
        %v4629 = vadd.f32 %v4597, %v4523
        %v4630 = vadd.f32 %v4598, %v4528
        %v4631 = vadd.f32 %v4599, %v4533
        %v4632 = vadd.f32 %v4600, %v4538
        %v4633 = vadd.f32 %v4601, %v4543
        %v4634 = vadd.f32 %v4602, %v4548
        %v4635 = vadd.f32 %v4603, %v4553
        %v4636 = vadd.f32 %v4604, %v4558
        %v4637 = vadd.f32 %v4605, %v4563
        %v4638 = vadd.f32 %v4606, %v4568
        %v4639 = vadd.f32 %v4607, %v4573
        %4640 = vst [vmem:[%s217] sm:$0xff] %v4608
        %4641 = vst [vmem:[%s217 + $0x8] sm:$0xff] %v4609
        %4642 = vst [vmem:[%s217 + $0x10] sm:$0xff] %v4610
        %4643 = vst [vmem:[%s217 + $0x18] sm:$0xff] %v4611
        %4644 = vst [vmem:[%s217 + $0x20] sm:$0xff] %v4612
        %4645 = vst [vmem:[%s217 + $0x28] sm:$0xff] %v4613
        %4646 = vst [vmem:[%s217 + $0x30] sm:$0xff] %v4614
        %4647 = vst [vmem:[%s217 + $0x38] sm:$0xff] %v4615
        %4648 = vst [vmem:[%s217 + $0x40] sm:$0xff] %v4616
        %4649 = vst [vmem:[%s217 + $0x48] sm:$0xff] %v4617
        %4650 = vst [vmem:[%s217 + $0x50] sm:$0xff] %v4618
        %4651 = vst [vmem:[%s217 + $0x58] sm:$0xff] %v4619
        %4652 = vst [vmem:[%s217 + $0x60] sm:$0xff] %v4620
        %4653 = vst [vmem:[%s217 + $0x68] sm:$0xff] %v4621
        %4654 = vst [vmem:[%s217 + $0x70] sm:$0xff] %v4622
        %4655 = vst [vmem:[%s217 + $0x78] sm:$0xff] %v4623
        %4656 = vst [vmem:[%s217 + $0x80] sm:$0xff] %v4624
        %4657 = vst [vmem:[%s217 + $0x88] sm:$0xff] %v4625
        %4658 = vst [vmem:[%s217 + $0x90] sm:$0xff] %v4626
        %4659 = vst [vmem:[%s217 + $0x98] sm:$0xff] %v4627
        %4660 = vst [vmem:[%s217 + $0xa0] sm:$0xff] %v4628
        %4661 = vst [vmem:[%s217 + $0xa8] sm:$0xff] %v4629
        %4662 = vst [vmem:[%s217 + $0xb0] sm:$0xff] %v4630
        %4663 = vst [vmem:[%s217 + $0xb8] sm:$0xff] %v4631
        %4664 = vst [vmem:[%s217 + $0xc0] sm:$0xff] %v4632
        %4665 = vst [vmem:[%s217 + $0xc8] sm:$0xff] %v4633
        %4666 = vst [vmem:[%s217 + $0xd0] sm:$0xff] %v4634
        %4667 = vst [vmem:[%s217 + $0xd8] sm:$0xff] %v4635
        %4668 = vst [vmem:[%s217 + $0xe0] sm:$0xff] %v4636
        %4669 = vst [vmem:[%s217 + $0xe8] sm:$0xff] %v4637
        %4670 = vst [vmem:[%s217 + $0xf0] sm:$0xff] %v4638
        %4671 = vst [vmem:[%s217 + $0xf8] sm:$0xff] %v4639
        %s4672 = sand.u32 %s137, 1
        %s4673 = scalar_lea.sflag [#allocation4], %s4672
        %s4674 = sand.u32 %s137, 1
        %s4675 = smul.addr %s4674, 256
        %s4676 = scalar_lea.vmem [#allocation3], %s4675
        // Predicated region
        $region41: #{tpu_custom_call.1} parent=39 // pred_check
          %p4677 = pneg %p147
        $region42: #{tpu_custom_call.1} parent=39 // pred_check_branch
          %4679 = sbr.rel (%p4677) target = $region44
        $region43: #{tpu_custom_call.1} parent=39 // pred_region
          %s4681 = ssub.s32 4096, 4096
          %4682 = vsyncadd %s4673, %s4681
          %s4683 = smul.addr %s19, 32
          %s4684 = smul.addr %s4683, 128
          %s4685 = scalar_lea.hbm %s5, %s4684
          %s4686 = sshll.u32 %s4676, 4
          %s4687 = int_to_ptr.vmem [resolvable:$true] %s4686
          %4692 = dma.vmem_to_hbm [thread:$0]  %s4687, 4096, %s4685, %s4673, 128, 128, 8
        $region44: #{tpu_custom_call.1} parent=39 // pred_fallthru
          _
      $region40: #{tpu_custom_call.1} parent=5 // pred_fallthru
        _
      %p4693 = scmp.le.s32.totalorder 2, %s14
      // Predicated region
      $region45: #{tpu_custom_call.1} parent=5 // pred_check
        %p4694 = pneg %p4693
      $region46: #{tpu_custom_call.1} parent=5 // pred_check_branch
        %4696 = sbr.rel (%p4694) target = $region48
      $region47: #{tpu_custom_call.1} parent=5 // pred_region
        %s4697 = ssub.s32 %s14, 2
        // Predicated region
        $region49: #{tpu_custom_call.1} parent=47 // pred_check
          %p4698 = pneg %p153
        $region50: #{tpu_custom_call.1} parent=47 // pred_check_branch
          %4700 = sbr.rel (%p4698) target = $region52
        $region51: #{tpu_custom_call.1} parent=47 // pred_region
          %s4701 = sand.u32 %s138, 1
          %s4702 = scalar_lea.sflag [#allocation4], %s4701
          %s4703 = sand.u32 %s138, 1
          %s4704 = smul.addr %s4703, 256
          %s4705 = scalar_lea.vmem [#allocation3], %s4704
          %4706 = dma.done %s4702, 4096
        $region52: #{tpu_custom_call.1} parent=47 // pred_fallthru
          _
      $region48: #{tpu_custom_call.1} parent=5 // pred_fallthru
        _
    $region6: #{tpu_custom_call.1} parent=1 // loop_footer
      %s18 = sadd.s32 1, %s14
    $region7: #{tpu_custom_call.1} parent=1 // loop_footer_branch
      %13 = sbr.rel target = $region3
    $region8: #{tpu_custom_call.1} parent=1 // loop_exit
      _
    %4707 = vsyncpa [#allocation4], 1
    %s4708 = scalar_lea.sflag [#allocation4], 1
    %4709 = vsyncpa %s4708, 1

</llo_original>
